<compile_context>
chip_gen: v5e
topology: v5e:2x2
jax: 0.10.0
libtpu: 0.0.40
codegen_flags: <defaults>
</compile_context>

<pallas_src>
import functools

import jax
import jax.numpy as jnp
from jax import lax
from jax.experimental import pallas as pl
from jax.experimental.pallas import tpu as pltpu

EPS = 1e-5
_PAD = 128  # lane-aligned halo for the flattened H*W axis; must be >= W + 1


# ---------------------------------------------------------------------------
# Kernel 1: per-image per-channel sum / sum-of-squares (bn1 batch statistics)
# ---------------------------------------------------------------------------
def _batch_stats_kernel(x_ref, sum_ref, ssq_ref):
    x = x_ref[0].astype(jnp.float32)                     # (C, HW)
    sum_ref[0] = jnp.sum(x, axis=1, keepdims=True)       # (C, 1)
    ssq_ref[0] = jnp.sum(x * x, axis=1, keepdims=True)   # (C, 1)


def _batch_stats(x):
    N, C, HW = x.shape
    return pl.pallas_call(
        _batch_stats_kernel,
        out_shape=(jax.ShapeDtypeStruct((N, C, 1), jnp.float32),
                   jax.ShapeDtypeStruct((N, C, 1), jnp.float32)),
        grid=(N,),
        in_specs=[pl.BlockSpec((1, C, HW), lambda n: (n, 0, 0))],
        out_specs=(pl.BlockSpec((1, C, 1), lambda n: (n, 0, 0)),
                   pl.BlockSpec((1, C, 1), lambda n: (n, 0, 0))),
        compiler_params=pltpu.CompilerParams(dimension_semantics=("parallel",)),
    )(x)


# ---------------------------------------------------------------------------
# Shared body: folded-BN (scale/shift) + ReLU + 3x3 conv (pad=1) on one image.
#   x_ref:     (1, Cin, HW) VMEM block
#   w_ref:     (9, Cout, Cin) VMEM, tap-major weights (t = kh*3 + kw)
#   scale/shift: (Cin,) SMEM scalars (folded BN)
#   xpad_ref:  (Cin, HW + 2*_PAD) VMEM scratch (zero halo on both sides)
# Returns the f32 conv result of shape (Cout, HW).
# ---------------------------------------------------------------------------
def _bn_relu_conv3x3(x_ref, w_ref, scale_ref, shift_ref, xpad_ref, H, W):
    Cin = x_ref.shape[1]
    HW = H * W
    Cout = w_ref.shape[1]

    # Zero the halo (aligned stores), then write relu(scale*x + shift) into the interior.
    xpad_ref[:, :_PAD] = jnp.zeros((Cin, _PAD), jnp.float32)
    xpad_ref[:, _PAD + HW:] = jnp.zeros((Cin, _PAD), jnp.float32)
    for ci in range(Cin):
        row = x_ref[0, ci:ci + 1, :].astype(jnp.float32)            # (1, HW)
        xpad_ref[ci:ci + 1, _PAD:_PAD + HW] = jnp.maximum(
            row * scale_ref[ci] + shift_ref[ci], 0.0)

    # Row wrap-around masks for the horizontal taps (vertical taps fall into the zero halo).
    lane = lax.broadcasted_iota(jnp.int32, (Cin, HW), 1)
    col = lax.rem(lane, W)
    not_left = col > 0           # valid positions when the tap reads column w-1
    not_right = col < (W - 1)    # valid positions when the tap reads column w+1

    # 9 shifted-window taps accumulated with small MXU matmuls in f32.
    acc = jnp.zeros((Cout, HW), jnp.float32)
    for kh in range(3):
        for kw in range(3):
            d = (kh - 1) * W + (kw - 1)
            blk = xpad_ref[:, _PAD + d:_PAD + d + HW]                # (Cin, HW)
            if kw == 0:
                blk = jnp.where(not_left, blk, 0.0)
            elif kw == 2:
                blk = jnp.where(not_right, blk, 0.0)
            acc = acc + jnp.dot(w_ref[kh * 3 + kw], blk,
                                preferred_element_type=jnp.float32)
    return acc


# ---------------------------------------------------------------------------
# Kernel 2: bn1 + relu + conv1, with bn2 sum/sumsq fused into the epilogue
# ---------------------------------------------------------------------------
def _conv_stats_kernel(H, W, x_ref, w_ref, scale_ref, shift_ref,
                       y_ref, sum_ref, ssq_ref, xpad_ref):
    y = _bn_relu_conv3x3(x_ref, w_ref, scale_ref, shift_ref, xpad_ref, H, W)
    y_ref[0] = y.astype(y_ref.dtype)
    sum_ref[0] = jnp.sum(y, axis=1, keepdims=True)
    ssq_ref[0] = jnp.sum(y * y, axis=1, keepdims=True)


def _bn_relu_conv_stats(x, w9, scale, shift, H, W):
    N, Cin, HW = x.shape
    Cout = w9.shape[1]
    kernel = functools.partial(_conv_stats_kernel, H, W)
    return pl.pallas_call(
        kernel,
        out_shape=(jax.ShapeDtypeStruct((N, Cout, HW), x.dtype),
                   jax.ShapeDtypeStruct((N, Cout, 1), jnp.float32),
                   jax.ShapeDtypeStruct((N, Cout, 1), jnp.float32)),
        grid=(N,),
        in_specs=[
            pl.BlockSpec((1, Cin, HW), lambda n: (n, 0, 0)),
            pl.BlockSpec((9, Cout, Cin), lambda n: (0, 0, 0)),
            pl.BlockSpec(memory_space=pltpu.MemorySpace.SMEM),   # scale  (Cin,)
            pl.BlockSpec(memory_space=pltpu.MemorySpace.SMEM),   # shift  (Cin,)
        ],
        out_specs=(pl.BlockSpec((1, Cout, HW), lambda n: (n, 0, 0)),
                   pl.BlockSpec((1, Cout, 1), lambda n: (n, 0, 0)),
                   pl.BlockSpec((1, Cout, 1), lambda n: (n, 0, 0))),
        scratch_shapes=[pltpu.VMEM((Cin, HW + 2 * _PAD), jnp.float32)],
        compiler_params=pltpu.CompilerParams(dimension_semantics=("parallel",)),
    )(x, w9, scale, shift)


# ---------------------------------------------------------------------------
# Kernel 3: bn2 + relu + conv2 + residual add (all fused)
# ---------------------------------------------------------------------------
def _conv_residual_kernel(H, W, x_ref, w_ref, scale_ref, shift_ref, res_ref,
                          y_ref, xpad_ref):
    y = _bn_relu_conv3x3(x_ref, w_ref, scale_ref, shift_ref, xpad_ref, H, W)
    y_ref[0] = (y + res_ref[0].astype(jnp.float32)).astype(y_ref.dtype)


def _bn_relu_conv_residual(x, w9, scale, shift, res, H, W):
    N, Cin, HW = x.shape
    Cout = w9.shape[1]
    kernel = functools.partial(_conv_residual_kernel, H, W)
    return pl.pallas_call(
        kernel,
        out_shape=jax.ShapeDtypeStruct((N, Cout, HW), x.dtype),
        grid=(N,),
        in_specs=[
            pl.BlockSpec((1, Cin, HW), lambda n: (n, 0, 0)),
            pl.BlockSpec((9, Cout, Cin), lambda n: (0, 0, 0)),
            pl.BlockSpec(memory_space=pltpu.MemorySpace.SMEM),   # scale  (Cin,)
            pl.BlockSpec(memory_space=pltpu.MemorySpace.SMEM),   # shift  (Cin,)
            pl.BlockSpec((1, Cout, HW), lambda n: (n, 0, 0)),    # residual
        ],
        out_specs=pl.BlockSpec((1, Cout, HW), lambda n: (n, 0, 0)),
        scratch_shapes=[pltpu.VMEM((Cin, HW + 2 * _PAD), jnp.float32)],
        compiler_params=pltpu.CompilerParams(dimension_semantics=("parallel",)),
    )(x, w9, scale, shift, res)


# ---------------------------------------------------------------------------
# PreActBlock forward
# ---------------------------------------------------------------------------
def _im2col_weights(w_hwio):
    # (3, 3, Cin, Cout) HWIO -> (9, Cout, Cin), tap index t = kh * 3 + kw
    kh, kw, cin, cout = w_hwio.shape
    return jnp.transpose(w_hwio, (0, 1, 3, 2)).reshape(kh * kw, cout, cin)


def _folded_bn(gamma, beta, sums, sumsqs, count):
    mean = jnp.sum(sums, axis=0)[:, 0] / count
    var = jnp.sum(sumsqs, axis=0)[:, 0] / count - mean * mean
    var = jnp.maximum(var, 0.0)                  # guard E[x^2]-E[x]^2 cancellation
    scale = gamma / jnp.sqrt(var + EPS)
    shift = beta - mean * scale
    return scale, shift


def preact_block_forward(x_nchw, params):
    """stride=1, downsample=None (identity residual), training-mode BN."""
    N, C, H, W = x_nchw.shape
    assert _PAD >= W + 1
    HW = H * W
    x = x_nchw.reshape(N, C, HW)                 # lane-dense layout; free reshape, no transpose
    count = N * HW

    # bn1 stats (per-image partial sums in Pallas, 8-float reduction in XLA)
    s1, ss1 = _batch_stats(x)
    scale1, shift1 = _folded_bn(params["bn1_gamma"], params["bn1_beta"], s1, ss1, count)

    # conv1(relu(bn1(x))) with bn2 sums fused into the epilogue
    w1 = _im2col_weights(params["conv1_w"])
    y1, s2, ss2 = _bn_relu_conv_stats(x, w1, scale1, shift1, H, W)
    scale2, shift2 = _folded_bn(params["bn2_gamma"], params["bn2_beta"], s2, ss2, count)

    # conv2(relu(bn2(y1))) + x, fully fused
    w2 = _im2col_weights(params["conv2_w"])
    out = _bn_relu_conv_residual(y1, w2, scale2, shift2, x, H, W)

    return out.reshape(N, out.shape[1], H, W)


# ---------------------------------------------------------------------------
# Pure-JAX reference of the PyTorch block (for the numerical self-check)
# ---------------------------------------------------------------------------
def _reference_forward(x, params):
    def bn(v, gamma, beta):
        mean = jnp.mean(v, axis=(0, 2, 3), keepdims=True)
        var = jnp.var(v, axis=(0, 2, 3), keepdims=True)      # biased, training mode
        g = gamma.reshape(1, -1, 1, 1)
        b = beta.reshape(1, -1, 1, 1)
        return (v - mean) / jnp.sqrt(var + EPS) * g + b

    def conv(v, w_hwio):
        w_oihw = jnp.transpose(w_hwio, (3, 2, 0, 1))
        return lax.conv_general_dilated(
            v, w_oihw, window_strides=(1, 1), padding=((1, 1), (1, 1)),
            dimension_numbers=("NCHW", "OIHW", "NCHW"))

    out = jnp.maximum(bn(x, params["bn1_gamma"], params["bn1_beta"]), 0.0)
    out = conv(out, params["conv1_w"])
    out = jnp.maximum(bn(out, params["bn2_gamma"], params["bn2_beta"]), 0.0)
    out = conv(out, params["conv2_w"])
    return out + x


if __name__ == "__main__":
    key = jax.random.PRNGKey(0)
    kx, k1, k2 = jax.random.split(key, 3)

    N, inplanes, H, W = 2, 4, 16, 16
    planes = 4                                   # stride=1, downsample=None

    x = jax.random.normal(kx, (N, inplanes, H, W), jnp.float32)   # NCHW like PyTorch

    params = {
        "conv1_w": jax.random.normal(k1, (3, 3, inplanes, planes), jnp.float32)
                   * (2.0 / (9 * inplanes)) ** 0.5,               # HWIO
        "conv2_w": jax.random.normal(k2, (3, 3, planes, planes), jnp.float32)
                   * (2.0 / (9 * planes)) ** 0.5,                 # HWIO
        "bn1_gamma": jnp.ones((inplanes,), jnp.float32),
        "bn1_beta": jnp.zeros((inplanes,), jnp.float32),
        "bn2_gamma": jnp.ones((planes,), jnp.float32),
        "bn2_beta": jnp.zeros((planes,), jnp.float32),
    }

    out = jax.jit(preact_block_forward)(x, params)
    jax.block_until_ready(out)
    assert out.shape == (N, planes, H, W), out.shape

    # numerical self-check against the pure-JAX reference of the PyTorch block
    ref = _reference_forward(x, params)
    err = float(jnp.max(jnp.abs(out - ref)))
    assert err < 2e-3, f"max abs error vs reference: {err}"

    print("KERNEL_OK")
</pallas_src>

<mosaic_0001>
module attributes {stable_mosaic.version = 11 : i64} {
  func.func @_batch_stats_kernel(%arg0: i32, %arg1: memref<1x4x256xf32, #tpu.memory_space<vmem>>, %arg2: memref<1x4x1xf32, #tpu.memory_space<vmem>>, %arg3: memref<1x4x1xf32, #tpu.memory_space<vmem>>) attributes {dimension_semantics = [#tpu.dimension_semantics<parallel>], iteration_bounds = array<i64: 2>, scalar_prefetch = 0 : i64, scratch_operands = 0 : i64, tpu.core_type = #tpu.core_type<tc>, window_params = [{transform_indices = @transform_0, window_bounds = array<i64: 1, 4, 256>}, {transform_indices = @transform_1, window_bounds = array<i64: 1, 4, 1>}, {transform_indices = @transform_2, window_bounds = array<i64: 1, 4, 1>}]} {
    %c0 = arith.constant 0 : index
    %c0_0 = arith.constant 0 : index
    %c0_1 = arith.constant 0 : index
    %0 = vector.load %arg1[%c0, %c0_0, %c0_1] : memref<1x4x256xf32, #tpu.memory_space<vmem>>, vector<1x4x256xf32>
    %1 = vector.shape_cast %0 : vector<1x4x256xf32> to vector<4x256xf32>
    %cst = arith.constant dense<0.000000e+00> : vector<4xf32>
    %2 = vector.multi_reduction <add>, %1, %cst [1] : vector<4x256xf32> to vector<4xf32>
    %3 = vector.shape_cast %2 : vector<4xf32> to vector<4x1xf32>
    %c0_2 = arith.constant 0 : index
    %c0_3 = arith.constant 0 : index
    %c0_4 = arith.constant 0 : index
    %4 = vector.load %arg2[%c0_2, %c0_3, %c0_4] : memref<1x4x1xf32, #tpu.memory_space<vmem>>, vector<1x4x1xf32>
    %5 = vector.shape_cast %4 : vector<1x4x1xf32> to vector<4x1xf32>
    %6 = vector.shape_cast %3 : vector<4x1xf32> to vector<1x4x1xf32>
    tpu.vector_store %arg2[%c0_2, %c0_3, %c0_4], %6 {strides = array<i32>} : memref<1x4x1xf32, #tpu.memory_space<vmem>>, vector<1x4x1xf32>,
    %7 = arith.mulf %1, %1 : vector<4x256xf32>
    %cst_5 = arith.constant dense<0.000000e+00> : vector<4xf32>
    %8 = vector.multi_reduction <add>, %7, %cst_5 [1] : vector<4x256xf32> to vector<4xf32>
    %9 = vector.shape_cast %8 : vector<4xf32> to vector<4x1xf32>
    %c0_6 = arith.constant 0 : index
    %c0_7 = arith.constant 0 : index
    %c0_8 = arith.constant 0 : index
    %10 = vector.load %arg3[%c0_6, %c0_7, %c0_8] : memref<1x4x1xf32, #tpu.memory_space<vmem>>, vector<1x4x1xf32>
    %11 = vector.shape_cast %10 : vector<1x4x1xf32> to vector<4x1xf32>
    %12 = vector.shape_cast %9 : vector<4x1xf32> to vector<1x4x1xf32>
    tpu.vector_store %arg3[%c0_6, %c0_7, %c0_8], %12 {strides = array<i32>} : memref<1x4x1xf32, #tpu.memory_space<vmem>>, vector<1x4x1xf32>,
    return
  }
  func.func @transform_0(%arg0: i32) -> (i32, i32, i32) {
    %c0_i32 = arith.constant 0 : i32
    %c0_i32_0 = arith.constant 0 : i32
    %c0_i32_1 = arith.constant 0 : i32
    return %arg0, %c0_i32, %c0_i32_0 : i32, i32, i32
  }
  func.func @transform_1(%arg0: i32) -> (i32, i32, i32) {
    %c0_i32 = arith.constant 0 : i32
    %c0_i32_0 = arith.constant 0 : i32
    %c0_i32_1 = arith.constant 0 : i32
    return %arg0, %c0_i32, %c0_i32_0 : i32, i32, i32
  }
  func.func @transform_2(%arg0: i32) -> (i32, i32, i32) {
    %c0_i32 = arith.constant 0 : i32
    %c0_i32_0 = arith.constant 0 : i32
    %c0_i32_1 = arith.constant 0 : i32
    return %arg0, %c0_i32, %c0_i32_0 : i32, i32, i32
  }
}

module attributes {stable_mosaic.version = 11 : i64} {
  func.func @_conv_residual_kernel(%arg0: i32, %arg1: memref<1x4x256xf32, #tpu.memory_space<vmem>>, %arg2: memref<9x4x4xf32, #tpu.memory_space<vmem>>, %arg3: memref<4xf32, #tpu.memory_space<smem>>, %arg4: memref<4xf32, #tpu.memory_space<smem>>, %arg5: memref<1x4x256xf32, #tpu.memory_space<vmem>>, %arg6: memref<1x4x256xf32, #tpu.memory_space<vmem>>, %arg7: memref<4x512xf32, #tpu.memory_space<vmem>>) attributes {dimension_semantics = [#tpu.dimension_semantics<parallel>], iteration_bounds = array<i64: 2>, scalar_prefetch = 0 : i64, scratch_operands = 1 : i64, tpu.core_type = #tpu.core_type<tc>, window_params = [{transform_indices = @transform_0, window_bounds = array<i64: 1, 4, 256>}, {pipeline_mode = #tpu.pipeline_mode<synchronous>, transform_indices = @transform_1, window_bounds = array<i64: 9, 4, 4>}, {transform_indices = @transform_2, window_bounds = array<i64: 4>}, {transform_indices = @transform_3, window_bounds = array<i64: 4>}, {transform_indices = @transform_4, window_bounds = array<i64: 1, 4, 256>}, {transform_indices = @transform_5, window_bounds = array<i64: 1, 4, 256>}]} {
    %cst = arith.constant 0.000000e+00 : f32
    %0 = vector.broadcast %cst : f32 to vector<4x128xf32>
    %c0 = arith.constant 0 : index
    %c0_0 = arith.constant 0 : index
    %1 = vector.load %arg7[%c0, %c0_0] : memref<4x512xf32, #tpu.memory_space<vmem>>, vector<4x128xf32>
    tpu.vector_store %arg7[%c0, %c0_0], %0 {strides = array<i32>} : memref<4x512xf32, #tpu.memory_space<vmem>>, vector<4x128xf32>,
    %cst_1 = arith.constant 0.000000e+00 : f32
    %2 = vector.broadcast %cst_1 : f32 to vector<4x128xf32>
    %c0_2 = arith.constant 0 : index
    %c384 = arith.constant 384 : index
    %3 = vector.load %arg7[%c0_2, %c384] : memref<4x512xf32, #tpu.memory_space<vmem>>, vector<4x128xf32>
    tpu.vector_store %arg7[%c0_2, %c384], %2 {strides = array<i32>} : memref<4x512xf32, #tpu.memory_space<vmem>>, vector<4x128xf32>,
    %c0_3 = arith.constant 0 : index
    %c0_4 = arith.constant 0 : index
    %c0_5 = arith.constant 0 : index
    %4 = vector.load %arg1[%c0_3, %c0_4, %c0_5] : memref<1x4x256xf32, #tpu.memory_space<vmem>>, vector<1x1x256xf32>
    %5 = vector.shape_cast %4 : vector<1x1x256xf32> to vector<1x256xf32>
    %c0_6 = arith.constant 0 : index
    %6 = memref.load %arg3[%c0_6] : memref<4xf32, #tpu.memory_space<smem>>
    %7 = vector.broadcast %6 : f32 to vector<1x256xf32>
    %8 = arith.mulf %5, %7 : vector<1x256xf32>
    %c0_7 = arith.constant 0 : index
    %9 = memref.load %arg4[%c0_7] : memref<4xf32, #tpu.memory_space<smem>>
    %10 = vector.broadcast %9 : f32 to vector<1x256xf32>
    %11 = arith.addf %8, %10 : vector<1x256xf32>
    %cst_8 = arith.constant 0.000000e+00 : f32
    %12 = vector.broadcast %cst_8 : f32 to vector<1x256xf32>
    %13 = arith.maximumf %11, %12 : vector<1x256xf32>
    %c0_9 = arith.constant 0 : index
    %c128 = arith.constant 128 : index
    %14 = vector.load %arg7[%c0_9, %c128] : memref<4x512xf32, #tpu.memory_space<vmem>>, vector<1x256xf32>
    tpu.vector_store %arg7[%c0_9, %c128], %13 {strides = array<i32>} : memref<4x512xf32, #tpu.memory_space<vmem>>, vector<1x256xf32>,
    %c0_10 = arith.constant 0 : index
    %c1 = arith.constant 1 : index
    %c0_11 = arith.constant 0 : index
    %15 = vector.load %arg1[%c0_10, %c1, %c0_11] : memref<1x4x256xf32, #tpu.memory_space<vmem>>, vector<1x1x256xf32>
    %16 = vector.shape_cast %15 : vector<1x1x256xf32> to vector<1x256xf32>
    %c1_12 = arith.constant 1 : index
    %17 = memref.load %arg3[%c1_12] : memref<4xf32, #tpu.memory_space<smem>>
    %18 = vector.broadcast %17 : f32 to vector<1x256xf32>
    %19 = arith.mulf %16, %18 : vector<1x256xf32>
    %c1_13 = arith.constant 1 : index
    %20 = memref.load %arg4[%c1_13] : memref<4xf32, #tpu.memory_space<smem>>
    %21 = vector.broadcast %20 : f32 to vector<1x256xf32>
    %22 = arith.addf %19, %21 : vector<1x256xf32>
    %cst_14 = arith.constant 0.000000e+00 : f32
    %23 = vector.broadcast %cst_14 : f32 to vector<1x256xf32>
    %24 = arith.maximumf %22, %23 : vector<1x256xf32>
    %c1_15 = arith.constant 1 : index
    %c128_16 = arith.constant 128 : index
    %25 = vector.load %arg7[%c1_15, %c128_16] : memref<4x512xf32, #tpu.memory_space<vmem>>, vector<1x256xf32>
    tpu.vector_store %arg7[%c1_15, %c128_16], %24 {strides = array<i32>} : memref<4x512xf32, #tpu.memory_space<vmem>>, vector<1x256xf32>,
    %c0_17 = arith.constant 0 : index
    %c2 = arith.constant 2 : index
    %c0_18 = arith.constant 0 : index
    %26 = vector.load %arg1[%c0_17, %c2, %c0_18] : memref<1x4x256xf32, #tpu.memory_space<vmem>>, vector<1x1x256xf32>
    %27 = vector.shape_cast %26 : vector<1x1x256xf32> to vector<1x256xf32>
    %c2_19 = arith.constant 2 : index
    %28 = memref.load %arg3[%c2_19] : memref<4xf32, #tpu.memory_space<smem>>
    %29 = vector.broadcast %28 : f32 to vector<1x256xf32>
    %30 = arith.mulf %27, %29 : vector<1x256xf32>
    %c2_20 = arith.constant 2 : index
    %31 = memref.load %arg4[%c2_20] : memref<4xf32, #tpu.memory_space<smem>>
    %32 = vector.broadcast %31 : f32 to vector<1x256xf32>
    %33 = arith.addf %30, %32 : vector<1x256xf32>
    %cst_21 = arith.constant 0.000000e+00 : f32
    %34 = vector.broadcast %cst_21 : f32 to vector<1x256xf32>
    %35 = arith.maximumf %33, %34 : vector<1x256xf32>
    %c2_22 = arith.constant 2 : index
    %c128_23 = arith.constant 128 : index
    %36 = vector.load %arg7[%c2_22, %c128_23] : memref<4x512xf32, #tpu.memory_space<vmem>>, vector<1x256xf32>
    tpu.vector_store %arg7[%c2_22, %c128_23], %35 {strides = array<i32>} : memref<4x512xf32, #tpu.memory_space<vmem>>, vector<1x256xf32>,
    %c0_24 = arith.constant 0 : index
    %c3 = arith.constant 3 : index
    %c0_25 = arith.constant 0 : index
    %37 = vector.load %arg1[%c0_24, %c3, %c0_25] : memref<1x4x256xf32, #tpu.memory_space<vmem>>, vector<1x1x256xf32>
    %38 = vector.shape_cast %37 : vector<1x1x256xf32> to vector<1x256xf32>
    %c3_26 = arith.constant 3 : index
    %39 = memref.load %arg3[%c3_26] : memref<4xf32, #tpu.memory_space<smem>>
    %40 = vector.broadcast %39 : f32 to vector<1x256xf32>
    %41 = arith.mulf %38, %40 : vector<1x256xf32>
    %c3_27 = arith.constant 3 : index
    %42 = memref.load %arg4[%c3_27] : memref<4xf32, #tpu.memory_space<smem>>
    %43 = vector.broadcast %42 : f32 to vector<1x256xf32>
    %44 = arith.addf %41, %43 : vector<1x256xf32>
    %cst_28 = arith.constant 0.000000e+00 : f32
    %45 = vector.broadcast %cst_28 : f32 to vector<1x256xf32>
    %46 = arith.maximumf %44, %45 : vector<1x256xf32>
    %c3_29 = arith.constant 3 : index
    %c128_30 = arith.constant 128 : index
    %47 = vector.load %arg7[%c3_29, %c128_30] : memref<4x512xf32, #tpu.memory_space<vmem>>, vector<1x256xf32>
    tpu.vector_store %arg7[%c3_29, %c128_30], %46 {strides = array<i32>} : memref<4x512xf32, #tpu.memory_space<vmem>>, vector<1x256xf32>,
    %48 = tpu.iota {dimensions = array<i32: 1>} : vector<4x256xi32>
    %c16_i32 = arith.constant 16 : i32
    %49 = vector.broadcast %c16_i32 : i32 to vector<4x256xi32>
    %50 = arith.remsi %48, %49 : vector<4x256xi32>
    %c0_i32 = arith.constant 0 : i32
    %51 = vector.broadcast %c0_i32 : i32 to vector<4x256xi32>
    %52 = arith.cmpi sgt, %50, %51 : vector<4x256xi32>
    %c15_i32 = arith.constant 15 : i32
    %53 = vector.broadcast %c15_i32 : i32 to vector<4x256xi32>
    %54 = arith.cmpi slt, %50, %53 : vector<4x256xi32>
    %cst_31 = arith.constant 0.000000e+00 : f32
    %55 = vector.broadcast %cst_31 : f32 to vector<4x256xf32>
    %c0_32 = arith.constant 0 : index
    %c111 = arith.constant 111 : index
    %56 = vector.load %arg7[%c0_32, %c111] : memref<4x512xf32, #tpu.memory_space<vmem>>, vector<4x256xf32>
    %cst_33 = arith.constant 0.000000e+00 : f32
    %57 = vector.broadcast %cst_33 : f32 to vector<4x256xf32>
    %58 = arith.select %52, %56, %57 : vector<4x256xi1>, vector<4x256xf32>
    %c0_34 = arith.constant 0 : index
    %c0_35 = arith.constant 0 : index
    %c0_36 = arith.constant 0 : index
    %59 = vector.load %arg2[%c0_34, %c0_35, %c0_36] : memref<9x4x4xf32, #tpu.memory_space<vmem>>, vector<1x4x4xf32>
    %60 = vector.shape_cast %59 : vector<1x4x4xf32> to vector<4x4xf32>
    %cst_37 = arith.constant dense<0.000000e+00> : vector<4x256xf32>
    %61 = tpu.matmul %60, %58, %cst_37 {dimension_numbers = #tpu.dot_dimension_numbers<[1], [0], [0], [1], [0, 0, 1, 1], [], []>} : vector<4x4xf32>, vector<4x256xf32>, vector<4x256xf32> -> vector<4x256xf32>
    %62 = arith.addf %55, %61 : vector<4x256xf32>
    %c0_38 = arith.constant 0 : index
    %c112 = arith.constant 112 : index
    %63 = vector.load %arg7[%c0_38, %c112] : memref<4x512xf32, #tpu.memory_space<vmem>>, vector<4x256xf32>
    %c1_39 = arith.constant 1 : index
    %c0_40 = arith.constant 0 : index
    %c0_41 = arith.constant 0 : index
    %64 = vector.load %arg2[%c1_39, %c0_40, %c0_41] : memref<9x4x4xf32, #tpu.memory_space<vmem>>, vector<1x4x4xf32>
    %65 = vector.shape_cast %64 : vector<1x4x4xf32> to vector<4x4xf32>
    %cst_42 = arith.constant dense<0.000000e+00> : vector<4x256xf32>
    %66 = tpu.matmul %65, %63, %cst_42 {dimension_numbers = #tpu.dot_dimension_numbers<[1], [0], [0], [1], [0, 0, 1, 1], [], []>} : vector<4x4xf32>, vector<4x256xf32>, vector<4x256xf32> -> vector<4x256xf32>
    %67 = arith.addf %62, %66 : vector<4x256xf32>
    %c0_43 = arith.constant 0 : index
    %c113 = arith.constant 113 : index
    %68 = vector.load %arg7[%c0_43, %c113] : memref<4x512xf32, #tpu.memory_space<vmem>>, vector<4x256xf32>
    %cst_44 = arith.constant 0.000000e+00 : f32
    %69 = vector.broadcast %cst_44 : f32 to vector<4x256xf32>
    %70 = arith.select %54, %68, %69 : vector<4x256xi1>, vector<4x256xf32>
    %c2_45 = arith.constant 2 : index
    %c0_46 = arith.constant 0 : index
    %c0_47 = arith.constant 0 : index
    %71 = vector.load %arg2[%c2_45, %c0_46, %c0_47] : memref<9x4x4xf32, #tpu.memory_space<vmem>>, vector<1x4x4xf32>
    %72 = vector.shape_cast %71 : vector<1x4x4xf32> to vector<4x4xf32>
    %cst_48 = arith.constant dense<0.000000e+00> : vector<4x256xf32>
    %73 = tpu.matmul %72, %70, %cst_48 {dimension_numbers = #tpu.dot_dimension_numbers<[1], [0], [0], [1], [0, 0, 1, 1], [], []>} : vector<4x4xf32>, vector<4x256xf32>, vector<4x256xf32> -> vector<4x256xf32>
    %74 = arith.addf %67, %73 : vector<4x256xf32>
    %c0_49 = arith.constant 0 : index
    %c127 = arith.constant 127 : index
    %75 = vector.load %arg7[%c0_49, %c127] : memref<4x512xf32, #tpu.memory_space<vmem>>, vector<4x256xf32>
    %cst_50 = arith.constant 0.000000e+00 : f32
    %76 = vector.broadcast %cst_50 : f32 to vector<4x256xf32>
    %77 = arith.select %52, %75, %76 : vector<4x256xi1>, vector<4x256xf32>
    %c3_51 = arith.constant 3 : index
    %c0_52 = arith.constant 0 : index
    %c0_53 = arith.constant 0 : index
    %78 = vector.load %arg2[%c3_51, %c0_52, %c0_53] : memref<9x4x4xf32, #tpu.memory_space<vmem>>, vector<1x4x4xf32>
    %79 = vector.shape_cast %78 : vector<1x4x4xf32> to vector<4x4xf32>
    %cst_54 = arith.constant dense<0.000000e+00> : vector<4x256xf32>
    %80 = tpu.matmul %79, %77, %cst_54 {dimension_numbers = #tpu.dot_dimension_numbers<[1], [0], [0], [1], [0, 0, 1, 1], [], []>} : vector<4x4xf32>, vector<4x256xf32>, vector<4x256xf32> -> vector<4x256xf32>
    %81 = arith.addf %74, %80 : vector<4x256xf32>
    %c0_55 = arith.constant 0 : index
    %c128_56 = arith.constant 128 : index
    %82 = vector.load %arg7[%c0_55, %c128_56] : memref<4x512xf32, #tpu.memory_space<vmem>>, vector<4x256xf32>
    %c4 = arith.constant 4 : index
    %c0_57 = arith.constant 0 : index
    %c0_58 = arith.constant 0 : index
    %83 = vector.load %arg2[%c4, %c0_57, %c0_58] : memref<9x4x4xf32, #tpu.memory_space<vmem>>, vector<1x4x4xf32>
    %84 = vector.shape_cast %83 : vector<1x4x4xf32> to vector<4x4xf32>
    %cst_59 = arith.constant dense<0.000000e+00> : vector<4x256xf32>
    %85 = tpu.matmul %84, %82, %cst_59 {dimension_numbers = #tpu.dot_dimension_numbers<[1], [0], [0], [1], [0, 0, 1, 1], [], []>} : vector<4x4xf32>, vector<4x256xf32>, vector<4x256xf32> -> vector<4x256xf32>
    %86 = arith.addf %81, %85 : vector<4x256xf32>
    %c0_60 = arith.constant 0 : index
    %c129 = arith.constant 129 : index
    %87 = vector.load %arg7[%c0_60, %c129] : memref<4x512xf32, #tpu.memory_space<vmem>>, vector<4x256xf32>
    %cst_61 = arith.constant 0.000000e+00 : f32
    %88 = vector.broadcast %cst_61 : f32 to vector<4x256xf32>
    %89 = arith.select %54, %87, %88 : vector<4x256xi1>, vector<4x256xf32>
    %c5 = arith.constant 5 : index
    %c0_62 = arith.constant 0 : index
    %c0_63 = arith.constant 0 : index
    %90 = vector.load %arg2[%c5, %c0_62, %c0_63] : memref<9x4x4xf32, #tpu.memory_space<vmem>>, vector<1x4x4xf32>
    %91 = vector.shape_cast %90 : vector<1x4x4xf32> to vector<4x4xf32>
    %cst_64 = arith.constant dense<0.000000e+00> : vector<4x256xf32>
    %92 = tpu.matmul %91, %89, %cst_64 {dimension_numbers = #tpu.dot_dimension_numbers<[1], [0], [0], [1], [0, 0, 1, 1], [], []>} : vector<4x4xf32>, vector<4x256xf32>, vector<4x256xf32> -> vector<4x256xf32>
    %93 = arith.addf %86, %92 : vector<4x256xf32>
    %c0_65 = arith.constant 0 : index
    %c143 = arith.constant 143 : index
    %94 = vector.load %arg7[%c0_65, %c143] : memref<4x512xf32, #tpu.memory_space<vmem>>, vector<4x256xf32>
    %cst_66 = arith.constant 0.000000e+00 : f32
    %95 = vector.broadcast %cst_66 : f32 to vector<4x256xf32>
    %96 = arith.select %52, %94, %95 : vector<4x256xi1>, vector<4x256xf32>
    %c6 = arith.constant 6 : index
    %c0_67 = arith.constant 0 : index
    %c0_68 = arith.constant 0 : index
    %97 = vector.load %arg2[%c6, %c0_67, %c0_68] : memref<9x4x4xf32, #tpu.memory_space<vmem>>, vector<1x4x4xf32>
    %98 = vector.shape_cast %97 : vector<1x4x4xf32> to vector<4x4xf32>
    %cst_69 = arith.constant dense<0.000000e+00> : vector<4x256xf32>
    %99 = tpu.matmul %98, %96, %cst_69 {dimension_numbers = #tpu.dot_dimension_numbers<[1], [0], [0], [1], [0, 0, 1, 1], [], []>} : vector<4x4xf32>, vector<4x256xf32>, vector<4x256xf32> -> vector<4x256xf32>
    %100 = arith.addf %93, %99 : vector<4x256xf32>
    %c0_70 = arith.constant 0 : index
    %c144 = arith.constant 144 : index
    %101 = vector.load %arg7[%c0_70, %c144] : memref<4x512xf32, #tpu.memory_space<vmem>>, vector<4x256xf32>
    %c7 = arith.constant 7 : index
    %c0_71 = arith.constant 0 : index
    %c0_72 = arith.constant 0 : index
    %102 = vector.load %arg2[%c7, %c0_71, %c0_72] : memref<9x4x4xf32, #tpu.memory_space<vmem>>, vector<1x4x4xf32>
    %103 = vector.shape_cast %102 : vector<1x4x4xf32> to vector<4x4xf32>
    %cst_73 = arith.constant dense<0.000000e+00> : vector<4x256xf32>
    %104 = tpu.matmul %103, %101, %cst_73 {dimension_numbers = #tpu.dot_dimension_numbers<[1], [0], [0], [1], [0, 0, 1, 1], [], []>} : vector<4x4xf32>, vector<4x256xf32>, vector<4x256xf32> -> vector<4x256xf32>
    %105 = arith.addf %100, %104 : vector<4x256xf32>
    %c0_74 = arith.constant 0 : index
    %c145 = arith.constant 145 : index
    %106 = vector.load %arg7[%c0_74, %c145] : memref<4x512xf32, #tpu.memory_space<vmem>>, vector<4x256xf32>
    %cst_75 = arith.constant 0.000000e+00 : f32
    %107 = vector.broadcast %cst_75 : f32 to vector<4x256xf32>
    %108 = arith.select %54, %106, %107 : vector<4x256xi1>, vector<4x256xf32>
    %c8 = arith.constant 8 : index
    %c0_76 = arith.constant 0 : index
    %c0_77 = arith.constant 0 : index
    %109 = vector.load %arg2[%c8, %c0_76, %c0_77] : memref<9x4x4xf32, #tpu.memory_space<vmem>>, vector<1x4x4xf32>
    %110 = vector.shape_cast %109 : vector<1x4x4xf32> to vector<4x4xf32>
    %cst_78 = arith.constant dense<0.000000e+00> : vector<4x256xf32>
    %111 = tpu.matmul %110, %108, %cst_78 {dimension_numbers = #tpu.dot_dimension_numbers<[1], [0], [0], [1], [0, 0, 1, 1], [], []>} : vector<4x4xf32>, vector<4x256xf32>, vector<4x256xf32> -> vector<4x256xf32>
    %112 = arith.addf %105, %111 : vector<4x256xf32>
    %c0_79 = arith.constant 0 : index
    %c0_80 = arith.constant 0 : index
    %c0_81 = arith.constant 0 : index
    %113 = vector.load %arg5[%c0_79, %c0_80, %c0_81] : memref<1x4x256xf32, #tpu.memory_space<vmem>>, vector<1x4x256xf32>
    %114 = vector.shape_cast %113 : vector<1x4x256xf32> to vector<4x256xf32>
    %115 = arith.addf %112, %114 : vector<4x256xf32>
    %c0_82 = arith.constant 0 : index
    %c0_83 = arith.constant 0 : index
    %c0_84 = arith.constant 0 : index
    %116 = vector.load %arg6[%c0_82, %c0_83, %c0_84] : memref<1x4x256xf32, #tpu.memory_space<vmem>>, vector<1x4x256xf32>
    %117 = vector.shape_cast %116 : vector<1x4x256xf32> to vector<4x256xf32>
    %118 = vector.shape_cast %115 : vector<4x256xf32> to vector<1x4x256xf32>
    tpu.vector_store %arg6[%c0_82, %c0_83, %c0_84], %118 {strides = array<i32>} : memref<1x4x256xf32, #tpu.memory_space<vmem>>, vector<1x4x256xf32>,
    return
  }
  func.func @transform_0(%arg0: i32) -> (i32, i32, i32) {
    %c0_i32 = arith.constant 0 : i32
    %c0_i32_0 = arith.constant 0 : i32
    %c0_i32_1 = arith.constant 0 : i32
    return %arg0, %c0_i32, %c0_i32_0 : i32, i32, i32
  }
  func.func @transform_1(%arg0: i32) -> (i32, i32, i32) {
    %c0_i32 = arith.constant 0 : i32
    %c0_i32_0 = arith.constant 0 : i32
    %c0_i32_1 = arith.constant 0 : i32
    %c0_i32_2 = arith.constant 0 : i32
    return %c0_i32, %c0_i32_0, %c0_i32_1 : i32, i32, i32
  }
  func.func @transform_2(%arg0: i32) -> i32 {
    %c0_i32 = arith.constant 0 : i32
    %c0_i32_0 = arith.constant 0 : i32
    return %c0_i32 : i32
  }
  func.func @transform_3(%arg0: i32) -> i32 {
    %c0_i32 = arith.constant 0 : i32
    %c0_i32_0 = arith.constant 0 : i32
    return %c0_i32 : i32
  }
  func.func @transform_4(%arg0: i32) -> (i32, i32, i32) {
    %c0_i32 = arith.constant 0 : i32
    %c0_i32_0 = arith.constant 0 : i32
    %c0_i32_1 = arith.constant 0 : i32
    return %arg0, %c0_i32, %c0_i32_0 : i32, i32, i32
  }
  func.func @transform_5(%arg0: i32) -> (i32, i32, i32) {
    %c0_i32 = arith.constant 0 : i32
    %c0_i32_0 = arith.constant 0 : i32
    %c0_i32_1 = arith.constant 0 : i32
    return %arg0, %c0_i32, %c0_i32_0 : i32, i32, i32
  }
}

module attributes {stable_mosaic.version = 11 : i64} {
  func.func @_conv_stats_kernel(%arg0: i32, %arg1: memref<1x4x256xf32, #tpu.memory_space<vmem>>, %arg2: memref<9x4x4xf32, #tpu.memory_space<vmem>>, %arg3: memref<4xf32, #tpu.memory_space<smem>>, %arg4: memref<4xf32, #tpu.memory_space<smem>>, %arg5: memref<1x4x256xf32, #tpu.memory_space<vmem>>, %arg6: memref<1x4x1xf32, #tpu.memory_space<vmem>>, %arg7: memref<1x4x1xf32, #tpu.memory_space<vmem>>, %arg8: memref<4x512xf32, #tpu.memory_space<vmem>>) attributes {dimension_semantics = [#tpu.dimension_semantics<parallel>], iteration_bounds = array<i64: 2>, scalar_prefetch = 0 : i64, scratch_operands = 1 : i64, tpu.core_type = #tpu.core_type<tc>, window_params = [{transform_indices = @transform_0, window_bounds = array<i64: 1, 4, 256>}, {pipeline_mode = #tpu.pipeline_mode<synchronous>, transform_indices = @transform_1, window_bounds = array<i64: 9, 4, 4>}, {transform_indices = @transform_2, window_bounds = array<i64: 4>}, {transform_indices = @transform_3, window_bounds = array<i64: 4>}, {transform_indices = @transform_4, window_bounds = array<i64: 1, 4, 256>}, {transform_indices = @transform_5, window_bounds = array<i64: 1, 4, 1>}, {transform_indices = @transform_6, window_bounds = array<i64: 1, 4, 1>}]} {
    %cst = arith.constant 0.000000e+00 : f32
    %0 = vector.broadcast %cst : f32 to vector<4x128xf32>
    %c0 = arith.constant 0 : index
    %c0_0 = arith.constant 0 : index
    %1 = vector.load %arg8[%c0, %c0_0] : memref<4x512xf32, #tpu.memory_space<vmem>>, vector<4x128xf32>
    tpu.vector_store %arg8[%c0, %c0_0], %0 {strides = array<i32>} : memref<4x512xf32, #tpu.memory_space<vmem>>, vector<4x128xf32>,
    %cst_1 = arith.constant 0.000000e+00 : f32
    %2 = vector.broadcast %cst_1 : f32 to vector<4x128xf32>
    %c0_2 = arith.constant 0 : index
    %c384 = arith.constant 384 : index
    %3 = vector.load %arg8[%c0_2, %c384] : memref<4x512xf32, #tpu.memory_space<vmem>>, vector<4x128xf32>
    tpu.vector_store %arg8[%c0_2, %c384], %2 {strides = array<i32>} : memref<4x512xf32, #tpu.memory_space<vmem>>, vector<4x128xf32>,
    %c0_3 = arith.constant 0 : index
    %c0_4 = arith.constant 0 : index
    %c0_5 = arith.constant 0 : index
    %4 = vector.load %arg1[%c0_3, %c0_4, %c0_5] : memref<1x4x256xf32, #tpu.memory_space<vmem>>, vector<1x1x256xf32>
    %5 = vector.shape_cast %4 : vector<1x1x256xf32> to vector<1x256xf32>
    %c0_6 = arith.constant 0 : index
    %6 = memref.load %arg3[%c0_6] : memref<4xf32, #tpu.memory_space<smem>>
    %7 = vector.broadcast %6 : f32 to vector<1x256xf32>
    %8 = arith.mulf %5, %7 : vector<1x256xf32>
    %c0_7 = arith.constant 0 : index
    %9 = memref.load %arg4[%c0_7] : memref<4xf32, #tpu.memory_space<smem>>
    %10 = vector.broadcast %9 : f32 to vector<1x256xf32>
    %11 = arith.addf %8, %10 : vector<1x256xf32>
    %cst_8 = arith.constant 0.000000e+00 : f32
    %12 = vector.broadcast %cst_8 : f32 to vector<1x256xf32>
    %13 = arith.maximumf %11, %12 : vector<1x256xf32>
    %c0_9 = arith.constant 0 : index
    %c128 = arith.constant 128 : index
    %14 = vector.load %arg8[%c0_9, %c128] : memref<4x512xf32, #tpu.memory_space<vmem>>, vector<1x256xf32>
    tpu.vector_store %arg8[%c0_9, %c128], %13 {strides = array<i32>} : memref<4x512xf32, #tpu.memory_space<vmem>>, vector<1x256xf32>,
    %c0_10 = arith.constant 0 : index
    %c1 = arith.constant 1 : index
    %c0_11 = arith.constant 0 : index
    %15 = vector.load %arg1[%c0_10, %c1, %c0_11] : memref<1x4x256xf32, #tpu.memory_space<vmem>>, vector<1x1x256xf32>
    %16 = vector.shape_cast %15 : vector<1x1x256xf32> to vector<1x256xf32>
    %c1_12 = arith.constant 1 : index
    %17 = memref.load %arg3[%c1_12] : memref<4xf32, #tpu.memory_space<smem>>
    %18 = vector.broadcast %17 : f32 to vector<1x256xf32>
    %19 = arith.mulf %16, %18 : vector<1x256xf32>
    %c1_13 = arith.constant 1 : index
    %20 = memref.load %arg4[%c1_13] : memref<4xf32, #tpu.memory_space<smem>>
    %21 = vector.broadcast %20 : f32 to vector<1x256xf32>
    %22 = arith.addf %19, %21 : vector<1x256xf32>
    %cst_14 = arith.constant 0.000000e+00 : f32
    %23 = vector.broadcast %cst_14 : f32 to vector<1x256xf32>
    %24 = arith.maximumf %22, %23 : vector<1x256xf32>
    %c1_15 = arith.constant 1 : index
    %c128_16 = arith.constant 128 : index
    %25 = vector.load %arg8[%c1_15, %c128_16] : memref<4x512xf32, #tpu.memory_space<vmem>>, vector<1x256xf32>
    tpu.vector_store %arg8[%c1_15, %c128_16], %24 {strides = array<i32>} : memref<4x512xf32, #tpu.memory_space<vmem>>, vector<1x256xf32>,
    %c0_17 = arith.constant 0 : index
    %c2 = arith.constant 2 : index
    %c0_18 = arith.constant 0 : index
    %26 = vector.load %arg1[%c0_17, %c2, %c0_18] : memref<1x4x256xf32, #tpu.memory_space<vmem>>, vector<1x1x256xf32>
    %27 = vector.shape_cast %26 : vector<1x1x256xf32> to vector<1x256xf32>
    %c2_19 = arith.constant 2 : index
    %28 = memref.load %arg3[%c2_19] : memref<4xf32, #tpu.memory_space<smem>>
    %29 = vector.broadcast %28 : f32 to vector<1x256xf32>
    %30 = arith.mulf %27, %29 : vector<1x256xf32>
    %c2_20 = arith.constant 2 : index
    %31 = memref.load %arg4[%c2_20] : memref<4xf32, #tpu.memory_space<smem>>
    %32 = vector.broadcast %31 : f32 to vector<1x256xf32>
    %33 = arith.addf %30, %32 : vector<1x256xf32>
    %cst_21 = arith.constant 0.000000e+00 : f32
    %34 = vector.broadcast %cst_21 : f32 to vector<1x256xf32>
    %35 = arith.maximumf %33, %34 : vector<1x256xf32>
    %c2_22 = arith.constant 2 : index
    %c128_23 = arith.constant 128 : index
    %36 = vector.load %arg8[%c2_22, %c128_23] : memref<4x512xf32, #tpu.memory_space<vmem>>, vector<1x256xf32>
    tpu.vector_store %arg8[%c2_22, %c128_23], %35 {strides = array<i32>} : memref<4x512xf32, #tpu.memory_space<vmem>>, vector<1x256xf32>,
    %c0_24 = arith.constant 0 : index
    %c3 = arith.constant 3 : index
    %c0_25 = arith.constant 0 : index
    %37 = vector.load %arg1[%c0_24, %c3, %c0_25] : memref<1x4x256xf32, #tpu.memory_space<vmem>>, vector<1x1x256xf32>
    %38 = vector.shape_cast %37 : vector<1x1x256xf32> to vector<1x256xf32>
    %c3_26 = arith.constant 3 : index
    %39 = memref.load %arg3[%c3_26] : memref<4xf32, #tpu.memory_space<smem>>
    %40 = vector.broadcast %39 : f32 to vector<1x256xf32>
    %41 = arith.mulf %38, %40 : vector<1x256xf32>
    %c3_27 = arith.constant 3 : index
    %42 = memref.load %arg4[%c3_27] : memref<4xf32, #tpu.memory_space<smem>>
    %43 = vector.broadcast %42 : f32 to vector<1x256xf32>
    %44 = arith.addf %41, %43 : vector<1x256xf32>
    %cst_28 = arith.constant 0.000000e+00 : f32
    %45 = vector.broadcast %cst_28 : f32 to vector<1x256xf32>
    %46 = arith.maximumf %44, %45 : vector<1x256xf32>
    %c3_29 = arith.constant 3 : index
    %c128_30 = arith.constant 128 : index
    %47 = vector.load %arg8[%c3_29, %c128_30] : memref<4x512xf32, #tpu.memory_space<vmem>>, vector<1x256xf32>
    tpu.vector_store %arg8[%c3_29, %c128_30], %46 {strides = array<i32>} : memref<4x512xf32, #tpu.memory_space<vmem>>, vector<1x256xf32>,
    %48 = tpu.iota {dimensions = array<i32: 1>} : vector<4x256xi32>
    %c16_i32 = arith.constant 16 : i32
    %49 = vector.broadcast %c16_i32 : i32 to vector<4x256xi32>
    %50 = arith.remsi %48, %49 : vector<4x256xi32>
    %c0_i32 = arith.constant 0 : i32
    %51 = vector.broadcast %c0_i32 : i32 to vector<4x256xi32>
    %52 = arith.cmpi sgt, %50, %51 : vector<4x256xi32>
    %c15_i32 = arith.constant 15 : i32
    %53 = vector.broadcast %c15_i32 : i32 to vector<4x256xi32>
    %54 = arith.cmpi slt, %50, %53 : vector<4x256xi32>
    %cst_31 = arith.constant 0.000000e+00 : f32
    %55 = vector.broadcast %cst_31 : f32 to vector<4x256xf32>
    %c0_32 = arith.constant 0 : index
    %c111 = arith.constant 111 : index
    %56 = vector.load %arg8[%c0_32, %c111] : memref<4x512xf32, #tpu.memory_space<vmem>>, vector<4x256xf32>
    %cst_33 = arith.constant 0.000000e+00 : f32
    %57 = vector.broadcast %cst_33 : f32 to vector<4x256xf32>
    %58 = arith.select %52, %56, %57 : vector<4x256xi1>, vector<4x256xf32>
    %c0_34 = arith.constant 0 : index
    %c0_35 = arith.constant 0 : index
    %c0_36 = arith.constant 0 : index
    %59 = vector.load %arg2[%c0_34, %c0_35, %c0_36] : memref<9x4x4xf32, #tpu.memory_space<vmem>>, vector<1x4x4xf32>
    %60 = vector.shape_cast %59 : vector<1x4x4xf32> to vector<4x4xf32>
    %cst_37 = arith.constant dense<0.000000e+00> : vector<4x256xf32>
    %61 = tpu.matmul %60, %58, %cst_37 {dimension_numbers = #tpu.dot_dimension_numbers<[1], [0], [0], [1], [0, 0, 1, 1], [], []>} : vector<4x4xf32>, vector<4x256xf32>, vector<4x256xf32> -> vector<4x256xf32>
    %62 = arith.addf %55, %61 : vector<4x256xf32>
    %c0_38 = arith.constant 0 : index
    %c112 = arith.constant 112 : index
    %63 = vector.load %arg8[%c0_38, %c112] : memref<4x512xf32, #tpu.memory_space<vmem>>, vector<4x256xf32>
    %c1_39 = arith.constant 1 : index
    %c0_40 = arith.constant 0 : index
    %c0_41 = arith.constant 0 : index
    %64 = vector.load %arg2[%c1_39, %c0_40, %c0_41] : memref<9x4x4xf32, #tpu.memory_space<vmem>>, vector<1x4x4xf32>
    %65 = vector.shape_cast %64 : vector<1x4x4xf32> to vector<4x4xf32>
    %cst_42 = arith.constant dense<0.000000e+00> : vector<4x256xf32>
    %66 = tpu.matmul %65, %63, %cst_42 {dimension_numbers = #tpu.dot_dimension_numbers<[1], [0], [0], [1], [0, 0, 1, 1], [], []>} : vector<4x4xf32>, vector<4x256xf32>, vector<4x256xf32> -> vector<4x256xf32>
    %67 = arith.addf %62, %66 : vector<4x256xf32>
    %c0_43 = arith.constant 0 : index
    %c113 = arith.constant 113 : index
    %68 = vector.load %arg8[%c0_43, %c113] : memref<4x512xf32, #tpu.memory_space<vmem>>, vector<4x256xf32>
    %cst_44 = arith.constant 0.000000e+00 : f32
    %69 = vector.broadcast %cst_44 : f32 to vector<4x256xf32>
    %70 = arith.select %54, %68, %69 : vector<4x256xi1>, vector<4x256xf32>
    %c2_45 = arith.constant 2 : index
    %c0_46 = arith.constant 0 : index
    %c0_47 = arith.constant 0 : index
    %71 = vector.load %arg2[%c2_45, %c0_46, %c0_47] : memref<9x4x4xf32, #tpu.memory_space<vmem>>, vector<1x4x4xf32>
    %72 = vector.shape_cast %71 : vector<1x4x4xf32> to vector<4x4xf32>
    %cst_48 = arith.constant dense<0.000000e+00> : vector<4x256xf32>
    %73 = tpu.matmul %72, %70, %cst_48 {dimension_numbers = #tpu.dot_dimension_numbers<[1], [0], [0], [1], [0, 0, 1, 1], [], []>} : vector<4x4xf32>, vector<4x256xf32>, vector<4x256xf32> -> vector<4x256xf32>
    %74 = arith.addf %67, %73 : vector<4x256xf32>
    %c0_49 = arith.constant 0 : index
    %c127 = arith.constant 127 : index
    %75 = vector.load %arg8[%c0_49, %c127] : memref<4x512xf32, #tpu.memory_space<vmem>>, vector<4x256xf32>
    %cst_50 = arith.constant 0.000000e+00 : f32
    %76 = vector.broadcast %cst_50 : f32 to vector<4x256xf32>
    %77 = arith.select %52, %75, %76 : vector<4x256xi1>, vector<4x256xf32>
    %c3_51 = arith.constant 3 : index
    %c0_52 = arith.constant 0 : index
    %c0_53 = arith.constant 0 : index
    %78 = vector.load %arg2[%c3_51, %c0_52, %c0_53] : memref<9x4x4xf32, #tpu.memory_space<vmem>>, vector<1x4x4xf32>
    %79 = vector.shape_cast %78 : vector<1x4x4xf32> to vector<4x4xf32>
    %cst_54 = arith.constant dense<0.000000e+00> : vector<4x256xf32>
    %80 = tpu.matmul %79, %77, %cst_54 {dimension_numbers = #tpu.dot_dimension_numbers<[1], [0], [0], [1], [0, 0, 1, 1], [], []>} : vector<4x4xf32>, vector<4x256xf32>, vector<4x256xf32> -> vector<4x256xf32>
    %81 = arith.addf %74, %80 : vector<4x256xf32>
    %c0_55 = arith.constant 0 : index
    %c128_56 = arith.constant 128 : index
    %82 = vector.load %arg8[%c0_55, %c128_56] : memref<4x512xf32, #tpu.memory_space<vmem>>, vector<4x256xf32>
    %c4 = arith.constant 4 : index
    %c0_57 = arith.constant 0 : index
    %c0_58 = arith.constant 0 : index
    %83 = vector.load %arg2[%c4, %c0_57, %c0_58] : memref<9x4x4xf32, #tpu.memory_space<vmem>>, vector<1x4x4xf32>
    %84 = vector.shape_cast %83 : vector<1x4x4xf32> to vector<4x4xf32>
    %cst_59 = arith.constant dense<0.000000e+00> : vector<4x256xf32>
    %85 = tpu.matmul %84, %82, %cst_59 {dimension_numbers = #tpu.dot_dimension_numbers<[1], [0], [0], [1], [0, 0, 1, 1], [], []>} : vector<4x4xf32>, vector<4x256xf32>, vector<4x256xf32> -> vector<4x256xf32>
    %86 = arith.addf %81, %85 : vector<4x256xf32>
    %c0_60 = arith.constant 0 : index
    %c129 = arith.constant 129 : index
    %87 = vector.load %arg8[%c0_60, %c129] : memref<4x512xf32, #tpu.memory_space<vmem>>, vector<4x256xf32>
    %cst_61 = arith.constant 0.000000e+00 : f32
    %88 = vector.broadcast %cst_61 : f32 to vector<4x256xf32>
    %89 = arith.select %54, %87, %88 : vector<4x256xi1>, vector<4x256xf32>
    %c5 = arith.constant 5 : index
    %c0_62 = arith.constant 0 : index
    %c0_63 = arith.constant 0 : index
    %90 = vector.load %arg2[%c5, %c0_62, %c0_63] : memref<9x4x4xf32, #tpu.memory_space<vmem>>, vector<1x4x4xf32>
    %91 = vector.shape_cast %90 : vector<1x4x4xf32> to vector<4x4xf32>
    %cst_64 = arith.constant dense<0.000000e+00> : vector<4x256xf32>
    %92 = tpu.matmul %91, %89, %cst_64 {dimension_numbers = #tpu.dot_dimension_numbers<[1], [0], [0], [1], [0, 0, 1, 1], [], []>} : vector<4x4xf32>, vector<4x256xf32>, vector<4x256xf32> -> vector<4x256xf32>
    %93 = arith.addf %86, %92 : vector<4x256xf32>
    %c0_65 = arith.constant 0 : index
    %c143 = arith.constant 143 : index
    %94 = vector.load %arg8[%c0_65, %c143] : memref<4x512xf32, #tpu.memory_space<vmem>>, vector<4x256xf32>
    %cst_66 = arith.constant 0.000000e+00 : f32
    %95 = vector.broadcast %cst_66 : f32 to vector<4x256xf32>
    %96 = arith.select %52, %94, %95 : vector<4x256xi1>, vector<4x256xf32>
    %c6 = arith.constant 6 : index
    %c0_67 = arith.constant 0 : index
    %c0_68 = arith.constant 0 : index
    %97 = vector.load %arg2[%c6, %c0_67, %c0_68] : memref<9x4x4xf32, #tpu.memory_space<vmem>>, vector<1x4x4xf32>
    %98 = vector.shape_cast %97 : vector<1x4x4xf32> to vector<4x4xf32>
    %cst_69 = arith.constant dense<0.000000e+00> : vector<4x256xf32>
    %99 = tpu.matmul %98, %96, %cst_69 {dimension_numbers = #tpu.dot_dimension_numbers<[1], [0], [0], [1], [0, 0, 1, 1], [], []>} : vector<4x4xf32>, vector<4x256xf32>, vector<4x256xf32> -> vector<4x256xf32>
    %100 = arith.addf %93, %99 : vector<4x256xf32>
    %c0_70 = arith.constant 0 : index
    %c144 = arith.constant 144 : index
    %101 = vector.load %arg8[%c0_70, %c144] : memref<4x512xf32, #tpu.memory_space<vmem>>, vector<4x256xf32>
    %c7 = arith.constant 7 : index
    %c0_71 = arith.constant 0 : index
    %c0_72 = arith.constant 0 : index
    %102 = vector.load %arg2[%c7, %c0_71, %c0_72] : memref<9x4x4xf32, #tpu.memory_space<vmem>>, vector<1x4x4xf32>
    %103 = vector.shape_cast %102 : vector<1x4x4xf32> to vector<4x4xf32>
    %cst_73 = arith.constant dense<0.000000e+00> : vector<4x256xf32>
    %104 = tpu.matmul %103, %101, %cst_73 {dimension_numbers = #tpu.dot_dimension_numbers<[1], [0], [0], [1], [0, 0, 1, 1], [], []>} : vector<4x4xf32>, vector<4x256xf32>, vector<4x256xf32> -> vector<4x256xf32>
    %105 = arith.addf %100, %104 : vector<4x256xf32>
    %c0_74 = arith.constant 0 : index
    %c145 = arith.constant 145 : index
    %106 = vector.load %arg8[%c0_74, %c145] : memref<4x512xf32, #tpu.memory_space<vmem>>, vector<4x256xf32>
    %cst_75 = arith.constant 0.000000e+00 : f32
    %107 = vector.broadcast %cst_75 : f32 to vector<4x256xf32>
    %108 = arith.select %54, %106, %107 : vector<4x256xi1>, vector<4x256xf32>
    %c8 = arith.constant 8 : index
    %c0_76 = arith.constant 0 : index
    %c0_77 = arith.constant 0 : index
    %109 = vector.load %arg2[%c8, %c0_76, %c0_77] : memref<9x4x4xf32, #tpu.memory_space<vmem>>, vector<1x4x4xf32>
    %110 = vector.shape_cast %109 : vector<1x4x4xf32> to vector<4x4xf32>
    %cst_78 = arith.constant dense<0.000000e+00> : vector<4x256xf32>
    %111 = tpu.matmul %110, %108, %cst_78 {dimension_numbers = #tpu.dot_dimension_numbers<[1], [0], [0], [1], [0, 0, 1, 1], [], []>} : vector<4x4xf32>, vector<4x256xf32>, vector<4x256xf32> -> vector<4x256xf32>
    %112 = arith.addf %105, %111 : vector<4x256xf32>
    %c0_79 = arith.constant 0 : index
    %c0_80 = arith.constant 0 : index
    %c0_81 = arith.constant 0 : index
    %113 = vector.load %arg5[%c0_79, %c0_80, %c0_81] : memref<1x4x256xf32, #tpu.memory_space<vmem>>, vector<1x4x256xf32>
    %114 = vector.shape_cast %113 : vector<1x4x256xf32> to vector<4x256xf32>
    %115 = vector.shape_cast %112 : vector<4x256xf32> to vector<1x4x256xf32>
    tpu.vector_store %arg5[%c0_79, %c0_80, %c0_81], %115 {strides = array<i32>} : memref<1x4x256xf32, #tpu.memory_space<vmem>>, vector<1x4x256xf32>,
    %cst_82 = arith.constant dense<0.000000e+00> : vector<4xf32>
    %116 = vector.multi_reduction <add>, %112, %cst_82 [1] : vector<4x256xf32> to vector<4xf32>
    %117 = vector.shape_cast %116 : vector<4xf32> to vector<4x1xf32>
    %c0_83 = arith.constant 0 : index
    %c0_84 = arith.constant 0 : index
    %c0_85 = arith.constant 0 : index
    %118 = vector.load %arg6[%c0_83, %c0_84, %c0_85] : memref<1x4x1xf32, #tpu.memory_space<vmem>>, vector<1x4x1xf32>
    %119 = vector.shape_cast %118 : vector<1x4x1xf32> to vector<4x1xf32>
    %120 = vector.shape_cast %117 : vector<4x1xf32> to vector<1x4x1xf32>
    tpu.vector_store %arg6[%c0_83, %c0_84, %c0_85], %120 {strides = array<i32>} : memref<1x4x1xf32, #tpu.memory_space<vmem>>, vector<1x4x1xf32>,
    %121 = arith.mulf %112, %112 : vector<4x256xf32>
    %cst_86 = arith.constant dense<0.000000e+00> : vector<4xf32>
    %122 = vector.multi_reduction <add>, %121, %cst_86 [1] : vector<4x256xf32> to vector<4xf32>
    %123 = vector.shape_cast %122 : vector<4xf32> to vector<4x1xf32>
    %c0_87 = arith.constant 0 : index
    %c0_88 = arith.constant 0 : index
    %c0_89 = arith.constant 0 : index
    %124 = vector.load %arg7[%c0_87, %c0_88, %c0_89] : memref<1x4x1xf32, #tpu.memory_space<vmem>>, vector<1x4x1xf32>
    %125 = vector.shape_cast %124 : vector<1x4x1xf32> to vector<4x1xf32>
    %126 = vector.shape_cast %123 : vector<4x1xf32> to vector<1x4x1xf32>
    tpu.vector_store %arg7[%c0_87, %c0_88, %c0_89], %126 {strides = array<i32>} : memref<1x4x1xf32, #tpu.memory_space<vmem>>, vector<1x4x1xf32>,
    return
  }
  func.func @transform_0(%arg0: i32) -> (i32, i32, i32) {
    %c0_i32 = arith.constant 0 : i32
    %c0_i32_0 = arith.constant 0 : i32
    %c0_i32_1 = arith.constant 0 : i32
    return %arg0, %c0_i32, %c0_i32_0 : i32, i32, i32
  }
  func.func @transform_1(%arg0: i32) -> (i32, i32, i32) {
    %c0_i32 = arith.constant 0 : i32
    %c0_i32_0 = arith.constant 0 : i32
    %c0_i32_1 = arith.constant 0 : i32
    %c0_i32_2 = arith.constant 0 : i32
    return %c0_i32, %c0_i32_0, %c0_i32_1 : i32, i32, i32
  }
  func.func @transform_2(%arg0: i32) -> i32 {
    %c0_i32 = arith.constant 0 : i32
    %c0_i32_0 = arith.constant 0 : i32
    return %c0_i32 : i32
  }
  func.func @transform_3(%arg0: i32) -> i32 {
    %c0_i32 = arith.constant 0 : i32
    %c0_i32_0 = arith.constant 0 : i32
    return %c0_i32 : i32
  }
  func.func @transform_4(%arg0: i32) -> (i32, i32, i32) {
    %c0_i32 = arith.constant 0 : i32
    %c0_i32_0 = arith.constant 0 : i32
    %c0_i32_1 = arith.constant 0 : i32
    return %arg0, %c0_i32, %c0_i32_0 : i32, i32, i32
  }
  func.func @transform_5(%arg0: i32) -> (i32, i32, i32) {
    %c0_i32 = arith.constant 0 : i32
    %c0_i32_0 = arith.constant 0 : i32
    %c0_i32_1 = arith.constant 0 : i32
    return %arg0, %c0_i32, %c0_i32_0 : i32, i32, i32
  }
  func.func @transform_6(%arg0: i32) -> (i32, i32, i32) {
    %c0_i32 = arith.constant 0 : i32
    %c0_i32_0 = arith.constant 0 : i32
    %c0_i32_1 = arith.constant 0 : i32
    return %arg0, %c0_i32, %c0_i32_0 : i32, i32, i32
  }
}

</mosaic_0001>

<llo_original>
// kernel: preact_block_forward.3
$region0: #{preact_block_forward.3}
  #allocation0 [shape = 'u32[]', space=smem, size = 0x4, offset = 0x4, fixed_abs, tag = 'smem constant byte address 0x4 - core index']
  #allocation1 [shape = 'u32[72,128]{1,0:T(1,128)}', space=vmem, size = 0x9000, scoped, tag = 'internal scratch']
  %s0 = inlined_call_operand.vmem [shape: f32[2,4,256], index: 0, kind: input, shape index: {}]
  %s1 = inlined_call_operand.vmem [shape: f32[2,4,1], index: 1, kind: output, shape index: {0}]
  %s2 = inlined_call_operand.vmem [shape: f32[2,4,1], index: 2, kind: output, shape index: {1}]
  %3 = xla_tuple %s1, %s2
  %s4 = sld [smem:[#allocation0]]
  $region45: #{preact_block_forward.3} parent=0
    _
  %s6 = ssub.s32 1, %s4
  %s7 = scalar_select 0, %s6, %s4
  loop: start=0, step=1, limit=4
  $region2: #{preact_block_forward.3} parent=0 // loop_pre_header
    _
  $region3: #{preact_block_forward.3} parent=0 // loop_header
    %s9 = sphi 0, %s13
    %p10 = scmp.ge.s32.totalorder %s9, 4
    %s19 = sphi 0, %s21
    %s22 = sphi 0, %s19
    %s23 = sphi 0, %s22
    %s39 = sphi 0, %s23
    %s45 = sphi 0, %s47
    %s48 = sphi 0, %s45
    %s49 = sphi 0, %s48
    %s65 = sphi 0, %s49
    %s71 = sphi 0, %s73
    %s74 = sphi 0, %s71
    %s75 = sphi 0, %s74
    %s91 = sphi 0, %s75
  $region4: #{preact_block_forward.3} parent=0 // loop_header_branch
    %12 = sbr.rel (%p10) target = $region8
  $region5: #{preact_block_forward.3} parent=0 // loop_body
    %s14 = ssub.s32 %s9, 1
    %s15 = ssub.s32 %s9, 2
    %s16 = sadd.s32 %s9, 1
    %s17 = ssub.s32 %s9, %s16
    %p18 = scmp.eq.s32.totalorder %s17, 0
    %s20 = sadd.s32 %s19, 1
    %s21 = scalar_select %p18, %s19, %s20
    %p24 = pneg %p18
    %p25 = scmp.eq.s32.totalorder %s9, 1
    %p26 = por %p24, %p25
    %p27 = scmp.ne.s32.totalorder %s19, %s22
    %p28 = scmp.eq.s32.totalorder %s9, 0
    %p29 = por %p27, %p28
    %p30 = scmp.ne.s32.totalorder %s19, %s22
    %p31 = scmp.eq.s32.totalorder %s14, 1
    %p32 = por %p30, %p31
    %p33 = scmp.ne.s32.totalorder %s22, %s23
    %p34 = scmp.eq.s32.totalorder %s14, 0
    %p35 = por %p33, %p34
    %p36 = scmp.ne.s32.totalorder %s22, %s23
    %p37 = scmp.eq.s32.totalorder %s15, 1
    %p38 = por %p36, %p37
    %p40 = scmp.ne.s32.totalorder %s23, %s39
    %p41 = scmp.eq.s32.totalorder %s15, 0
    %p42 = por %p40, %p41
    %s43 = ssub.s32 %s9, %s16
    %p44 = scmp.eq.s32.totalorder %s43, 0
    %s46 = sadd.s32 %s45, 1
    %s47 = scalar_select %p44, %s45, %s46
    %p50 = pneg %p44
    %p51 = scmp.eq.s32.totalorder %s9, 1
    %p52 = por %p50, %p51
    %p53 = scmp.ne.s32.totalorder %s45, %s48
    %p54 = scmp.eq.s32.totalorder %s9, 0
    %p55 = por %p53, %p54
    %p56 = scmp.ne.s32.totalorder %s45, %s48
    %p57 = scmp.eq.s32.totalorder %s14, 1
    %p58 = por %p56, %p57
    %p59 = scmp.ne.s32.totalorder %s48, %s49
    %p60 = scmp.eq.s32.totalorder %s14, 0
    %p61 = por %p59, %p60
    %p62 = scmp.ne.s32.totalorder %s48, %s49
    %p63 = scmp.eq.s32.totalorder %s15, 1
    %p64 = por %p62, %p63
    %p66 = scmp.ne.s32.totalorder %s49, %s65
    %p67 = scmp.eq.s32.totalorder %s15, 0
    %p68 = por %p66, %p67
    %s69 = ssub.s32 %s9, %s16
    %p70 = scmp.eq.s32.totalorder %s69, 0
    %s72 = sadd.s32 %s71, 1
    %s73 = scalar_select %p70, %s71, %s72
    %p76 = pneg %p70
    %p77 = scmp.eq.s32.totalorder %s9, 1
    %p78 = por %p76, %p77
    %p79 = scmp.ne.s32.totalorder %s71, %s74
    %p80 = scmp.eq.s32.totalorder %s9, 0
    %p81 = por %p79, %p80
    %p82 = scmp.ne.s32.totalorder %s71, %s74
    %p83 = scmp.eq.s32.totalorder %s14, 1
    %p84 = por %p82, %p83
    %p85 = scmp.ne.s32.totalorder %s74, %s75
    %p86 = scmp.eq.s32.totalorder %s14, 0
    %p87 = por %p85, %p86
    %p88 = scmp.ne.s32.totalorder %s74, %s75
    %p89 = scmp.eq.s32.totalorder %s15, 1
    %p90 = por %p88, %p89
    %p92 = scmp.ne.s32.totalorder %s75, %s91
    %p93 = scmp.eq.s32.totalorder %s15, 0
    %p94 = por %p92, %p93
    %p95 = scmp.le.s32.totalorder 1, %s9
    %p96 = scmp.lt.s32.totalorder %s9, 3
    %p97 = pnand %p95, %p96
    %p98 = pneg %p97
    // Predicated region
    $region9: #{preact_block_forward.3} parent=5 // pred_check
      _
    $region10: #{preact_block_forward.3} parent=5 // pred_check_branch
      %100 = sbr.rel (%p97) target = $region12
    $region11: #{preact_block_forward.3} parent=5 // pred_region
      %s101 = ssub.s32 %s9, 1
    $region12: #{preact_block_forward.3} parent=5 // pred_fallthru
      _
    %p102 = scmp.lt.s32.totalorder %s9, 2
    // Predicated region
    $region13: #{preact_block_forward.3} parent=5 // pred_check
      %p103 = pneg %p102
    $region14: #{preact_block_forward.3} parent=5 // pred_check_branch
      %105 = sbr.rel (%p103) target = $region16
    $region15: #{preact_block_forward.3} parent=5 // pred_region
      // Predicated region
      $region17: #{preact_block_forward.3} parent=15 // pred_check
        %p106 = pneg %p29
      $region18: #{preact_block_forward.3} parent=15 // pred_check_branch
        %108 = sbr.rel (%p106) target = $region20
      $region19: #{preact_block_forward.3} parent=15 // pred_region
        %p109 = scmp.lt.s32.totalorder %s9, 1
        %s110 = scalar_select %p109, %s9, 1
        %s111 = smul.addr %s110, 2
        %s112 = smul.addr %s111, 4
        %s113 = scalar_lea.vmem %s0, %s112
      $region20: #{preact_block_forward.3} parent=15 // pred_fallthru
        _
    $region16: #{preact_block_forward.3} parent=5 // pred_fallthru
      _
    %p114 = scmp.le.s32.totalorder 1, %s9
    %p115 = scmp.lt.s32.totalorder %s9, 3
    %p116 = pnand %p114, %p115
    %p117 = pneg %p116
    // Predicated region
    $region21: #{preact_block_forward.3} parent=5 // pred_check
      _
    $region22: #{preact_block_forward.3} parent=5 // pred_check_branch
      %119 = sbr.rel (%p116) target = $region24
    $region23: #{preact_block_forward.3} parent=5 // pred_region
      %s120 = ssub.s32 %s9, 1
      %p121 = scmp.lt.s32.totalorder %s14, 1
      %s122 = scalar_select %p121, %s14, 1
      %s123 = smul.addr %s122, 2
      %s124 = smul.addr %s123, 4
      %s125 = scalar_lea.vmem %s0, %s124
      %p126 = pneg %p35
      %p127 = pneg %p32
      %p128 = pneg %p61
      %p129 = pneg %p58
      %p130 = scmp.lt.s32.totalorder %s14, 1
      %s131 = scalar_select %p130, %s14, 1
      %s132 = smul.addr %s131, 4
      %s133 = scalar_lea.vmem %s1, %s132
      %p134 = pneg %p87
      %p135 = pneg %p84
      %p136 = scmp.lt.s32.totalorder %s14, 1
      %s137 = scalar_select %p136, %s14, 1
      %s138 = smul.addr %s137, 4
      %s139 = scalar_lea.vmem %s2, %s138
      %p140 = scmp.lt.s32.totalorder %s14, 1
      %s141 = scalar_select %p140, %s14, 1
      %s142 = smul.addr %s141, 2
      %s143 = smul.addr %s142, 4
      %s144 = scalar_lea.vmem %s0, %s143
      %p145 = scmp.lt.s32.totalorder %s14, 1
      %s146 = scalar_select %p145, %s14, 1
      %s147 = smul.addr %s146, 4
      %s148 = scalar_lea.vmem %s1, %s147
      %p149 = scmp.lt.s32.totalorder %s14, 1
      %s150 = scalar_select %p149, %s14, 1
      %s151 = smul.addr %s150, 4
      %s152 = scalar_lea.vmem %s2, %s151
      %v153 = vld [vmem:[%s144] sm:$0xff]
      %155 = vst [vmem:[#allocation1] ss:$2 sm:$0xff] %v153
      %v156 = vld.sshfl [vmem:[#allocation1] sm:$0xff pattern:$0x75316420]
      %v157 = vld.sshfl [vmem:[#allocation1 + $0x8] sm:$0xff pattern:$0x75316420]
      %vm160 = vcmask 1043456
      %v161 = vsel %vm160, %v156, 0.0
      %v162 = vsel %vm160, %v157, 0.0
      %v163 = vadd.f32 %v161, %v162
      %164 = vadd.xlane.f32.xlu0 %v163
      %v165 = vpop.xlane.xlu0 %164
      %vm166 = vcmask 3072
      %167 = vst.msk [vmem:[%s148] sm:$0xf] %vm166, %v165
      %v168 = vmul.f32 %v153, %v153
      %170 = vst [vmem:[#allocation1] ss:$2 sm:$0xff] %v168
      %v171 = vld.sshfl [vmem:[#allocation1] sm:$0xff pattern:$0x75316420]
      %v172 = vld.sshfl [vmem:[#allocation1 + $0x8] sm:$0xff pattern:$0x75316420]
      %v175 = vsel %vm160, %v171, 0.0
      %v176 = vsel %vm160, %v172, 0.0
      %v177 = vadd.f32 %v175, %v176
      %178 = vadd.xlane.f32.xlu0 %v177
      %v179 = vpop.xlane.xlu0 %178
      %180 = vst.msk [vmem:[%s152] sm:$0xf] %vm166, %v179
      %p181 = scmp.lt.s32.totalorder %s14, 1
      %s182 = scalar_select %p181, %s14, 1
      %s183 = smul.addr %s182, 4
      %s184 = scalar_lea.vmem %s1, %s183
      %p185 = scmp.lt.s32.totalorder %s14, 1
      %s186 = scalar_select %p185, %s14, 1
      %s187 = smul.addr %s186, 4
      %s188 = scalar_lea.vmem %s2, %s187
      // Predicated region
      $region25: #{preact_block_forward.3} parent=23 // pred_check
        %p189 = pneg %p58
      $region26: #{preact_block_forward.3} parent=23 // pred_check_branch
        %191 = sbr.rel (%p189) target = $region28
      $region27: #{preact_block_forward.3} parent=23 // pred_region
        _
      $region28: #{preact_block_forward.3} parent=23 // pred_fallthru
        _
      // Predicated region
      $region29: #{preact_block_forward.3} parent=23 // pred_check
        %p192 = pneg %p84
      $region30: #{preact_block_forward.3} parent=23 // pred_check_branch
        %194 = sbr.rel (%p192) target = $region32
      $region31: #{preact_block_forward.3} parent=23 // pred_region
        _
      $region32: #{preact_block_forward.3} parent=23 // pred_fallthru
        _
    $region24: #{preact_block_forward.3} parent=5 // pred_fallthru
      _
    %p195 = scmp.le.s32.totalorder 2, %s9
    // Predicated region
    $region33: #{preact_block_forward.3} parent=5 // pred_check
      %p196 = pneg %p195
    $region34: #{preact_block_forward.3} parent=5 // pred_check_branch
      %198 = sbr.rel (%p196) target = $region36
    $region35: #{preact_block_forward.3} parent=5 // pred_region
      %s199 = ssub.s32 %s9, 2
      // Predicated region
      $region37: #{preact_block_forward.3} parent=35 // pred_check
        %p200 = pneg %p64
      $region38: #{preact_block_forward.3} parent=35 // pred_check_branch
        %202 = sbr.rel (%p200) target = $region40
      $region39: #{preact_block_forward.3} parent=35 // pred_region
        %p203 = scmp.lt.s32.totalorder %s15, 1
        %s204 = scalar_select %p203, %s15, 1
        %s205 = smul.addr %s204, 4
        %s206 = scalar_lea.vmem %s1, %s205
      $region40: #{preact_block_forward.3} parent=35 // pred_fallthru
        _
      // Predicated region
      $region41: #{preact_block_forward.3} parent=35 // pred_check
        %p207 = pneg %p90
      $region42: #{preact_block_forward.3} parent=35 // pred_check_branch
        %209 = sbr.rel (%p207) target = $region44
      $region43: #{preact_block_forward.3} parent=35 // pred_region
        %p210 = scmp.lt.s32.totalorder %s15, 1
        %s211 = scalar_select %p210, %s15, 1
        %s212 = smul.addr %s211, 4
        %s213 = scalar_lea.vmem %s2, %s212
      $region44: #{preact_block_forward.3} parent=35 // pred_fallthru
        _
    $region36: #{preact_block_forward.3} parent=5 // pred_fallthru
      _
  $region6: #{preact_block_forward.3} parent=0 // loop_footer
    %s13 = sadd.s32 1, %s9
  $region7: #{preact_block_forward.3} parent=0 // loop_footer_branch
    %8 = sbr.rel target = $region3
  $region8: #{preact_block_forward.3} parent=0 // loop_exit
    _

// kernel: preact_block_forward.5
$region0: #{preact_block_forward.5}
  #allocation0 [shape = 'u32[]', space=smem, size = 0x4, offset = 0x4, fixed_abs, tag = 'smem constant byte address 0x4 - core index']
  #allocation1 [shape = 'u32[72,128]{1,0:T(1,128)}', space=vmem, size = 0x9000, scoped, tag = 'internal scratch']
  #allocation2 [shape = 'f32[4,512]{1,0:T(4,128)}', space=vmem, size = 0x2000, scoped, tag = 'scratch operand']
  %s0 = inlined_call_operand.vmem [shape: f32[2,4,256], index: 0, kind: input, shape index: {}]
  %s1 = inlined_call_operand.vmem [shape: f32[9,4,4], index: 1, kind: input, shape index: {}]
  %s2 = inlined_call_operand.vmem [shape: f32[4], index: 2, kind: input, shape index: {}]
  %s3 = inlined_call_operand.vmem [shape: f32[4], index: 3, kind: input, shape index: {}]
  %s4 = inlined_call_operand.vmem [shape: f32[2,4,256], index: 4, kind: input, shape index: {}]
  %s5 = inlined_call_operand.vmem [shape: f32[2,4,256], index: 5, kind: output, shape index: {}]
  %s6 = sld [smem:[#allocation0]]
  $region61: #{preact_block_forward.5} parent=0
    _
  %s8 = ssub.s32 1, %s6
  %s9 = scalar_select 0, %s8, %s6
  $region1: #{preact_block_forward.5} parent=0
    #allocation3 [shape = 'u8[512]{0}', space=smem, size = 0x200, scoped, tag = 'input window, operand 2, single buffered']
    #allocation4 [shape = 's32[2]{0}', space=sflag, size = 0x8, scoped, tag = 'scoped memory for preact_block_forward.5']
    #allocation5 [shape = 'u8[512]{0}', space=smem, size = 0x200, scoped, tag = 'input window, operand 3, single buffered']
    #allocation6 [shape = 's32[1]{0}', space=sflag, size = 0x4, scoped, tag = 'scoped memory for preact_block_forward.5']
    %10 = vsyncpa [#allocation4], 0
    %11 = vsyncpa [#allocation6], 0
    loop: start=0, step=1, limit=4
    $region2: #{preact_block_forward.5} parent=1 // loop_pre_header
      _
    $region3: #{preact_block_forward.5} parent=1 // loop_header
      %s13 = sphi 0, %s17
      %p14 = scmp.ge.s32.totalorder %s13, 4
      %s23 = sphi 0, %s25
      %s26 = sphi 0, %s23
      %s27 = sphi 0, %s26
      %s43 = sphi 0, %s27
      %s47 = sphi 0, %s47
      %s49 = sphi 0, %s47
      %s50 = sphi 0, %s49
      %s64 = sphi 0, %s50
      %s68 = sphi 0, %s68
      %s70 = sphi 0, %s68
      %s71 = sphi 0, %s70
      %s85 = sphi 0, %s71
      %s89 = sphi 0, %s89
      %s91 = sphi 0, %s89
      %s92 = sphi 0, %s91
      %s106 = sphi 0, %s92
      %s112 = sphi 0, %s114
      %s115 = sphi 0, %s112
      %s116 = sphi 0, %s115
      %s132 = sphi 0, %s116
      %s138 = sphi 0, %s140
      %s141 = sphi 0, %s138
      %s142 = sphi 0, %s141
      %s158 = sphi 0, %s142
    $region4: #{preact_block_forward.5} parent=1 // loop_header_branch
      %16 = sbr.rel (%p14) target = $region8
    $region5: #{preact_block_forward.5} parent=1 // loop_body
      %s18 = ssub.s32 %s13, 1
      %s19 = ssub.s32 %s13, 2
      %s20 = sadd.s32 %s13, 1
      %s21 = ssub.s32 %s13, %s20
      %p22 = scmp.eq.s32.totalorder %s21, 0
      %s24 = sadd.s32 %s23, 1
      %s25 = scalar_select %p22, %s23, %s24
      %p28 = pneg %p22
      %p29 = scmp.eq.s32.totalorder %s13, 1
      %p30 = por %p28, %p29
      %p31 = scmp.ne.s32.totalorder %s23, %s26
      %p32 = scmp.eq.s32.totalorder %s13, 0
      %p33 = por %p31, %p32
      %p34 = scmp.ne.s32.totalorder %s23, %s26
      %p35 = scmp.eq.s32.totalorder %s18, 1
      %p36 = por %p34, %p35
      %p37 = scmp.ne.s32.totalorder %s26, %s27
      %p38 = scmp.eq.s32.totalorder %s18, 0
      %p39 = por %p37, %p38
      %p40 = scmp.ne.s32.totalorder %s26, %s27
      %p41 = scmp.eq.s32.totalorder %s19, 1
      %p42 = por %p40, %p41
      %p44 = scmp.ne.s32.totalorder %s27, %s43
      %p45 = scmp.eq.s32.totalorder %s19, 0
      %p46 = por %p44, %p45
      %s48 = sadd.s32 %s47, 1
      %p51 = scmp.eq.s32.totalorder %s13, 1
      %p52 = scmp.ne.s32.totalorder %s47, %s49
      %p53 = scmp.eq.s32.totalorder %s13, 0
      %p54 = por %p52, %p53
      %p55 = scmp.ne.s32.totalorder %s47, %s49
      %p56 = scmp.eq.s32.totalorder %s18, 1
      %p57 = por %p55, %p56
      %p58 = scmp.ne.s32.totalorder %s49, %s50
      %p59 = scmp.eq.s32.totalorder %s18, 0
      %p60 = por %p58, %p59
      %p61 = scmp.ne.s32.totalorder %s49, %s50
      %p62 = scmp.eq.s32.totalorder %s19, 1
      %p63 = por %p61, %p62
      %p65 = scmp.ne.s32.totalorder %s50, %s64
      %p66 = scmp.eq.s32.totalorder %s19, 0
      %p67 = por %p65, %p66
      %s69 = sadd.s32 %s68, 1
      %p72 = scmp.eq.s32.totalorder %s13, 1
      %p73 = scmp.ne.s32.totalorder %s68, %s70
      %p74 = scmp.eq.s32.totalorder %s13, 0
      %p75 = por %p73, %p74
      %p76 = scmp.ne.s32.totalorder %s68, %s70
      %p77 = scmp.eq.s32.totalorder %s18, 1
      %p78 = por %p76, %p77
      %p79 = scmp.ne.s32.totalorder %s70, %s71
      %p80 = scmp.eq.s32.totalorder %s18, 0
      %p81 = por %p79, %p80
      %p82 = scmp.ne.s32.totalorder %s70, %s71
      %p83 = scmp.eq.s32.totalorder %s19, 1
      %p84 = por %p82, %p83
      %p86 = scmp.ne.s32.totalorder %s71, %s85
      %p87 = scmp.eq.s32.totalorder %s19, 0
      %p88 = por %p86, %p87
      %s90 = sadd.s32 %s89, 1
      %p93 = scmp.eq.s32.totalorder %s13, 1
      %p94 = scmp.ne.s32.totalorder %s89, %s91
      %p95 = scmp.eq.s32.totalorder %s13, 0
      %p96 = por %p94, %p95
      %p97 = scmp.ne.s32.totalorder %s89, %s91
      %p98 = scmp.eq.s32.totalorder %s18, 1
      %p99 = por %p97, %p98
      %p100 = scmp.ne.s32.totalorder %s91, %s92
      %p101 = scmp.eq.s32.totalorder %s18, 0
      %p102 = por %p100, %p101
      %p103 = scmp.ne.s32.totalorder %s91, %s92
      %p104 = scmp.eq.s32.totalorder %s19, 1
      %p105 = por %p103, %p104
      %p107 = scmp.ne.s32.totalorder %s92, %s106
      %p108 = scmp.eq.s32.totalorder %s19, 0
      %p109 = por %p107, %p108
      %s110 = ssub.s32 %s13, %s20
      %p111 = scmp.eq.s32.totalorder %s110, 0
      %s113 = sadd.s32 %s112, 1
      %s114 = scalar_select %p111, %s112, %s113
      %p117 = pneg %p111
      %p118 = scmp.eq.s32.totalorder %s13, 1
      %p119 = por %p117, %p118
      %p120 = scmp.ne.s32.totalorder %s112, %s115
      %p121 = scmp.eq.s32.totalorder %s13, 0
      %p122 = por %p120, %p121
      %p123 = scmp.ne.s32.totalorder %s112, %s115
      %p124 = scmp.eq.s32.totalorder %s18, 1
      %p125 = por %p123, %p124
      %p126 = scmp.ne.s32.totalorder %s115, %s116
      %p127 = scmp.eq.s32.totalorder %s18, 0
      %p128 = por %p126, %p127
      %p129 = scmp.ne.s32.totalorder %s115, %s116
      %p130 = scmp.eq.s32.totalorder %s19, 1
      %p131 = por %p129, %p130
      %p133 = scmp.ne.s32.totalorder %s116, %s132
      %p134 = scmp.eq.s32.totalorder %s19, 0
      %p135 = por %p133, %p134
      %s136 = ssub.s32 %s13, %s20
      %p137 = scmp.eq.s32.totalorder %s136, 0
      %s139 = sadd.s32 %s138, 1
      %s140 = scalar_select %p137, %s138, %s139
      %p143 = pneg %p137
      %p144 = scmp.eq.s32.totalorder %s13, 1
      %p145 = por %p143, %p144
      %p146 = scmp.ne.s32.totalorder %s138, %s141
      %p147 = scmp.eq.s32.totalorder %s13, 0
      %p148 = por %p146, %p147
      %p149 = scmp.ne.s32.totalorder %s138, %s141
      %p150 = scmp.eq.s32.totalorder %s18, 1
      %p151 = por %p149, %p150
      %p152 = scmp.ne.s32.totalorder %s141, %s142
      %p153 = scmp.eq.s32.totalorder %s18, 0
      %p154 = por %p152, %p153
      %p155 = scmp.ne.s32.totalorder %s141, %s142
      %p156 = scmp.eq.s32.totalorder %s19, 1
      %p157 = por %p155, %p156
      %p159 = scmp.ne.s32.totalorder %s142, %s158
      %p160 = scmp.eq.s32.totalorder %s19, 0
      %p161 = por %p159, %p160
      %p162 = scmp.le.s32.totalorder 1, %s13
      %p163 = scmp.lt.s32.totalorder %s13, 3
      %p164 = pnand %p162, %p163
      %p165 = pneg %p164
      // Predicated region
      $region9: #{preact_block_forward.5} parent=5 // pred_check
        _
      $region10: #{preact_block_forward.5} parent=5 // pred_check_branch
        %167 = sbr.rel (%p164) target = $region12
      $region11: #{preact_block_forward.5} parent=5 // pred_region
        %s168 = ssub.s32 %s13, 1
        // Predicated region
        $region13: #{preact_block_forward.5} parent=11 // pred_check
          %p169 = pneg %p60
        $region14: #{preact_block_forward.5} parent=11 // pred_check_branch
          %171 = sbr.rel (%p169) target = $region16
        $region15: #{preact_block_forward.5} parent=11 // pred_region
          _
        $region16: #{preact_block_forward.5} parent=11 // pred_fallthru
          _
        // Predicated region
        $region17: #{preact_block_forward.5} parent=11 // pred_check
          %p172 = pneg %p81
        $region18: #{preact_block_forward.5} parent=11 // pred_check_branch
          %174 = sbr.rel (%p172) target = $region20
        $region19: #{preact_block_forward.5} parent=11 // pred_region
          %176 = vsyncadd [#allocation4], 0
          %s178 = sshll.u32 %s2, 4
          %s179 = int_to_ptr.vmem [resolvable:$true] %s178
          %181 = dma.vmem_to_smem %s179, 16, [#allocation3], [#allocation4]
        $region20: #{preact_block_forward.5} parent=11 // pred_fallthru
          _
        // Predicated region
        $region21: #{preact_block_forward.5} parent=11 // pred_check
          %p182 = pneg %p102
        $region22: #{preact_block_forward.5} parent=11 // pred_check_branch
          %184 = sbr.rel (%p182) target = $region24
        $region23: #{preact_block_forward.5} parent=11 // pred_region
          %186 = vsyncadd [#allocation6], 0
          %s188 = sshll.u32 %s3, 4
          %s189 = int_to_ptr.vmem [resolvable:$true] %s188
          %191 = dma.vmem_to_smem %s189, 16, [#allocation5], [#allocation6]
        $region24: #{preact_block_forward.5} parent=11 // pred_fallthru
          _
      $region12: #{preact_block_forward.5} parent=5 // pred_fallthru
        _
      %p192 = scmp.lt.s32.totalorder %s13, 2
      // Predicated region
      $region25: #{preact_block_forward.5} parent=5 // pred_check
        %p193 = pneg %p192
      $region26: #{preact_block_forward.5} parent=5 // pred_check_branch
        %195 = sbr.rel (%p193) target = $region28
      $region27: #{preact_block_forward.5} parent=5 // pred_region
        // Predicated region
        $region29: #{preact_block_forward.5} parent=27 // pred_check
          %p196 = pneg %p33
        $region30: #{preact_block_forward.5} parent=27 // pred_check_branch
          %198 = sbr.rel (%p196) target = $region32
        $region31: #{preact_block_forward.5} parent=27 // pred_region
          %p199 = scmp.lt.s32.totalorder %s13, 1
          %s200 = scalar_select %p199, %s13, 1
          %s201 = smul.addr %s200, 2
          %s202 = smul.addr %s201, 4
          %s203 = scalar_lea.vmem %s0, %s202
        $region32: #{preact_block_forward.5} parent=27 // pred_fallthru
          _
        // Predicated region
        $region33: #{preact_block_forward.5} parent=27 // pred_check
          %p204 = pneg %p122
        $region34: #{preact_block_forward.5} parent=27 // pred_check_branch
          %206 = sbr.rel (%p204) target = $region36
        $region35: #{preact_block_forward.5} parent=27 // pred_region
          %p207 = scmp.lt.s32.totalorder %s13, 1
          %s208 = scalar_select %p207, %s13, 1
          %s209 = smul.addr %s208, 2
          %s210 = smul.addr %s209, 4
          %s211 = scalar_lea.vmem %s4, %s210
        $region36: #{preact_block_forward.5} parent=27 // pred_fallthru
          _
      $region28: #{preact_block_forward.5} parent=5 // pred_fallthru
        _
      %p212 = scmp.le.s32.totalorder 1, %s13
      %p213 = scmp.lt.s32.totalorder %s13, 3
      %p214 = pnand %p212, %p213
      %p215 = pneg %p214
      // Predicated region
      $region37: #{preact_block_forward.5} parent=5 // pred_check
        _
      $region38: #{preact_block_forward.5} parent=5 // pred_check_branch
        %217 = sbr.rel (%p214) target = $region40
      $region39: #{preact_block_forward.5} parent=5 // pred_region
        %s218 = ssub.s32 %s13, 1
        // Predicated region
        $region41: #{preact_block_forward.5} parent=39 // pred_check
          %p219 = pneg %p81
        $region42: #{preact_block_forward.5} parent=39 // pred_check_branch
          %221 = sbr.rel (%p219) target = $region44
        $region43: #{preact_block_forward.5} parent=39 // pred_region
          %223 = dma.done [#allocation4], 16
        $region44: #{preact_block_forward.5} parent=39 // pred_fallthru
          _
        // Predicated region
        $region45: #{preact_block_forward.5} parent=39 // pred_check
          %p224 = pneg %p102
        $region46: #{preact_block_forward.5} parent=39 // pred_check_branch
          %226 = sbr.rel (%p224) target = $region48
        $region47: #{preact_block_forward.5} parent=39 // pred_region
          %228 = dma.done [#allocation6], 16
        $region48: #{preact_block_forward.5} parent=39 // pred_fallthru
          _
        %229 = sfence
        %p230 = scmp.lt.s32.totalorder %s18, 1
        %s231 = scalar_select %p230, %s18, 1
        %s232 = smul.addr %s231, 2
        %s233 = smul.addr %s232, 4
        %s234 = scalar_lea.vmem %s0, %s233
        %p235 = pneg %p39
        %p236 = pneg %p36
        %p237 = pneg %p60
        %p238 = pneg %p57
        %p239 = pneg %p81
        %p240 = pneg %p78
        %p241 = pneg %p102
        %p242 = pneg %p99
        %p243 = scmp.lt.s32.totalorder %s18, 1
        %s244 = scalar_select %p243, %s18, 1
        %s245 = smul.addr %s244, 2
        %s246 = smul.addr %s245, 4
        %s247 = scalar_lea.vmem %s4, %s246
        %p248 = pneg %p128
        %p249 = pneg %p125
        %p250 = pneg %p154
        %p251 = pneg %p151
        %p252 = scmp.lt.s32.totalorder %s18, 1
        %s253 = scalar_select %p252, %s18, 1
        %s254 = smul.addr %s253, 2
        %s255 = smul.addr %s254, 4
        %s256 = scalar_lea.vmem %s5, %s255
        %p257 = scmp.lt.s32.totalorder %s18, 1
        %s258 = scalar_select %p257, %s18, 1
        %s259 = smul.addr %s258, 2
        %s260 = smul.addr %s259, 4
        %s261 = scalar_lea.vmem %s0, %s260
        %p262 = scmp.lt.s32.totalorder %s18, 1
        %s263 = scalar_select %p262, %s18, 1
        %s264 = smul.addr %s263, 2
        %s265 = smul.addr %s264, 4
        %s266 = scalar_lea.vmem %s4, %s265
        %p267 = scmp.lt.s32.totalorder %s18, 1
        %s268 = scalar_select %p267, %s18, 1
        %s269 = smul.addr %s268, 2
        %s270 = smul.addr %s269, 4
        %s271 = scalar_lea.vmem %s5, %s270
        %272 = vst [vmem:[#allocation2] sm:$0xf] 0.0
        %273 = vst [vmem:[#allocation2 + $0xc] sm:$0xf] 0.0
        %v274 = vld [vmem:[%s261] ss:$4 sm:$0x3]
        %s275 = sld [smem:[#allocation3]]
        %v276 = vstv %s275
        %v277 = vmul.f32 %v274, %v276
        %s278 = sld [smem:[#allocation5]]
        %v279 = vstv %s278
        %v280 = vadd.f32 %v277, %v279
        %v281 = vmax.f32 %v280, 0.0
        %v282 = vlaneseq
        %vm283 = vcmp.ge.s32.totalorder %v282, 0
        %vm284 = vcmp.lt.s32.totalorder %v282, 256
        %vm285 = vmand %vm283, %vm284
        %s286 = scalar_lea.vmem [#allocation2], 4
        %287 = vst.msk [vmem:[%s286] ss:$4 sm:$0x3] %vm285, %v281
        %s288 = scalar_lea.vmem %s261, 1
        %v289 = vld [vmem:[%s288] ss:$4 sm:$0x3]
        %s290 = sld [smem:[#allocation3 + $0x1]]
        %v291 = vstv %s290
        %v292 = vmul.f32 %v289, %v291
        %s293 = sld [smem:[#allocation5 + $0x1]]
        %v294 = vstv %s293
        %v295 = vadd.f32 %v292, %v294
        %v296 = vmax.f32 %v295, 0.0
        %s297 = scalar_lea.vmem [#allocation2], 5
        %298 = vst.msk [vmem:[%s297] ss:$4 sm:$0x3] %vm285, %v296
        %s299 = scalar_lea.vmem %s261, 2
        %v300 = vld [vmem:[%s299] ss:$4 sm:$0x3]
        %s301 = sld [smem:[#allocation3 + $0x2]]
        %v302 = vstv %s301
        %v303 = vmul.f32 %v300, %v302
        %s304 = sld [smem:[#allocation5 + $0x2]]
        %v305 = vstv %s304
        %v306 = vadd.f32 %v303, %v305
        %v307 = vmax.f32 %v306, 0.0
        %s308 = scalar_lea.vmem [#allocation2], 6
        %309 = vst.msk [vmem:[%s308] ss:$4 sm:$0x3] %vm285, %v307
        %s310 = scalar_lea.vmem %s261, 3
        %v311 = vld [vmem:[%s310] ss:$4 sm:$0x3]
        %s312 = sld [smem:[#allocation3 + $0x3]]
        %v313 = vstv %s312
        %v314 = vmul.f32 %v311, %v313
        %s315 = sld [smem:[#allocation5 + $0x3]]
        %v316 = vstv %s315
        %v317 = vadd.f32 %v314, %v316
        %v318 = vmax.f32 %v317, 0.0
        %s319 = scalar_lea.vmem [#allocation2], 7
        %320 = vst.msk [vmem:[%s319] ss:$4 sm:$0x3] %vm285, %v318
        %v321 = vlaneseq
        %v322 = vand.u32 %v321, 127
        %v323 = vadd.s32 %v322, 128
        %vm324 = vcmp.lt.s32.totalorder %v322, 0
        %v325 = vsub.s32 0, %v322
        %v326 = vsel %vm324, %v325, %v322
        %v327 = vshrl.u32 %v326, 4
        %v328 = vand.u32 %v326, 15
        %v329 = vsub.s32 0, %v328
        %v330 = vsel %vm324, %v329, %v328
        %vm331 = vcmp.lt.s32.totalorder %v323, 0
        %v332 = vsub.s32 0, %v323
        %v333 = vsel %vm331, %v332, %v323
        %v334 = vshrl.u32 %v333, 4
        %v335 = vand.u32 %v333, 15
        %v336 = vsub.s32 0, %v335
        %v337 = vsel %vm331, %v336, %v335
        %vm338 = vcmp.gt.s32.totalorder %v330, 0
        %vm339 = vcmp.gt.s32.totalorder %v337, 0
        %vm340 = vcmp.lt.s32.totalorder %v330, 15
        %vm341 = vcmp.lt.s32.totalorder %v337, 15
        %v342 = vld [vmem:[#allocation2] sm:$0xff]
        %v343 = vld [vmem:[#allocation2 + $0x8] sm:$0xf]
        %346 = vst [vmem:[#allocation1] ss:$2 sm:$0xff] %v342
        %s347 = scalar_lea.vmem [#allocation1], 16
        %348 = vst [vmem:[%s347] ss:$2 sm:$0xff] %v343
        %v349 = vld.sshfl [vmem:[#allocation1] sm:$0xff pattern:$0x75316420]
        %v350 = vld.sshfl [vmem:[#allocation1 + $0x8] sm:$0xff pattern:$0x75316420]
        %v351 = vld.sshfl [vmem:[#allocation1 + $0x10] sm:$0xff pattern:$0x75316420]
        %352 = vrot.lane.b32.xlu0 %v349, 17
        %v353 = vpop.permute.xlu0 %352
        %354 = vrot.lane.b32.xlu0 %v350, 17
        %v355 = vpop.permute.xlu0 %354
        %356 = vrot.lane.b32.xlu0 %v351, 17
        %v357 = vpop.permute.xlu0 %356
        %vm358 = vcmask 138240
        %v359 = vsel %vm358, %v353, %v355
        %v360 = vsel %vm358, %v355, %v357
        %v363 = vsel %vm338, %v359, 0.0
        %v364 = vsel %vm339, %v360, 0.0
        %v365 = vld [vmem:[%s1] sm:$0xf]
        %v366 = vld [vmem:[#allocation2] sm:$0xff]
        %v367 = vld [vmem:[#allocation2 + $0x8] sm:$0xf]
        %s368 = scalar_lea.vmem %s1, 4
        %v369 = vld [vmem:[%s368] sm:$0xf]
        %372 = vst [vmem:[#allocation1] ss:$2 sm:$0xff] %v366
        %s373 = scalar_lea.vmem [#allocation1], 16
        %374 = vst [vmem:[%s373] ss:$2 sm:$0xff] %v367
        %v375 = vld.sshfl [vmem:[#allocation1] sm:$0xff pattern:$0x75316420]
        %v376 = vld.sshfl [vmem:[#allocation1 + $0x8] sm:$0xff pattern:$0x75316420]
        %v377 = vld.sshfl [vmem:[#allocation1 + $0x10] sm:$0xff pattern:$0x75316420]
        %378 = vrot.lane.b32.xlu0 %v375, 16
        %v379 = vpop.permute.xlu0 %378
        %380 = vrot.lane.b32.xlu0 %v376, 16
        %v381 = vpop.permute.xlu0 %380
        %382 = vrot.lane.b32.xlu0 %v377, 16
        %v383 = vpop.permute.xlu0 %382
        %vm384 = vcmask 130048
        %v385 = vsel %vm384, %v379, %v381
        %v386 = vsel %vm384, %v381, %v383
        %vm387 = vcmask 31744
        %v389 = vsel %vm387, %v369, 0
        %vm391 = vcmask 1043456
        %v392 = vsel %vm391, %v385, 0
        %v394 = vsel %vm391, %v386, 0
        %396 = vmatpush.msra.mxu0 0.0
        %397 = vmatpush.msra.mxu0 0.0
        %398 = vmatpush.msra.mxu0 0.0
        %399 = vmatpush.msra.mxu0 0.0
        %400 = vmatpush.msra.mxu0 0.0
        %401 = vmatpush.msra.mxu0 0.0
        %402 = vmatpush.msra.mxu0 0.0
        %403 = vmatpush.msra.mxu0 0.0
        %404 = vmatpush.msra.mxu0 0.0
        %405 = vmatpush.msra.mxu0 0.0
        %406 = vmatpush.msra.mxu0 0.0
        %407 = vmatpush.msra.mxu0 0.0
        %408 = vmatpush.msra.mxu0 0.0
        %409 = vmatpush.msra.mxu0 0.0
        %410 = vmatpush.msra.mxu0 0.0
        %411 = vmatpush.msra.mxu0 %v392
        %412 = vmatmul.f32.gmra.mxu0 %v389
        %v413 = vpop.f32.mrf.mxu0
        %v414 = vadd.f32 0.0, %v413
        %415 = vdwg.mxu0
        %416 = vmatpush.msra.mxu0 0.0
        %417 = vmatpush.msra.mxu0 0.0
        %418 = vmatpush.msra.mxu0 0.0
        %419 = vmatpush.msra.mxu0 0.0
        %420 = vmatpush.msra.mxu0 0.0
        %421 = vmatpush.msra.mxu0 0.0
        %422 = vmatpush.msra.mxu0 0.0
        %423 = vmatpush.msra.mxu0 0.0
        %424 = vmatpush.msra.mxu0 0.0
        %425 = vmatpush.msra.mxu0 0.0
        %426 = vmatpush.msra.mxu0 0.0
        %427 = vmatpush.msra.mxu0 0.0
        %428 = vmatpush.msra.mxu0 0.0
        %429 = vmatpush.msra.mxu0 0.0
        %430 = vmatpush.msra.mxu0 0.0
        %431 = vmatpush.msra.mxu0 %v394
        %432 = vmatmul.f32.gmra.mxu0 %v389
        %v433 = vpop.f32.mrf.mxu0
        %v434 = vadd.f32 0.0, %v433
        %435 = vdwg.mxu0
        %v437 = vsel %vm387, %v365, 0
        %v440 = vsel %vm391, %v363, 0
        %v443 = vsel %vm391, %v364, 0
        %445 = vmatpush.msra.mxu0 0.0
        %446 = vmatpush.msra.mxu0 0.0
        %447 = vmatpush.msra.mxu0 0.0
        %448 = vmatpush.msra.mxu0 0.0
        %449 = vmatpush.msra.mxu0 0.0
        %450 = vmatpush.msra.mxu0 0.0
        %451 = vmatpush.msra.mxu0 0.0
        %452 = vmatpush.msra.mxu0 0.0
        %453 = vmatpush.msra.mxu0 0.0
        %454 = vmatpush.msra.mxu0 0.0
        %455 = vmatpush.msra.mxu0 0.0
        %456 = vmatpush.msra.mxu0 0.0
        %457 = vmatpush.msra.mxu0 0.0
        %458 = vmatpush.msra.mxu0 0.0
        %459 = vmatpush.msra.mxu0 0.0
        %460 = vmatpush.msra.mxu0 %v440
        %461 = vmatmul.f32.gmra.mxu0 %v437
        %v462 = vpop.f32.mrf.mxu0
        %v463 = vadd.f32 %v414, %v462
        %464 = vdwg.mxu0
        %465 = vmatpush.msra.mxu0 0.0
        %466 = vmatpush.msra.mxu0 0.0
        %467 = vmatpush.msra.mxu0 0.0
        %468 = vmatpush.msra.mxu0 0.0
        %469 = vmatpush.msra.mxu0 0.0
        %470 = vmatpush.msra.mxu0 0.0
        %471 = vmatpush.msra.mxu0 0.0
        %472 = vmatpush.msra.mxu0 0.0
        %473 = vmatpush.msra.mxu0 0.0
        %474 = vmatpush.msra.mxu0 0.0
        %475 = vmatpush.msra.mxu0 0.0
        %476 = vmatpush.msra.mxu0 0.0
        %477 = vmatpush.msra.mxu0 0.0
        %478 = vmatpush.msra.mxu0 0.0
        %479 = vmatpush.msra.mxu0 0.0
        %480 = vmatpush.msra.mxu0 %v443
        %481 = vmatmul.f32.gmra.mxu0 %v437
        %v482 = vpop.f32.mrf.mxu0
        %v483 = vadd.f32 %v434, %v482
        %484 = vdwg.mxu0
        %v485 = vld [vmem:[#allocation2] sm:$0xff]
        %v486 = vld [vmem:[#allocation2 + $0x8] sm:$0xf]
        %489 = vst [vmem:[#allocation1] ss:$2 sm:$0xff] %v485
        %s490 = scalar_lea.vmem [#allocation1], 16
        %491 = vst [vmem:[%s490] ss:$2 sm:$0xff] %v486
        %v492 = vld.sshfl [vmem:[#allocation1] sm:$0xff pattern:$0x75316420]
        %v493 = vld.sshfl [vmem:[#allocation1 + $0x8] sm:$0xff pattern:$0x75316420]
        %v494 = vld.sshfl [vmem:[#allocation1 + $0x10] sm:$0xff pattern:$0x75316420]
        %495 = vrot.lane.b32.xlu0 %v492, 15
        %v496 = vpop.permute.xlu0 %495
        %497 = vrot.lane.b32.xlu0 %v493, 15
        %v498 = vpop.permute.xlu0 %497
        %499 = vrot.lane.b32.xlu0 %v494, 15
        %v500 = vpop.permute.xlu0 %499
        %vm501 = vcmask 121856
        %v502 = vsel %vm501, %v496, %v498
        %v503 = vsel %vm501, %v498, %v500
        %v506 = vsel %vm340, %v502, 0.0
        %v507 = vsel %vm341, %v503, 0.0
        %s508 = scalar_lea.vmem %s1, 8
        %v509 = vld [vmem:[%s508] sm:$0xf]
        %v511 = vsel %vm387, %v509, 0
        %v514 = vsel %vm391, %v506, 0
        %v517 = vsel %vm391, %v507, 0
        %519 = vmatpush.msra.mxu0 0.0
        %520 = vmatpush.msra.mxu0 0.0
        %521 = vmatpush.msra.mxu0 0.0
        %522 = vmatpush.msra.mxu0 0.0
        %523 = vmatpush.msra.mxu0 0.0
        %524 = vmatpush.msra.mxu0 0.0
        %525 = vmatpush.msra.mxu0 0.0
        %526 = vmatpush.msra.mxu0 0.0
        %527 = vmatpush.msra.mxu0 0.0
        %528 = vmatpush.msra.mxu0 0.0
        %529 = vmatpush.msra.mxu0 0.0
        %530 = vmatpush.msra.mxu0 0.0
        %531 = vmatpush.msra.mxu0 0.0
        %532 = vmatpush.msra.mxu0 0.0
        %533 = vmatpush.msra.mxu0 0.0
        %534 = vmatpush.msra.mxu0 %v514
        %535 = vmatmul.f32.gmra.mxu0 %v511
        %v536 = vpop.f32.mrf.mxu0
        %v537 = vadd.f32 0.0, %v536
        %538 = vdwg.mxu0
        %539 = vmatpush.msra.mxu0 0.0
        %540 = vmatpush.msra.mxu0 0.0
        %541 = vmatpush.msra.mxu0 0.0
        %542 = vmatpush.msra.mxu0 0.0
        %543 = vmatpush.msra.mxu0 0.0
        %544 = vmatpush.msra.mxu0 0.0
        %545 = vmatpush.msra.mxu0 0.0
        %546 = vmatpush.msra.mxu0 0.0
        %547 = vmatpush.msra.mxu0 0.0
        %548 = vmatpush.msra.mxu0 0.0
        %549 = vmatpush.msra.mxu0 0.0
        %550 = vmatpush.msra.mxu0 0.0
        %551 = vmatpush.msra.mxu0 0.0
        %552 = vmatpush.msra.mxu0 0.0
        %553 = vmatpush.msra.mxu0 0.0
        %554 = vmatpush.msra.mxu0 %v517
        %555 = vmatmul.f32.gmra.mxu0 %v511
        %v556 = vpop.f32.mrf.mxu0
        %v557 = vadd.f32 0.0, %v556
        %558 = vdwg.mxu0
        %v559 = vadd.f32 %v463, %v537
        %v560 = vadd.f32 %v483, %v557
        %v561 = vld [vmem:[#allocation2] sm:$0xff]
        %v562 = vld [vmem:[#allocation2 + $0x8] sm:$0xf]
        %565 = vst [vmem:[#allocation1] ss:$2 sm:$0xff] %v561
        %s566 = scalar_lea.vmem [#allocation1], 16
        %567 = vst [vmem:[%s566] ss:$2 sm:$0xff] %v562
        %v568 = vld.sshfl [vmem:[#allocation1] sm:$0xff pattern:$0x75316420]
        %v569 = vld.sshfl [vmem:[#allocation1 + $0x8] sm:$0xff pattern:$0x75316420]
        %v570 = vld.sshfl [vmem:[#allocation1 + $0x10] sm:$0xff pattern:$0x75316420]
        %571 = vrot.lane.b32.xlu0 %v568, 1
        %v572 = vpop.permute.xlu0 %571
        %573 = vrot.lane.b32.xlu0 %v569, 1
        %v574 = vpop.permute.xlu0 %573
        %575 = vrot.lane.b32.xlu0 %v570, 1
        %v576 = vpop.permute.xlu0 %575
        %vm577 = vcmask 7168
        %v578 = vsel %vm577, %v572, %v574
        %v579 = vsel %vm577, %v574, %v576
        %v582 = vsel %vm338, %v578, 0.0
        %v583 = vsel %vm339, %v579, 0.0
        %s584 = scalar_lea.vmem %s1, 12
        %v585 = vld [vmem:[%s584] sm:$0xf]
        %v587 = vsel %vm387, %v585, 0
        %v590 = vsel %vm391, %v582, 0
        %v593 = vsel %vm391, %v583, 0
        %595 = vmatpush.msra.mxu0 0.0
        %596 = vmatpush.msra.mxu0 0.0
        %597 = vmatpush.msra.mxu0 0.0
        %598 = vmatpush.msra.mxu0 0.0
        %599 = vmatpush.msra.mxu0 0.0
        %600 = vmatpush.msra.mxu0 0.0
        %601 = vmatpush.msra.mxu0 0.0
        %602 = vmatpush.msra.mxu0 0.0
        %603 = vmatpush.msra.mxu0 0.0
        %604 = vmatpush.msra.mxu0 0.0
        %605 = vmatpush.msra.mxu0 0.0
        %606 = vmatpush.msra.mxu0 0.0
        %607 = vmatpush.msra.mxu0 0.0
        %608 = vmatpush.msra.mxu0 0.0
        %609 = vmatpush.msra.mxu0 0.0
        %610 = vmatpush.msra.mxu0 %v590
        %611 = vmatmul.f32.gmra.mxu0 %v587
        %v612 = vpop.f32.mrf.mxu0
        %v613 = vadd.f32 0.0, %v612
        %614 = vdwg.mxu0
        %615 = vmatpush.msra.mxu0 0.0
        %616 = vmatpush.msra.mxu0 0.0
        %617 = vmatpush.msra.mxu0 0.0
        %618 = vmatpush.msra.mxu0 0.0
        %619 = vmatpush.msra.mxu0 0.0
        %620 = vmatpush.msra.mxu0 0.0
        %621 = vmatpush.msra.mxu0 0.0
        %622 = vmatpush.msra.mxu0 0.0
        %623 = vmatpush.msra.mxu0 0.0
        %624 = vmatpush.msra.mxu0 0.0
        %625 = vmatpush.msra.mxu0 0.0
        %626 = vmatpush.msra.mxu0 0.0
        %627 = vmatpush.msra.mxu0 0.0
        %628 = vmatpush.msra.mxu0 0.0
        %629 = vmatpush.msra.mxu0 0.0
        %630 = vmatpush.msra.mxu0 %v593
        %631 = vmatmul.f32.gmra.mxu0 %v587
        %v632 = vpop.f32.mrf.mxu0
        %v633 = vadd.f32 0.0, %v632
        %634 = vdwg.mxu0
        %v635 = vadd.f32 %v559, %v613
        %v636 = vadd.f32 %v560, %v633
        %v637 = vld [vmem:[#allocation2 + $0x4] sm:$0xff]
        %s638 = scalar_lea.vmem %s1, 16
        %v639 = vld [vmem:[%s638] sm:$0xf]
        %641 = vst [vmem:[#allocation1] ss:$2 sm:$0xff] %v637
        %v642 = vld.sshfl [vmem:[#allocation1] sm:$0xff pattern:$0x75316420]
        %v643 = vld.sshfl [vmem:[#allocation1 + $0x8] sm:$0xff pattern:$0x75316420]
        %v645 = vsel %vm387, %v639, 0
        %v647 = vsel %vm391, %v642, 0
        %v649 = vsel %vm391, %v643, 0
        %651 = vmatpush.msra.mxu0 0.0
        %652 = vmatpush.msra.mxu0 0.0
        %653 = vmatpush.msra.mxu0 0.0
        %654 = vmatpush.msra.mxu0 0.0
        %655 = vmatpush.msra.mxu0 0.0
        %656 = vmatpush.msra.mxu0 0.0
        %657 = vmatpush.msra.mxu0 0.0
        %658 = vmatpush.msra.mxu0 0.0
        %659 = vmatpush.msra.mxu0 0.0
        %660 = vmatpush.msra.mxu0 0.0
        %661 = vmatpush.msra.mxu0 0.0
        %662 = vmatpush.msra.mxu0 0.0
        %663 = vmatpush.msra.mxu0 0.0
        %664 = vmatpush.msra.mxu0 0.0
        %665 = vmatpush.msra.mxu0 0.0
        %666 = vmatpush.msra.mxu0 %v647
        %667 = vmatmul.f32.gmra.mxu0 %v645
        %v668 = vpop.f32.mrf.mxu0
        %v669 = vadd.f32 0.0, %v668
        %670 = vdwg.mxu0
        %671 = vmatpush.msra.mxu0 0.0
        %672 = vmatpush.msra.mxu0 0.0
        %673 = vmatpush.msra.mxu0 0.0
        %674 = vmatpush.msra.mxu0 0.0
        %675 = vmatpush.msra.mxu0 0.0
        %676 = vmatpush.msra.mxu0 0.0
        %677 = vmatpush.msra.mxu0 0.0
        %678 = vmatpush.msra.mxu0 0.0
        %679 = vmatpush.msra.mxu0 0.0
        %680 = vmatpush.msra.mxu0 0.0
        %681 = vmatpush.msra.mxu0 0.0
        %682 = vmatpush.msra.mxu0 0.0
        %683 = vmatpush.msra.mxu0 0.0
        %684 = vmatpush.msra.mxu0 0.0
        %685 = vmatpush.msra.mxu0 0.0
        %686 = vmatpush.msra.mxu0 %v649
        %687 = vmatmul.f32.gmra.mxu0 %v645
        %v688 = vpop.f32.mrf.mxu0
        %v689 = vadd.f32 0.0, %v688
        %690 = vdwg.mxu0
        %v691 = vadd.f32 %v635, %v669
        %v692 = vadd.f32 %v636, %v689
        %v693 = vld [vmem:[#allocation2 + $0x4] sm:$0xff]
        %v694 = vld [vmem:[#allocation2 + $0xc] sm:$0xf]
        %697 = vst [vmem:[#allocation1] ss:$2 sm:$0xff] %v693
        %s698 = scalar_lea.vmem [#allocation1], 16
        %699 = vst [vmem:[%s698] ss:$2 sm:$0xff] %v694
        %v700 = vld.sshfl [vmem:[#allocation1] sm:$0xff pattern:$0x75316420]
        %v701 = vld.sshfl [vmem:[#allocation1 + $0x8] sm:$0xff pattern:$0x75316420]
        %v702 = vld.sshfl [vmem:[#allocation1 + $0x10] sm:$0xff pattern:$0x75316420]
        %703 = vrot.lane.b32.xlu0 %v700, 127
        %v704 = vpop.permute.xlu0 %703
        %705 = vrot.lane.b32.xlu0 %v701, 127
        %v706 = vpop.permute.xlu0 %705
        %707 = vrot.lane.b32.xlu0 %v702, 127
        %v708 = vpop.permute.xlu0 %707
        %vm709 = vcmask 1039360
        %v710 = vsel %vm709, %v704, %v706
        %v711 = vsel %vm709, %v706, %v708
        %v714 = vsel %vm340, %v710, 0.0
        %v715 = vsel %vm341, %v711, 0.0
        %s716 = scalar_lea.vmem %s1, 20
        %v717 = vld [vmem:[%s716] sm:$0xf]
        %v719 = vsel %vm387, %v717, 0
        %v722 = vsel %vm391, %v714, 0
        %v725 = vsel %vm391, %v715, 0
        %727 = vmatpush.msra.mxu0 0.0
        %728 = vmatpush.msra.mxu0 0.0
        %729 = vmatpush.msra.mxu0 0.0
        %730 = vmatpush.msra.mxu0 0.0
        %731 = vmatpush.msra.mxu0 0.0
        %732 = vmatpush.msra.mxu0 0.0
        %733 = vmatpush.msra.mxu0 0.0
        %734 = vmatpush.msra.mxu0 0.0
        %735 = vmatpush.msra.mxu0 0.0
        %736 = vmatpush.msra.mxu0 0.0
        %737 = vmatpush.msra.mxu0 0.0
        %738 = vmatpush.msra.mxu0 0.0
        %739 = vmatpush.msra.mxu0 0.0
        %740 = vmatpush.msra.mxu0 0.0
        %741 = vmatpush.msra.mxu0 0.0
        %742 = vmatpush.msra.mxu0 %v722
        %743 = vmatmul.f32.gmra.mxu0 %v719
        %v744 = vpop.f32.mrf.mxu0
        %v745 = vadd.f32 0.0, %v744
        %746 = vdwg.mxu0
        %747 = vmatpush.msra.mxu0 0.0
        %748 = vmatpush.msra.mxu0 0.0
        %749 = vmatpush.msra.mxu0 0.0
        %750 = vmatpush.msra.mxu0 0.0
        %751 = vmatpush.msra.mxu0 0.0
        %752 = vmatpush.msra.mxu0 0.0
        %753 = vmatpush.msra.mxu0 0.0
        %754 = vmatpush.msra.mxu0 0.0
        %755 = vmatpush.msra.mxu0 0.0
        %756 = vmatpush.msra.mxu0 0.0
        %757 = vmatpush.msra.mxu0 0.0
        %758 = vmatpush.msra.mxu0 0.0
        %759 = vmatpush.msra.mxu0 0.0
        %760 = vmatpush.msra.mxu0 0.0
        %761 = vmatpush.msra.mxu0 0.0
        %762 = vmatpush.msra.mxu0 %v725
        %763 = vmatmul.f32.gmra.mxu0 %v719
        %v764 = vpop.f32.mrf.mxu0
        %v765 = vadd.f32 0.0, %v764
        %766 = vdwg.mxu0
        %v767 = vadd.f32 %v691, %v745
        %v768 = vadd.f32 %v692, %v765
        %v769 = vld [vmem:[#allocation2 + $0x4] sm:$0xff]
        %v770 = vld [vmem:[#allocation2 + $0xc] sm:$0xf]
        %773 = vst [vmem:[#allocation1] ss:$2 sm:$0xff] %v769
        %s774 = scalar_lea.vmem [#allocation1], 16
        %775 = vst [vmem:[%s774] ss:$2 sm:$0xff] %v770
        %v776 = vld.sshfl [vmem:[#allocation1] sm:$0xff pattern:$0x75316420]
        %v777 = vld.sshfl [vmem:[#allocation1 + $0x8] sm:$0xff pattern:$0x75316420]
        %v778 = vld.sshfl [vmem:[#allocation1 + $0x10] sm:$0xff pattern:$0x75316420]
        %779 = vrot.lane.b32.xlu0 %v776, 113
        %v780 = vpop.permute.xlu0 %779
        %781 = vrot.lane.b32.xlu0 %v777, 113
        %v782 = vpop.permute.xlu0 %781
        %783 = vrot.lane.b32.xlu0 %v778, 113
        %v784 = vpop.permute.xlu0 %783
        %vm785 = vcmask 924672
        %v786 = vsel %vm785, %v780, %v782
        %v787 = vsel %vm785, %v782, %v784
        %v790 = vsel %vm338, %v786, 0.0
        %v791 = vsel %vm339, %v787, 0.0
        %s792 = scalar_lea.vmem %s1, 24
        %v793 = vld [vmem:[%s792] sm:$0xf]
        %v795 = vsel %vm387, %v793, 0
        %v798 = vsel %vm391, %v790, 0
        %v801 = vsel %vm391, %v791, 0
        %803 = vmatpush.msra.mxu0 0.0
        %804 = vmatpush.msra.mxu0 0.0
        %805 = vmatpush.msra.mxu0 0.0
        %806 = vmatpush.msra.mxu0 0.0
        %807 = vmatpush.msra.mxu0 0.0
        %808 = vmatpush.msra.mxu0 0.0
        %809 = vmatpush.msra.mxu0 0.0
        %810 = vmatpush.msra.mxu0 0.0
        %811 = vmatpush.msra.mxu0 0.0
        %812 = vmatpush.msra.mxu0 0.0
        %813 = vmatpush.msra.mxu0 0.0
        %814 = vmatpush.msra.mxu0 0.0
        %815 = vmatpush.msra.mxu0 0.0
        %816 = vmatpush.msra.mxu0 0.0
        %817 = vmatpush.msra.mxu0 0.0
        %818 = vmatpush.msra.mxu0 %v798
        %819 = vmatmul.f32.gmra.mxu0 %v795
        %v820 = vpop.f32.mrf.mxu0
        %v821 = vadd.f32 0.0, %v820
        %822 = vdwg.mxu0
        %823 = vmatpush.msra.mxu0 0.0
        %824 = vmatpush.msra.mxu0 0.0
        %825 = vmatpush.msra.mxu0 0.0
        %826 = vmatpush.msra.mxu0 0.0
        %827 = vmatpush.msra.mxu0 0.0
        %828 = vmatpush.msra.mxu0 0.0
        %829 = vmatpush.msra.mxu0 0.0
        %830 = vmatpush.msra.mxu0 0.0
        %831 = vmatpush.msra.mxu0 0.0
        %832 = vmatpush.msra.mxu0 0.0
        %833 = vmatpush.msra.mxu0 0.0
        %834 = vmatpush.msra.mxu0 0.0
        %835 = vmatpush.msra.mxu0 0.0
        %836 = vmatpush.msra.mxu0 0.0
        %837 = vmatpush.msra.mxu0 0.0
        %838 = vmatpush.msra.mxu0 %v801
        %839 = vmatmul.f32.gmra.mxu0 %v795
        %v840 = vpop.f32.mrf.mxu0
        %v841 = vadd.f32 0.0, %v840
        %842 = vdwg.mxu0
        %v843 = vadd.f32 %v767, %v821
        %v844 = vadd.f32 %v768, %v841
        %v845 = vld [vmem:[#allocation2 + $0x4] sm:$0xff]
        %v846 = vld [vmem:[#allocation2 + $0xc] sm:$0xf]
        %s847 = scalar_lea.vmem %s1, 28
        %v848 = vld [vmem:[%s847] sm:$0xf]
        %851 = vst [vmem:[#allocation1] ss:$2 sm:$0xff] %v845
        %s852 = scalar_lea.vmem [#allocation1], 16
        %853 = vst [vmem:[%s852] ss:$2 sm:$0xff] %v846
        %v854 = vld.sshfl [vmem:[#allocation1] sm:$0xff pattern:$0x75316420]
        %v855 = vld.sshfl [vmem:[#allocation1 + $0x8] sm:$0xff pattern:$0x75316420]
        %v856 = vld.sshfl [vmem:[#allocation1 + $0x10] sm:$0xff pattern:$0x75316420]
        %857 = vrot.lane.b32.xlu0 %v854, 112
        %v858 = vpop.permute.xlu0 %857
        %859 = vrot.lane.b32.xlu0 %v855, 112
        %v860 = vpop.permute.xlu0 %859
        %861 = vrot.lane.b32.xlu0 %v856, 112
        %v862 = vpop.permute.xlu0 %861
        %vm863 = vcmask 916480
        %v864 = vsel %vm863, %v858, %v860
        %v865 = vsel %vm863, %v860, %v862
        %v867 = vsel %vm387, %v848, 0
        %v869 = vsel %vm391, %v864, 0
        %v871 = vsel %vm391, %v865, 0
        %873 = vmatpush.msra.mxu0 0.0
        %874 = vmatpush.msra.mxu0 0.0
        %875 = vmatpush.msra.mxu0 0.0
        %876 = vmatpush.msra.mxu0 0.0
        %877 = vmatpush.msra.mxu0 0.0
        %878 = vmatpush.msra.mxu0 0.0
        %879 = vmatpush.msra.mxu0 0.0
        %880 = vmatpush.msra.mxu0 0.0
        %881 = vmatpush.msra.mxu0 0.0
        %882 = vmatpush.msra.mxu0 0.0
        %883 = vmatpush.msra.mxu0 0.0
        %884 = vmatpush.msra.mxu0 0.0
        %885 = vmatpush.msra.mxu0 0.0
        %886 = vmatpush.msra.mxu0 0.0
        %887 = vmatpush.msra.mxu0 0.0
        %888 = vmatpush.msra.mxu0 %v869
        %889 = vmatmul.f32.gmra.mxu0 %v867
        %v890 = vpop.f32.mrf.mxu0
        %v891 = vadd.f32 0.0, %v890
        %892 = vdwg.mxu0
        %893 = vmatpush.msra.mxu0 0.0
        %894 = vmatpush.msra.mxu0 0.0
        %895 = vmatpush.msra.mxu0 0.0
        %896 = vmatpush.msra.mxu0 0.0
        %897 = vmatpush.msra.mxu0 0.0
        %898 = vmatpush.msra.mxu0 0.0
        %899 = vmatpush.msra.mxu0 0.0
        %900 = vmatpush.msra.mxu0 0.0
        %901 = vmatpush.msra.mxu0 0.0
        %902 = vmatpush.msra.mxu0 0.0
        %903 = vmatpush.msra.mxu0 0.0
        %904 = vmatpush.msra.mxu0 0.0
        %905 = vmatpush.msra.mxu0 0.0
        %906 = vmatpush.msra.mxu0 0.0
        %907 = vmatpush.msra.mxu0 0.0
        %908 = vmatpush.msra.mxu0 %v871
        %909 = vmatmul.f32.gmra.mxu0 %v867
        %v910 = vpop.f32.mrf.mxu0
        %v911 = vadd.f32 0.0, %v910
        %912 = vdwg.mxu0
        %v913 = vadd.f32 %v843, %v891
        %v914 = vadd.f32 %v844, %v911
        %v915 = vld [vmem:[#allocation2 + $0x4] sm:$0xff]
        %v916 = vld [vmem:[#allocation2 + $0xc] sm:$0xf]
        %919 = vst [vmem:[#allocation1] ss:$2 sm:$0xff] %v915
        %s920 = scalar_lea.vmem [#allocation1], 16
        %921 = vst [vmem:[%s920] ss:$2 sm:$0xff] %v916
        %v922 = vld.sshfl [vmem:[#allocation1] sm:$0xff pattern:$0x75316420]
        %v923 = vld.sshfl [vmem:[#allocation1 + $0x8] sm:$0xff pattern:$0x75316420]
        %v924 = vld.sshfl [vmem:[#allocation1 + $0x10] sm:$0xff pattern:$0x75316420]
        %925 = vrot.lane.b32.xlu0 %v922, 111
        %v926 = vpop.permute.xlu0 %925
        %927 = vrot.lane.b32.xlu0 %v923, 111
        %v928 = vpop.permute.xlu0 %927
        %929 = vrot.lane.b32.xlu0 %v924, 111
        %v930 = vpop.permute.xlu0 %929
        %vm931 = vcmask 908288
        %v932 = vsel %vm931, %v926, %v928
        %v933 = vsel %vm931, %v928, %v930
        %v936 = vsel %vm340, %v932, 0.0
        %v937 = vsel %vm341, %v933, 0.0
        %s938 = scalar_lea.vmem %s1, 32
        %v939 = vld [vmem:[%s938] sm:$0xf]
        %v941 = vsel %vm387, %v939, 0
        %v944 = vsel %vm391, %v936, 0
        %v947 = vsel %vm391, %v937, 0
        %949 = vmatpush.msra.mxu0 0.0
        %950 = vmatpush.msra.mxu0 0.0
        %951 = vmatpush.msra.mxu0 0.0
        %952 = vmatpush.msra.mxu0 0.0
        %953 = vmatpush.msra.mxu0 0.0
        %954 = vmatpush.msra.mxu0 0.0
        %955 = vmatpush.msra.mxu0 0.0
        %956 = vmatpush.msra.mxu0 0.0
        %957 = vmatpush.msra.mxu0 0.0
        %958 = vmatpush.msra.mxu0 0.0
        %959 = vmatpush.msra.mxu0 0.0
        %960 = vmatpush.msra.mxu0 0.0
        %961 = vmatpush.msra.mxu0 0.0
        %962 = vmatpush.msra.mxu0 0.0
        %963 = vmatpush.msra.mxu0 0.0
        %964 = vmatpush.msra.mxu0 %v944
        %965 = vmatmul.f32.gmra.mxu0 %v941
        %v966 = vpop.f32.mrf.mxu0
        %v967 = vadd.f32 0.0, %v966
        %968 = vdwg.mxu0
        %969 = vmatpush.msra.mxu0 0.0
        %970 = vmatpush.msra.mxu0 0.0
        %971 = vmatpush.msra.mxu0 0.0
        %972 = vmatpush.msra.mxu0 0.0
        %973 = vmatpush.msra.mxu0 0.0
        %974 = vmatpush.msra.mxu0 0.0
        %975 = vmatpush.msra.mxu0 0.0
        %976 = vmatpush.msra.mxu0 0.0
        %977 = vmatpush.msra.mxu0 0.0
        %978 = vmatpush.msra.mxu0 0.0
        %979 = vmatpush.msra.mxu0 0.0
        %980 = vmatpush.msra.mxu0 0.0
        %981 = vmatpush.msra.mxu0 0.0
        %982 = vmatpush.msra.mxu0 0.0
        %983 = vmatpush.msra.mxu0 0.0
        %984 = vmatpush.msra.mxu0 %v947
        %985 = vmatmul.f32.gmra.mxu0 %v941
        %v986 = vpop.f32.mrf.mxu0
        %v987 = vadd.f32 0.0, %v986
        %988 = vdwg.mxu0
        %v989 = vadd.f32 %v913, %v967
        %v990 = vadd.f32 %v914, %v987
        %v991 = vld [vmem:[%s266] sm:$0xff]
        %993 = vst [vmem:[#allocation1] ss:$2 sm:$0xff] %v991
        %v994 = vld.sshfl [vmem:[#allocation1] sm:$0xff pattern:$0x75316420]
        %v995 = vld.sshfl [vmem:[#allocation1 + $0x8] sm:$0xff pattern:$0x75316420]
        %v998 = vadd.f32 %v989, %v994
        %v999 = vadd.f32 %v990, %v995
        %v1002 = vrot.slane %v999, 4
        %v1003 = vsel %vm391, %v998, %v1002
        %1005 = vst [vmem:[%s271] sm:$0xff] %v1003
        %p1006 = scmp.lt.s32.totalorder %s18, 1
        %s1007 = scalar_select %p1006, %s18, 1
        %s1008 = smul.addr %s1007, 2
        %s1009 = smul.addr %s1008, 4
        %s1010 = scalar_lea.vmem %s5, %s1009
        // Predicated region
        $region49: #{preact_block_forward.5} parent=39 // pred_check
          %p1011 = pneg %p151
        $region50: #{preact_block_forward.5} parent=39 // pred_check_branch
          %1013 = sbr.rel (%p1011) target = $region52
        $region51: #{preact_block_forward.5} parent=39 // pred_region
          _
        $region52: #{preact_block_forward.5} parent=39 // pred_fallthru
          _
      $region40: #{preact_block_forward.5} parent=5 // pred_fallthru
        _
      %p1014 = scmp.le.s32.totalorder 2, %s13
      // Predicated region
      $region53: #{preact_block_forward.5} parent=5 // pred_check
        %p1015 = pneg %p1014
      $region54: #{preact_block_forward.5} parent=5 // pred_check_branch
        %1017 = sbr.rel (%p1015) target = $region56
      $region55: #{preact_block_forward.5} parent=5 // pred_region
        %s1018 = ssub.s32 %s13, 2
        // Predicated region
        $region57: #{preact_block_forward.5} parent=55 // pred_check
          %p1019 = pneg %p157
        $region58: #{preact_block_forward.5} parent=55 // pred_check_branch
          %1021 = sbr.rel (%p1019) target = $region60
        $region59: #{preact_block_forward.5} parent=55 // pred_region
          %p1022 = scmp.lt.s32.totalorder %s19, 1
          %s1023 = scalar_select %p1022, %s19, 1
          %s1024 = smul.addr %s1023, 2
          %s1025 = smul.addr %s1024, 4
          %s1026 = scalar_lea.vmem %s5, %s1025
        $region60: #{preact_block_forward.5} parent=55 // pred_fallthru
          _
      $region56: #{preact_block_forward.5} parent=5 // pred_fallthru
        _
    $region6: #{preact_block_forward.5} parent=1 // loop_footer
      %s17 = sadd.s32 1, %s13
    $region7: #{preact_block_forward.5} parent=1 // loop_footer_branch
      %12 = sbr.rel target = $region3
    $region8: #{preact_block_forward.5} parent=1 // loop_exit
      _
    %1027 = vsyncpa [#allocation4], 1
    %s1028 = scalar_lea.sflag [#allocation4], 1
    %1029 = vsyncpa %s1028, 1
    %1030 = vsyncpa [#allocation6], 1

// kernel: preact_block_forward.4
$region0: #{preact_block_forward.4}
  #allocation0 [shape = 'u32[]', space=smem, size = 0x4, offset = 0x4, fixed_abs, tag = 'smem constant byte address 0x4 - core index']
  #allocation1 [shape = 'u32[72,128]{1,0:T(1,128)}', space=vmem, size = 0x9000, scoped, tag = 'internal scratch']
  #allocation2 [shape = 'f32[4,512]{1,0:T(4,128)}', space=vmem, size = 0x2000, scoped, tag = 'scratch operand']
  %s0 = inlined_call_operand.vmem [shape: f32[2,4,256], index: 0, kind: input, shape index: {}]
  %s1 = inlined_call_operand.vmem [shape: f32[9,4,4], index: 1, kind: input, shape index: {}]
  %s2 = inlined_call_operand.vmem [shape: f32[4], index: 2, kind: input, shape index: {}]
  %s3 = inlined_call_operand.vmem [shape: f32[4], index: 3, kind: input, shape index: {}]
  %s4 = inlined_call_operand.vmem [shape: f32[2,4,256], index: 4, kind: output, shape index: {0}]
  %s5 = inlined_call_operand.vmem [shape: f32[2,4,1], index: 5, kind: output, shape index: {1}]
  %s6 = inlined_call_operand.vmem [shape: f32[2,4,1], index: 6, kind: output, shape index: {2}]
  %7 = xla_tuple %s4, %s5, %s6
  %s8 = sld [smem:[#allocation0]]
  $region73: #{preact_block_forward.4} parent=0
    _
  %s10 = ssub.s32 1, %s8
  %s11 = scalar_select 0, %s10, %s8
  $region1: #{preact_block_forward.4} parent=0
    #allocation3 [shape = 'u8[512]{0}', space=smem, size = 0x200, scoped, tag = 'input window, operand 2, single buffered']
    #allocation4 [shape = 's32[2]{0}', space=sflag, size = 0x8, scoped, tag = 'scoped memory for preact_block_forward.4']
    #allocation5 [shape = 'u8[512]{0}', space=smem, size = 0x200, scoped, tag = 'input window, operand 3, single buffered']
    #allocation6 [shape = 's32[1]{0}', space=sflag, size = 0x4, scoped, tag = 'scoped memory for preact_block_forward.4']
    %12 = vsyncpa [#allocation4], 0
    %13 = vsyncpa [#allocation6], 0
    loop: start=0, step=1, limit=4
    $region2: #{preact_block_forward.4} parent=1 // loop_pre_header
      _
    $region3: #{preact_block_forward.4} parent=1 // loop_header
      %s15 = sphi 0, %s19
      %p16 = scmp.ge.s32.totalorder %s15, 4
      %s25 = sphi 0, %s27
      %s28 = sphi 0, %s25
      %s29 = sphi 0, %s28
      %s45 = sphi 0, %s29
      %s49 = sphi 0, %s49
      %s51 = sphi 0, %s49
      %s52 = sphi 0, %s51
      %s66 = sphi 0, %s52
      %s70 = sphi 0, %s70
      %s72 = sphi 0, %s70
      %s73 = sphi 0, %s72
      %s87 = sphi 0, %s73
      %s91 = sphi 0, %s91
      %s93 = sphi 0, %s91
      %s94 = sphi 0, %s93
      %s108 = sphi 0, %s94
      %s114 = sphi 0, %s116
      %s117 = sphi 0, %s114
      %s118 = sphi 0, %s117
      %s134 = sphi 0, %s118
      %s140 = sphi 0, %s142
      %s143 = sphi 0, %s140
      %s144 = sphi 0, %s143
      %s160 = sphi 0, %s144
      %s166 = sphi 0, %s168
      %s169 = sphi 0, %s166
      %s170 = sphi 0, %s169
      %s186 = sphi 0, %s170
    $region4: #{preact_block_forward.4} parent=1 // loop_header_branch
      %18 = sbr.rel (%p16) target = $region8
    $region5: #{preact_block_forward.4} parent=1 // loop_body
      %s20 = ssub.s32 %s15, 1
      %s21 = ssub.s32 %s15, 2
      %s22 = sadd.s32 %s15, 1
      %s23 = ssub.s32 %s15, %s22
      %p24 = scmp.eq.s32.totalorder %s23, 0
      %s26 = sadd.s32 %s25, 1
      %s27 = scalar_select %p24, %s25, %s26
      %p30 = pneg %p24
      %p31 = scmp.eq.s32.totalorder %s15, 1
      %p32 = por %p30, %p31
      %p33 = scmp.ne.s32.totalorder %s25, %s28
      %p34 = scmp.eq.s32.totalorder %s15, 0
      %p35 = por %p33, %p34
      %p36 = scmp.ne.s32.totalorder %s25, %s28
      %p37 = scmp.eq.s32.totalorder %s20, 1
      %p38 = por %p36, %p37
      %p39 = scmp.ne.s32.totalorder %s28, %s29
      %p40 = scmp.eq.s32.totalorder %s20, 0
      %p41 = por %p39, %p40
      %p42 = scmp.ne.s32.totalorder %s28, %s29
      %p43 = scmp.eq.s32.totalorder %s21, 1
      %p44 = por %p42, %p43
      %p46 = scmp.ne.s32.totalorder %s29, %s45
      %p47 = scmp.eq.s32.totalorder %s21, 0
      %p48 = por %p46, %p47
      %s50 = sadd.s32 %s49, 1
      %p53 = scmp.eq.s32.totalorder %s15, 1
      %p54 = scmp.ne.s32.totalorder %s49, %s51
      %p55 = scmp.eq.s32.totalorder %s15, 0
      %p56 = por %p54, %p55
      %p57 = scmp.ne.s32.totalorder %s49, %s51
      %p58 = scmp.eq.s32.totalorder %s20, 1
      %p59 = por %p57, %p58
      %p60 = scmp.ne.s32.totalorder %s51, %s52
      %p61 = scmp.eq.s32.totalorder %s20, 0
      %p62 = por %p60, %p61
      %p63 = scmp.ne.s32.totalorder %s51, %s52
      %p64 = scmp.eq.s32.totalorder %s21, 1
      %p65 = por %p63, %p64
      %p67 = scmp.ne.s32.totalorder %s52, %s66
      %p68 = scmp.eq.s32.totalorder %s21, 0
      %p69 = por %p67, %p68
      %s71 = sadd.s32 %s70, 1
      %p74 = scmp.eq.s32.totalorder %s15, 1
      %p75 = scmp.ne.s32.totalorder %s70, %s72
      %p76 = scmp.eq.s32.totalorder %s15, 0
      %p77 = por %p75, %p76
      %p78 = scmp.ne.s32.totalorder %s70, %s72
      %p79 = scmp.eq.s32.totalorder %s20, 1
      %p80 = por %p78, %p79
      %p81 = scmp.ne.s32.totalorder %s72, %s73
      %p82 = scmp.eq.s32.totalorder %s20, 0
      %p83 = por %p81, %p82
      %p84 = scmp.ne.s32.totalorder %s72, %s73
      %p85 = scmp.eq.s32.totalorder %s21, 1
      %p86 = por %p84, %p85
      %p88 = scmp.ne.s32.totalorder %s73, %s87
      %p89 = scmp.eq.s32.totalorder %s21, 0
      %p90 = por %p88, %p89
      %s92 = sadd.s32 %s91, 1
      %p95 = scmp.eq.s32.totalorder %s15, 1
      %p96 = scmp.ne.s32.totalorder %s91, %s93
      %p97 = scmp.eq.s32.totalorder %s15, 0
      %p98 = por %p96, %p97
      %p99 = scmp.ne.s32.totalorder %s91, %s93
      %p100 = scmp.eq.s32.totalorder %s20, 1
      %p101 = por %p99, %p100
      %p102 = scmp.ne.s32.totalorder %s93, %s94
      %p103 = scmp.eq.s32.totalorder %s20, 0
      %p104 = por %p102, %p103
      %p105 = scmp.ne.s32.totalorder %s93, %s94
      %p106 = scmp.eq.s32.totalorder %s21, 1
      %p107 = por %p105, %p106
      %p109 = scmp.ne.s32.totalorder %s94, %s108
      %p110 = scmp.eq.s32.totalorder %s21, 0
      %p111 = por %p109, %p110
      %s112 = ssub.s32 %s15, %s22
      %p113 = scmp.eq.s32.totalorder %s112, 0
      %s115 = sadd.s32 %s114, 1
      %s116 = scalar_select %p113, %s114, %s115
      %p119 = pneg %p113
      %p120 = scmp.eq.s32.totalorder %s15, 1
      %p121 = por %p119, %p120
      %p122 = scmp.ne.s32.totalorder %s114, %s117
      %p123 = scmp.eq.s32.totalorder %s15, 0
      %p124 = por %p122, %p123
      %p125 = scmp.ne.s32.totalorder %s114, %s117
      %p126 = scmp.eq.s32.totalorder %s20, 1
      %p127 = por %p125, %p126
      %p128 = scmp.ne.s32.totalorder %s117, %s118
      %p129 = scmp.eq.s32.totalorder %s20, 0
      %p130 = por %p128, %p129
      %p131 = scmp.ne.s32.totalorder %s117, %s118
      %p132 = scmp.eq.s32.totalorder %s21, 1
      %p133 = por %p131, %p132
      %p135 = scmp.ne.s32.totalorder %s118, %s134
      %p136 = scmp.eq.s32.totalorder %s21, 0
      %p137 = por %p135, %p136
      %s138 = ssub.s32 %s15, %s22
      %p139 = scmp.eq.s32.totalorder %s138, 0
      %s141 = sadd.s32 %s140, 1
      %s142 = scalar_select %p139, %s140, %s141
      %p145 = pneg %p139
      %p146 = scmp.eq.s32.totalorder %s15, 1
      %p147 = por %p145, %p146
      %p148 = scmp.ne.s32.totalorder %s140, %s143
      %p149 = scmp.eq.s32.totalorder %s15, 0
      %p150 = por %p148, %p149
      %p151 = scmp.ne.s32.totalorder %s140, %s143
      %p152 = scmp.eq.s32.totalorder %s20, 1
      %p153 = por %p151, %p152
      %p154 = scmp.ne.s32.totalorder %s143, %s144
      %p155 = scmp.eq.s32.totalorder %s20, 0
      %p156 = por %p154, %p155
      %p157 = scmp.ne.s32.totalorder %s143, %s144
      %p158 = scmp.eq.s32.totalorder %s21, 1
      %p159 = por %p157, %p158
      %p161 = scmp.ne.s32.totalorder %s144, %s160
      %p162 = scmp.eq.s32.totalorder %s21, 0
      %p163 = por %p161, %p162
      %s164 = ssub.s32 %s15, %s22
      %p165 = scmp.eq.s32.totalorder %s164, 0
      %s167 = sadd.s32 %s166, 1
      %s168 = scalar_select %p165, %s166, %s167
      %p171 = pneg %p165
      %p172 = scmp.eq.s32.totalorder %s15, 1
      %p173 = por %p171, %p172
      %p174 = scmp.ne.s32.totalorder %s166, %s169
      %p175 = scmp.eq.s32.totalorder %s15, 0
      %p176 = por %p174, %p175
      %p177 = scmp.ne.s32.totalorder %s166, %s169
      %p178 = scmp.eq.s32.totalorder %s20, 1
      %p179 = por %p177, %p178
      %p180 = scmp.ne.s32.totalorder %s169, %s170
      %p181 = scmp.eq.s32.totalorder %s20, 0
      %p182 = por %p180, %p181
      %p183 = scmp.ne.s32.totalorder %s169, %s170
      %p184 = scmp.eq.s32.totalorder %s21, 1
      %p185 = por %p183, %p184
      %p187 = scmp.ne.s32.totalorder %s170, %s186
      %p188 = scmp.eq.s32.totalorder %s21, 0
      %p189 = por %p187, %p188
      %p190 = scmp.le.s32.totalorder 1, %s15
      %p191 = scmp.lt.s32.totalorder %s15, 3
      %p192 = pnand %p190, %p191
      %p193 = pneg %p192
      // Predicated region
      $region9: #{preact_block_forward.4} parent=5 // pred_check
        _
      $region10: #{preact_block_forward.4} parent=5 // pred_check_branch
        %195 = sbr.rel (%p192) target = $region12
      $region11: #{preact_block_forward.4} parent=5 // pred_region
        %s196 = ssub.s32 %s15, 1
        // Predicated region
        $region13: #{preact_block_forward.4} parent=11 // pred_check
          %p197 = pneg %p62
        $region14: #{preact_block_forward.4} parent=11 // pred_check_branch
          %199 = sbr.rel (%p197) target = $region16
        $region15: #{preact_block_forward.4} parent=11 // pred_region
          _
        $region16: #{preact_block_forward.4} parent=11 // pred_fallthru
          _
        // Predicated region
        $region17: #{preact_block_forward.4} parent=11 // pred_check
          %p200 = pneg %p83
        $region18: #{preact_block_forward.4} parent=11 // pred_check_branch
          %202 = sbr.rel (%p200) target = $region20
        $region19: #{preact_block_forward.4} parent=11 // pred_region
          %204 = vsyncadd [#allocation4], 0
          %s206 = sshll.u32 %s2, 4
          %s207 = int_to_ptr.vmem [resolvable:$true] %s206
          %209 = dma.vmem_to_smem %s207, 16, [#allocation3], [#allocation4]
        $region20: #{preact_block_forward.4} parent=11 // pred_fallthru
          _
        // Predicated region
        $region21: #{preact_block_forward.4} parent=11 // pred_check
          %p210 = pneg %p104
        $region22: #{preact_block_forward.4} parent=11 // pred_check_branch
          %212 = sbr.rel (%p210) target = $region24
        $region23: #{preact_block_forward.4} parent=11 // pred_region
          %214 = vsyncadd [#allocation6], 0
          %s216 = sshll.u32 %s3, 4
          %s217 = int_to_ptr.vmem [resolvable:$true] %s216
          %219 = dma.vmem_to_smem %s217, 16, [#allocation5], [#allocation6]
        $region24: #{preact_block_forward.4} parent=11 // pred_fallthru
          _
      $region12: #{preact_block_forward.4} parent=5 // pred_fallthru
        _
      %p220 = scmp.lt.s32.totalorder %s15, 2
      // Predicated region
      $region25: #{preact_block_forward.4} parent=5 // pred_check
        %p221 = pneg %p220
      $region26: #{preact_block_forward.4} parent=5 // pred_check_branch
        %223 = sbr.rel (%p221) target = $region28
      $region27: #{preact_block_forward.4} parent=5 // pred_region
        // Predicated region
        $region29: #{preact_block_forward.4} parent=27 // pred_check
          %p224 = pneg %p35
        $region30: #{preact_block_forward.4} parent=27 // pred_check_branch
          %226 = sbr.rel (%p224) target = $region32
        $region31: #{preact_block_forward.4} parent=27 // pred_region
          %p227 = scmp.lt.s32.totalorder %s15, 1
          %s228 = scalar_select %p227, %s15, 1
          %s229 = smul.addr %s228, 2
          %s230 = smul.addr %s229, 4
          %s231 = scalar_lea.vmem %s0, %s230
        $region32: #{preact_block_forward.4} parent=27 // pred_fallthru
          _
      $region28: #{preact_block_forward.4} parent=5 // pred_fallthru
        _
      %p232 = scmp.le.s32.totalorder 1, %s15
      %p233 = scmp.lt.s32.totalorder %s15, 3
      %p234 = pnand %p232, %p233
      %p235 = pneg %p234
      // Predicated region
      $region33: #{preact_block_forward.4} parent=5 // pred_check
        _
      $region34: #{preact_block_forward.4} parent=5 // pred_check_branch
        %237 = sbr.rel (%p234) target = $region36
      $region35: #{preact_block_forward.4} parent=5 // pred_region
        %s238 = ssub.s32 %s15, 1
        // Predicated region
        $region37: #{preact_block_forward.4} parent=35 // pred_check
          %p239 = pneg %p83
        $region38: #{preact_block_forward.4} parent=35 // pred_check_branch
          %241 = sbr.rel (%p239) target = $region40
        $region39: #{preact_block_forward.4} parent=35 // pred_region
          %243 = dma.done [#allocation4], 16
        $region40: #{preact_block_forward.4} parent=35 // pred_fallthru
          _
        // Predicated region
        $region41: #{preact_block_forward.4} parent=35 // pred_check
          %p244 = pneg %p104
        $region42: #{preact_block_forward.4} parent=35 // pred_check_branch
          %246 = sbr.rel (%p244) target = $region44
        $region43: #{preact_block_forward.4} parent=35 // pred_region
          %248 = dma.done [#allocation6], 16
        $region44: #{preact_block_forward.4} parent=35 // pred_fallthru
          _
        %249 = sfence
        %p250 = scmp.lt.s32.totalorder %s20, 1
        %s251 = scalar_select %p250, %s20, 1
        %s252 = smul.addr %s251, 2
        %s253 = smul.addr %s252, 4
        %s254 = scalar_lea.vmem %s0, %s253
        %p255 = pneg %p41
        %p256 = pneg %p38
        %p257 = pneg %p62
        %p258 = pneg %p59
        %p259 = pneg %p83
        %p260 = pneg %p80
        %p261 = pneg %p104
        %p262 = pneg %p101
        %p263 = pneg %p130
        %p264 = pneg %p127
        %p265 = scmp.lt.s32.totalorder %s20, 1
        %s266 = scalar_select %p265, %s20, 1
        %s267 = smul.addr %s266, 2
        %s268 = smul.addr %s267, 4
        %s269 = scalar_lea.vmem %s4, %s268
        %p270 = pneg %p156
        %p271 = pneg %p153
        %p272 = scmp.lt.s32.totalorder %s20, 1
        %s273 = scalar_select %p272, %s20, 1
        %s274 = smul.addr %s273, 4
        %s275 = scalar_lea.vmem %s5, %s274
        %p276 = pneg %p182
        %p277 = pneg %p179
        %p278 = scmp.lt.s32.totalorder %s20, 1
        %s279 = scalar_select %p278, %s20, 1
        %s280 = smul.addr %s279, 4
        %s281 = scalar_lea.vmem %s6, %s280
        %p282 = scmp.lt.s32.totalorder %s20, 1
        %s283 = scalar_select %p282, %s20, 1
        %s284 = smul.addr %s283, 2
        %s285 = smul.addr %s284, 4
        %s286 = scalar_lea.vmem %s0, %s285
        %p287 = scmp.lt.s32.totalorder %s20, 1
        %s288 = scalar_select %p287, %s20, 1
        %s289 = smul.addr %s288, 2
        %s290 = smul.addr %s289, 4
        %s291 = scalar_lea.vmem %s4, %s290
        %p292 = scmp.lt.s32.totalorder %s20, 1
        %s293 = scalar_select %p292, %s20, 1
        %s294 = smul.addr %s293, 4
        %s295 = scalar_lea.vmem %s5, %s294
        %p296 = scmp.lt.s32.totalorder %s20, 1
        %s297 = scalar_select %p296, %s20, 1
        %s298 = smul.addr %s297, 4
        %s299 = scalar_lea.vmem %s6, %s298
        %300 = vst [vmem:[#allocation2] sm:$0xf] 0.0
        %301 = vst [vmem:[#allocation2 + $0xc] sm:$0xf] 0.0
        %v302 = vld [vmem:[%s286] ss:$4 sm:$0x3]
        %s303 = sld [smem:[#allocation3]]
        %v304 = vstv %s303
        %v305 = vmul.f32 %v302, %v304
        %s306 = sld [smem:[#allocation5]]
        %v307 = vstv %s306
        %v308 = vadd.f32 %v305, %v307
        %v309 = vmax.f32 %v308, 0.0
        %v310 = vlaneseq
        %vm311 = vcmp.ge.s32.totalorder %v310, 0
        %vm312 = vcmp.lt.s32.totalorder %v310, 256
        %vm313 = vmand %vm311, %vm312
        %s314 = scalar_lea.vmem [#allocation2], 4
        %315 = vst.msk [vmem:[%s314] ss:$4 sm:$0x3] %vm313, %v309
        %s316 = scalar_lea.vmem %s286, 1
        %v317 = vld [vmem:[%s316] ss:$4 sm:$0x3]
        %s318 = sld [smem:[#allocation3 + $0x1]]
        %v319 = vstv %s318
        %v320 = vmul.f32 %v317, %v319
        %s321 = sld [smem:[#allocation5 + $0x1]]
        %v322 = vstv %s321
        %v323 = vadd.f32 %v320, %v322
        %v324 = vmax.f32 %v323, 0.0
        %s325 = scalar_lea.vmem [#allocation2], 5
        %326 = vst.msk [vmem:[%s325] ss:$4 sm:$0x3] %vm313, %v324
        %s327 = scalar_lea.vmem %s286, 2
        %v328 = vld [vmem:[%s327] ss:$4 sm:$0x3]
        %s329 = sld [smem:[#allocation3 + $0x2]]
        %v330 = vstv %s329
        %v331 = vmul.f32 %v328, %v330
        %s332 = sld [smem:[#allocation5 + $0x2]]
        %v333 = vstv %s332
        %v334 = vadd.f32 %v331, %v333
        %v335 = vmax.f32 %v334, 0.0
        %s336 = scalar_lea.vmem [#allocation2], 6
        %337 = vst.msk [vmem:[%s336] ss:$4 sm:$0x3] %vm313, %v335
        %s338 = scalar_lea.vmem %s286, 3
        %v339 = vld [vmem:[%s338] ss:$4 sm:$0x3]
        %s340 = sld [smem:[#allocation3 + $0x3]]
        %v341 = vstv %s340
        %v342 = vmul.f32 %v339, %v341
        %s343 = sld [smem:[#allocation5 + $0x3]]
        %v344 = vstv %s343
        %v345 = vadd.f32 %v342, %v344
        %v346 = vmax.f32 %v345, 0.0
        %s347 = scalar_lea.vmem [#allocation2], 7
        %348 = vst.msk [vmem:[%s347] ss:$4 sm:$0x3] %vm313, %v346
        %v349 = vlaneseq
        %v350 = vand.u32 %v349, 127
        %v351 = vadd.s32 %v350, 128
        %vm352 = vcmp.lt.s32.totalorder %v350, 0
        %v353 = vsub.s32 0, %v350
        %v354 = vsel %vm352, %v353, %v350
        %v355 = vshrl.u32 %v354, 4
        %v356 = vand.u32 %v354, 15
        %v357 = vsub.s32 0, %v356
        %v358 = vsel %vm352, %v357, %v356
        %vm359 = vcmp.lt.s32.totalorder %v351, 0
        %v360 = vsub.s32 0, %v351
        %v361 = vsel %vm359, %v360, %v351
        %v362 = vshrl.u32 %v361, 4
        %v363 = vand.u32 %v361, 15
        %v364 = vsub.s32 0, %v363
        %v365 = vsel %vm359, %v364, %v363
        %vm366 = vcmp.gt.s32.totalorder %v358, 0
        %vm367 = vcmp.gt.s32.totalorder %v365, 0
        %vm368 = vcmp.lt.s32.totalorder %v358, 15
        %vm369 = vcmp.lt.s32.totalorder %v365, 15
        %v370 = vld [vmem:[#allocation2] sm:$0xff]
        %v371 = vld [vmem:[#allocation2 + $0x8] sm:$0xf]
        %374 = vst [vmem:[#allocation1] ss:$2 sm:$0xff] %v370
        %s375 = scalar_lea.vmem [#allocation1], 16
        %376 = vst [vmem:[%s375] ss:$2 sm:$0xff] %v371
        %v377 = vld.sshfl [vmem:[#allocation1] sm:$0xff pattern:$0x75316420]
        %v378 = vld.sshfl [vmem:[#allocation1 + $0x8] sm:$0xff pattern:$0x75316420]
        %v379 = vld.sshfl [vmem:[#allocation1 + $0x10] sm:$0xff pattern:$0x75316420]
        %380 = vrot.lane.b32.xlu0 %v377, 17
        %v381 = vpop.permute.xlu0 %380
        %382 = vrot.lane.b32.xlu0 %v378, 17
        %v383 = vpop.permute.xlu0 %382
        %384 = vrot.lane.b32.xlu0 %v379, 17
        %v385 = vpop.permute.xlu0 %384
        %vm386 = vcmask 138240
        %v387 = vsel %vm386, %v381, %v383
        %v388 = vsel %vm386, %v383, %v385
        %v391 = vsel %vm366, %v387, 0.0
        %v392 = vsel %vm367, %v388, 0.0
        %v393 = vld [vmem:[%s1] sm:$0xf]
        %v394 = vld [vmem:[#allocation2] sm:$0xff]
        %v395 = vld [vmem:[#allocation2 + $0x8] sm:$0xf]
        %s396 = scalar_lea.vmem %s1, 4
        %v397 = vld [vmem:[%s396] sm:$0xf]
        %400 = vst [vmem:[#allocation1] ss:$2 sm:$0xff] %v394
        %s401 = scalar_lea.vmem [#allocation1], 16
        %402 = vst [vmem:[%s401] ss:$2 sm:$0xff] %v395
        %v403 = vld.sshfl [vmem:[#allocation1] sm:$0xff pattern:$0x75316420]
        %v404 = vld.sshfl [vmem:[#allocation1 + $0x8] sm:$0xff pattern:$0x75316420]
        %v405 = vld.sshfl [vmem:[#allocation1 + $0x10] sm:$0xff pattern:$0x75316420]
        %406 = vrot.lane.b32.xlu0 %v403, 16
        %v407 = vpop.permute.xlu0 %406
        %408 = vrot.lane.b32.xlu0 %v404, 16
        %v409 = vpop.permute.xlu0 %408
        %410 = vrot.lane.b32.xlu0 %v405, 16
        %v411 = vpop.permute.xlu0 %410
        %vm412 = vcmask 130048
        %v413 = vsel %vm412, %v407, %v409
        %v414 = vsel %vm412, %v409, %v411
        %vm415 = vcmask 31744
        %v417 = vsel %vm415, %v397, 0
        %vm419 = vcmask 1043456
        %v420 = vsel %vm419, %v413, 0
        %v422 = vsel %vm419, %v414, 0
        %424 = vmatpush.msra.mxu0 0.0
        %425 = vmatpush.msra.mxu0 0.0
        %426 = vmatpush.msra.mxu0 0.0
        %427 = vmatpush.msra.mxu0 0.0
        %428 = vmatpush.msra.mxu0 0.0
        %429 = vmatpush.msra.mxu0 0.0
        %430 = vmatpush.msra.mxu0 0.0
        %431 = vmatpush.msra.mxu0 0.0
        %432 = vmatpush.msra.mxu0 0.0
        %433 = vmatpush.msra.mxu0 0.0
        %434 = vmatpush.msra.mxu0 0.0
        %435 = vmatpush.msra.mxu0 0.0
        %436 = vmatpush.msra.mxu0 0.0
        %437 = vmatpush.msra.mxu0 0.0
        %438 = vmatpush.msra.mxu0 0.0
        %439 = vmatpush.msra.mxu0 %v420
        %440 = vmatmul.f32.gmra.mxu0 %v417
        %v441 = vpop.f32.mrf.mxu0
        %v442 = vadd.f32 0.0, %v441
        %443 = vdwg.mxu0
        %444 = vmatpush.msra.mxu0 0.0
        %445 = vmatpush.msra.mxu0 0.0
        %446 = vmatpush.msra.mxu0 0.0
        %447 = vmatpush.msra.mxu0 0.0
        %448 = vmatpush.msra.mxu0 0.0
        %449 = vmatpush.msra.mxu0 0.0
        %450 = vmatpush.msra.mxu0 0.0
        %451 = vmatpush.msra.mxu0 0.0
        %452 = vmatpush.msra.mxu0 0.0
        %453 = vmatpush.msra.mxu0 0.0
        %454 = vmatpush.msra.mxu0 0.0
        %455 = vmatpush.msra.mxu0 0.0
        %456 = vmatpush.msra.mxu0 0.0
        %457 = vmatpush.msra.mxu0 0.0
        %458 = vmatpush.msra.mxu0 0.0
        %459 = vmatpush.msra.mxu0 %v422
        %460 = vmatmul.f32.gmra.mxu0 %v417
        %v461 = vpop.f32.mrf.mxu0
        %v462 = vadd.f32 0.0, %v461
        %463 = vdwg.mxu0
        %v465 = vsel %vm415, %v393, 0
        %v468 = vsel %vm419, %v391, 0
        %v471 = vsel %vm419, %v392, 0
        %473 = vmatpush.msra.mxu0 0.0
        %474 = vmatpush.msra.mxu0 0.0
        %475 = vmatpush.msra.mxu0 0.0
        %476 = vmatpush.msra.mxu0 0.0
        %477 = vmatpush.msra.mxu0 0.0
        %478 = vmatpush.msra.mxu0 0.0
        %479 = vmatpush.msra.mxu0 0.0
        %480 = vmatpush.msra.mxu0 0.0
        %481 = vmatpush.msra.mxu0 0.0
        %482 = vmatpush.msra.mxu0 0.0
        %483 = vmatpush.msra.mxu0 0.0
        %484 = vmatpush.msra.mxu0 0.0
        %485 = vmatpush.msra.mxu0 0.0
        %486 = vmatpush.msra.mxu0 0.0
        %487 = vmatpush.msra.mxu0 0.0
        %488 = vmatpush.msra.mxu0 %v468
        %489 = vmatmul.f32.gmra.mxu0 %v465
        %v490 = vpop.f32.mrf.mxu0
        %v491 = vadd.f32 %v442, %v490
        %492 = vdwg.mxu0
        %493 = vmatpush.msra.mxu0 0.0
        %494 = vmatpush.msra.mxu0 0.0
        %495 = vmatpush.msra.mxu0 0.0
        %496 = vmatpush.msra.mxu0 0.0
        %497 = vmatpush.msra.mxu0 0.0
        %498 = vmatpush.msra.mxu0 0.0
        %499 = vmatpush.msra.mxu0 0.0
        %500 = vmatpush.msra.mxu0 0.0
        %501 = vmatpush.msra.mxu0 0.0
        %502 = vmatpush.msra.mxu0 0.0
        %503 = vmatpush.msra.mxu0 0.0
        %504 = vmatpush.msra.mxu0 0.0
        %505 = vmatpush.msra.mxu0 0.0
        %506 = vmatpush.msra.mxu0 0.0
        %507 = vmatpush.msra.mxu0 0.0
        %508 = vmatpush.msra.mxu0 %v471
        %509 = vmatmul.f32.gmra.mxu0 %v465
        %v510 = vpop.f32.mrf.mxu0
        %v511 = vadd.f32 %v462, %v510
        %512 = vdwg.mxu0
        %v513 = vld [vmem:[#allocation2] sm:$0xff]
        %v514 = vld [vmem:[#allocation2 + $0x8] sm:$0xf]
        %517 = vst [vmem:[#allocation1] ss:$2 sm:$0xff] %v513
        %s518 = scalar_lea.vmem [#allocation1], 16
        %519 = vst [vmem:[%s518] ss:$2 sm:$0xff] %v514
        %v520 = vld.sshfl [vmem:[#allocation1] sm:$0xff pattern:$0x75316420]
        %v521 = vld.sshfl [vmem:[#allocation1 + $0x8] sm:$0xff pattern:$0x75316420]
        %v522 = vld.sshfl [vmem:[#allocation1 + $0x10] sm:$0xff pattern:$0x75316420]
        %523 = vrot.lane.b32.xlu0 %v520, 15
        %v524 = vpop.permute.xlu0 %523
        %525 = vrot.lane.b32.xlu0 %v521, 15
        %v526 = vpop.permute.xlu0 %525
        %527 = vrot.lane.b32.xlu0 %v522, 15
        %v528 = vpop.permute.xlu0 %527
        %vm529 = vcmask 121856
        %v530 = vsel %vm529, %v524, %v526
        %v531 = vsel %vm529, %v526, %v528
        %v534 = vsel %vm368, %v530, 0.0
        %v535 = vsel %vm369, %v531, 0.0
        %s536 = scalar_lea.vmem %s1, 8
        %v537 = vld [vmem:[%s536] sm:$0xf]
        %v539 = vsel %vm415, %v537, 0
        %v542 = vsel %vm419, %v534, 0
        %v545 = vsel %vm419, %v535, 0
        %547 = vmatpush.msra.mxu0 0.0
        %548 = vmatpush.msra.mxu0 0.0
        %549 = vmatpush.msra.mxu0 0.0
        %550 = vmatpush.msra.mxu0 0.0
        %551 = vmatpush.msra.mxu0 0.0
        %552 = vmatpush.msra.mxu0 0.0
        %553 = vmatpush.msra.mxu0 0.0
        %554 = vmatpush.msra.mxu0 0.0
        %555 = vmatpush.msra.mxu0 0.0
        %556 = vmatpush.msra.mxu0 0.0
        %557 = vmatpush.msra.mxu0 0.0
        %558 = vmatpush.msra.mxu0 0.0
        %559 = vmatpush.msra.mxu0 0.0
        %560 = vmatpush.msra.mxu0 0.0
        %561 = vmatpush.msra.mxu0 0.0
        %562 = vmatpush.msra.mxu0 %v542
        %563 = vmatmul.f32.gmra.mxu0 %v539
        %v564 = vpop.f32.mrf.mxu0
        %v565 = vadd.f32 0.0, %v564
        %566 = vdwg.mxu0
        %567 = vmatpush.msra.mxu0 0.0
        %568 = vmatpush.msra.mxu0 0.0
        %569 = vmatpush.msra.mxu0 0.0
        %570 = vmatpush.msra.mxu0 0.0
        %571 = vmatpush.msra.mxu0 0.0
        %572 = vmatpush.msra.mxu0 0.0
        %573 = vmatpush.msra.mxu0 0.0
        %574 = vmatpush.msra.mxu0 0.0
        %575 = vmatpush.msra.mxu0 0.0
        %576 = vmatpush.msra.mxu0 0.0
        %577 = vmatpush.msra.mxu0 0.0
        %578 = vmatpush.msra.mxu0 0.0
        %579 = vmatpush.msra.mxu0 0.0
        %580 = vmatpush.msra.mxu0 0.0
        %581 = vmatpush.msra.mxu0 0.0
        %582 = vmatpush.msra.mxu0 %v545
        %583 = vmatmul.f32.gmra.mxu0 %v539
        %v584 = vpop.f32.mrf.mxu0
        %v585 = vadd.f32 0.0, %v584
        %586 = vdwg.mxu0
        %v587 = vadd.f32 %v491, %v565
        %v588 = vadd.f32 %v511, %v585
        %v589 = vld [vmem:[#allocation2] sm:$0xff]
        %v590 = vld [vmem:[#allocation2 + $0x8] sm:$0xf]
        %593 = vst [vmem:[#allocation1] ss:$2 sm:$0xff] %v589
        %s594 = scalar_lea.vmem [#allocation1], 16
        %595 = vst [vmem:[%s594] ss:$2 sm:$0xff] %v590
        %v596 = vld.sshfl [vmem:[#allocation1] sm:$0xff pattern:$0x75316420]
        %v597 = vld.sshfl [vmem:[#allocation1 + $0x8] sm:$0xff pattern:$0x75316420]
        %v598 = vld.sshfl [vmem:[#allocation1 + $0x10] sm:$0xff pattern:$0x75316420]
        %599 = vrot.lane.b32.xlu0 %v596, 1
        %v600 = vpop.permute.xlu0 %599
        %601 = vrot.lane.b32.xlu0 %v597, 1
        %v602 = vpop.permute.xlu0 %601
        %603 = vrot.lane.b32.xlu0 %v598, 1
        %v604 = vpop.permute.xlu0 %603
        %vm605 = vcmask 7168
        %v606 = vsel %vm605, %v600, %v602
        %v607 = vsel %vm605, %v602, %v604
        %v610 = vsel %vm366, %v606, 0.0
        %v611 = vsel %vm367, %v607, 0.0
        %s612 = scalar_lea.vmem %s1, 12
        %v613 = vld [vmem:[%s612] sm:$0xf]
        %v615 = vsel %vm415, %v613, 0
        %v618 = vsel %vm419, %v610, 0
        %v621 = vsel %vm419, %v611, 0
        %623 = vmatpush.msra.mxu0 0.0
        %624 = vmatpush.msra.mxu0 0.0
        %625 = vmatpush.msra.mxu0 0.0
        %626 = vmatpush.msra.mxu0 0.0
        %627 = vmatpush.msra.mxu0 0.0
        %628 = vmatpush.msra.mxu0 0.0
        %629 = vmatpush.msra.mxu0 0.0
        %630 = vmatpush.msra.mxu0 0.0
        %631 = vmatpush.msra.mxu0 0.0
        %632 = vmatpush.msra.mxu0 0.0
        %633 = vmatpush.msra.mxu0 0.0
        %634 = vmatpush.msra.mxu0 0.0
        %635 = vmatpush.msra.mxu0 0.0
        %636 = vmatpush.msra.mxu0 0.0
        %637 = vmatpush.msra.mxu0 0.0
        %638 = vmatpush.msra.mxu0 %v618
        %639 = vmatmul.f32.gmra.mxu0 %v615
        %v640 = vpop.f32.mrf.mxu0
        %v641 = vadd.f32 0.0, %v640
        %642 = vdwg.mxu0
        %643 = vmatpush.msra.mxu0 0.0
        %644 = vmatpush.msra.mxu0 0.0
        %645 = vmatpush.msra.mxu0 0.0
        %646 = vmatpush.msra.mxu0 0.0
        %647 = vmatpush.msra.mxu0 0.0
        %648 = vmatpush.msra.mxu0 0.0
        %649 = vmatpush.msra.mxu0 0.0
        %650 = vmatpush.msra.mxu0 0.0
        %651 = vmatpush.msra.mxu0 0.0
        %652 = vmatpush.msra.mxu0 0.0
        %653 = vmatpush.msra.mxu0 0.0
        %654 = vmatpush.msra.mxu0 0.0
        %655 = vmatpush.msra.mxu0 0.0
        %656 = vmatpush.msra.mxu0 0.0
        %657 = vmatpush.msra.mxu0 0.0
        %658 = vmatpush.msra.mxu0 %v621
        %659 = vmatmul.f32.gmra.mxu0 %v615
        %v660 = vpop.f32.mrf.mxu0
        %v661 = vadd.f32 0.0, %v660
        %662 = vdwg.mxu0
        %v663 = vadd.f32 %v587, %v641
        %v664 = vadd.f32 %v588, %v661
        %v665 = vld [vmem:[#allocation2 + $0x4] sm:$0xff]
        %s666 = scalar_lea.vmem %s1, 16
        %v667 = vld [vmem:[%s666] sm:$0xf]
        %669 = vst [vmem:[#allocation1] ss:$2 sm:$0xff] %v665
        %v670 = vld.sshfl [vmem:[#allocation1] sm:$0xff pattern:$0x75316420]
        %v671 = vld.sshfl [vmem:[#allocation1 + $0x8] sm:$0xff pattern:$0x75316420]
        %v673 = vsel %vm415, %v667, 0
        %v675 = vsel %vm419, %v670, 0
        %v677 = vsel %vm419, %v671, 0
        %679 = vmatpush.msra.mxu0 0.0
        %680 = vmatpush.msra.mxu0 0.0
        %681 = vmatpush.msra.mxu0 0.0
        %682 = vmatpush.msra.mxu0 0.0
        %683 = vmatpush.msra.mxu0 0.0
        %684 = vmatpush.msra.mxu0 0.0
        %685 = vmatpush.msra.mxu0 0.0
        %686 = vmatpush.msra.mxu0 0.0
        %687 = vmatpush.msra.mxu0 0.0
        %688 = vmatpush.msra.mxu0 0.0
        %689 = vmatpush.msra.mxu0 0.0
        %690 = vmatpush.msra.mxu0 0.0
        %691 = vmatpush.msra.mxu0 0.0
        %692 = vmatpush.msra.mxu0 0.0
        %693 = vmatpush.msra.mxu0 0.0
        %694 = vmatpush.msra.mxu0 %v675
        %695 = vmatmul.f32.gmra.mxu0 %v673
        %v696 = vpop.f32.mrf.mxu0
        %v697 = vadd.f32 0.0, %v696
        %698 = vdwg.mxu0
        %699 = vmatpush.msra.mxu0 0.0
        %700 = vmatpush.msra.mxu0 0.0
        %701 = vmatpush.msra.mxu0 0.0
        %702 = vmatpush.msra.mxu0 0.0
        %703 = vmatpush.msra.mxu0 0.0
        %704 = vmatpush.msra.mxu0 0.0
        %705 = vmatpush.msra.mxu0 0.0
        %706 = vmatpush.msra.mxu0 0.0
        %707 = vmatpush.msra.mxu0 0.0
        %708 = vmatpush.msra.mxu0 0.0
        %709 = vmatpush.msra.mxu0 0.0
        %710 = vmatpush.msra.mxu0 0.0
        %711 = vmatpush.msra.mxu0 0.0
        %712 = vmatpush.msra.mxu0 0.0
        %713 = vmatpush.msra.mxu0 0.0
        %714 = vmatpush.msra.mxu0 %v677
        %715 = vmatmul.f32.gmra.mxu0 %v673
        %v716 = vpop.f32.mrf.mxu0
        %v717 = vadd.f32 0.0, %v716
        %718 = vdwg.mxu0
        %v719 = vadd.f32 %v663, %v697
        %v720 = vadd.f32 %v664, %v717
        %v721 = vld [vmem:[#allocation2 + $0x4] sm:$0xff]
        %v722 = vld [vmem:[#allocation2 + $0xc] sm:$0xf]
        %725 = vst [vmem:[#allocation1] ss:$2 sm:$0xff] %v721
        %s726 = scalar_lea.vmem [#allocation1], 16
        %727 = vst [vmem:[%s726] ss:$2 sm:$0xff] %v722
        %v728 = vld.sshfl [vmem:[#allocation1] sm:$0xff pattern:$0x75316420]
        %v729 = vld.sshfl [vmem:[#allocation1 + $0x8] sm:$0xff pattern:$0x75316420]
        %v730 = vld.sshfl [vmem:[#allocation1 + $0x10] sm:$0xff pattern:$0x75316420]
        %731 = vrot.lane.b32.xlu0 %v728, 127
        %v732 = vpop.permute.xlu0 %731
        %733 = vrot.lane.b32.xlu0 %v729, 127
        %v734 = vpop.permute.xlu0 %733
        %735 = vrot.lane.b32.xlu0 %v730, 127
        %v736 = vpop.permute.xlu0 %735
        %vm737 = vcmask 1039360
        %v738 = vsel %vm737, %v732, %v734
        %v739 = vsel %vm737, %v734, %v736
        %v742 = vsel %vm368, %v738, 0.0
        %v743 = vsel %vm369, %v739, 0.0
        %s744 = scalar_lea.vmem %s1, 20
        %v745 = vld [vmem:[%s744] sm:$0xf]
        %v747 = vsel %vm415, %v745, 0
        %v750 = vsel %vm419, %v742, 0
        %v753 = vsel %vm419, %v743, 0
        %755 = vmatpush.msra.mxu0 0.0
        %756 = vmatpush.msra.mxu0 0.0
        %757 = vmatpush.msra.mxu0 0.0
        %758 = vmatpush.msra.mxu0 0.0
        %759 = vmatpush.msra.mxu0 0.0
        %760 = vmatpush.msra.mxu0 0.0
        %761 = vmatpush.msra.mxu0 0.0
        %762 = vmatpush.msra.mxu0 0.0
        %763 = vmatpush.msra.mxu0 0.0
        %764 = vmatpush.msra.mxu0 0.0
        %765 = vmatpush.msra.mxu0 0.0
        %766 = vmatpush.msra.mxu0 0.0
        %767 = vmatpush.msra.mxu0 0.0
        %768 = vmatpush.msra.mxu0 0.0
        %769 = vmatpush.msra.mxu0 0.0
        %770 = vmatpush.msra.mxu0 %v750
        %771 = vmatmul.f32.gmra.mxu0 %v747
        %v772 = vpop.f32.mrf.mxu0
        %v773 = vadd.f32 0.0, %v772
        %774 = vdwg.mxu0
        %775 = vmatpush.msra.mxu0 0.0
        %776 = vmatpush.msra.mxu0 0.0
        %777 = vmatpush.msra.mxu0 0.0
        %778 = vmatpush.msra.mxu0 0.0
        %779 = vmatpush.msra.mxu0 0.0
        %780 = vmatpush.msra.mxu0 0.0
        %781 = vmatpush.msra.mxu0 0.0
        %782 = vmatpush.msra.mxu0 0.0
        %783 = vmatpush.msra.mxu0 0.0
        %784 = vmatpush.msra.mxu0 0.0
        %785 = vmatpush.msra.mxu0 0.0
        %786 = vmatpush.msra.mxu0 0.0
        %787 = vmatpush.msra.mxu0 0.0
        %788 = vmatpush.msra.mxu0 0.0
        %789 = vmatpush.msra.mxu0 0.0
        %790 = vmatpush.msra.mxu0 %v753
        %791 = vmatmul.f32.gmra.mxu0 %v747
        %v792 = vpop.f32.mrf.mxu0
        %v793 = vadd.f32 0.0, %v792
        %794 = vdwg.mxu0
        %v795 = vadd.f32 %v719, %v773
        %v796 = vadd.f32 %v720, %v793
        %v797 = vld [vmem:[#allocation2 + $0x4] sm:$0xff]
        %v798 = vld [vmem:[#allocation2 + $0xc] sm:$0xf]
        %801 = vst [vmem:[#allocation1] ss:$2 sm:$0xff] %v797
        %s802 = scalar_lea.vmem [#allocation1], 16
        %803 = vst [vmem:[%s802] ss:$2 sm:$0xff] %v798
        %v804 = vld.sshfl [vmem:[#allocation1] sm:$0xff pattern:$0x75316420]
        %v805 = vld.sshfl [vmem:[#allocation1 + $0x8] sm:$0xff pattern:$0x75316420]
        %v806 = vld.sshfl [vmem:[#allocation1 + $0x10] sm:$0xff pattern:$0x75316420]
        %807 = vrot.lane.b32.xlu0 %v804, 113
        %v808 = vpop.permute.xlu0 %807
        %809 = vrot.lane.b32.xlu0 %v805, 113
        %v810 = vpop.permute.xlu0 %809
        %811 = vrot.lane.b32.xlu0 %v806, 113
        %v812 = vpop.permute.xlu0 %811
        %vm813 = vcmask 924672
        %v814 = vsel %vm813, %v808, %v810
        %v815 = vsel %vm813, %v810, %v812
        %v818 = vsel %vm366, %v814, 0.0
        %v819 = vsel %vm367, %v815, 0.0
        %s820 = scalar_lea.vmem %s1, 24
        %v821 = vld [vmem:[%s820] sm:$0xf]
        %v823 = vsel %vm415, %v821, 0
        %v826 = vsel %vm419, %v818, 0
        %v829 = vsel %vm419, %v819, 0
        %831 = vmatpush.msra.mxu0 0.0
        %832 = vmatpush.msra.mxu0 0.0
        %833 = vmatpush.msra.mxu0 0.0
        %834 = vmatpush.msra.mxu0 0.0
        %835 = vmatpush.msra.mxu0 0.0
        %836 = vmatpush.msra.mxu0 0.0
        %837 = vmatpush.msra.mxu0 0.0
        %838 = vmatpush.msra.mxu0 0.0
        %839 = vmatpush.msra.mxu0 0.0
        %840 = vmatpush.msra.mxu0 0.0
        %841 = vmatpush.msra.mxu0 0.0
        %842 = vmatpush.msra.mxu0 0.0
        %843 = vmatpush.msra.mxu0 0.0
        %844 = vmatpush.msra.mxu0 0.0
        %845 = vmatpush.msra.mxu0 0.0
        %846 = vmatpush.msra.mxu0 %v826
        %847 = vmatmul.f32.gmra.mxu0 %v823
        %v848 = vpop.f32.mrf.mxu0
        %v849 = vadd.f32 0.0, %v848
        %850 = vdwg.mxu0
        %851 = vmatpush.msra.mxu0 0.0
        %852 = vmatpush.msra.mxu0 0.0
        %853 = vmatpush.msra.mxu0 0.0
        %854 = vmatpush.msra.mxu0 0.0
        %855 = vmatpush.msra.mxu0 0.0
        %856 = vmatpush.msra.mxu0 0.0
        %857 = vmatpush.msra.mxu0 0.0
        %858 = vmatpush.msra.mxu0 0.0
        %859 = vmatpush.msra.mxu0 0.0
        %860 = vmatpush.msra.mxu0 0.0
        %861 = vmatpush.msra.mxu0 0.0
        %862 = vmatpush.msra.mxu0 0.0
        %863 = vmatpush.msra.mxu0 0.0
        %864 = vmatpush.msra.mxu0 0.0
        %865 = vmatpush.msra.mxu0 0.0
        %866 = vmatpush.msra.mxu0 %v829
        %867 = vmatmul.f32.gmra.mxu0 %v823
        %v868 = vpop.f32.mrf.mxu0
        %v869 = vadd.f32 0.0, %v868
        %870 = vdwg.mxu0
        %v871 = vadd.f32 %v795, %v849
        %v872 = vadd.f32 %v796, %v869
        %v873 = vld [vmem:[#allocation2 + $0x4] sm:$0xff]
        %v874 = vld [vmem:[#allocation2 + $0xc] sm:$0xf]
        %s875 = scalar_lea.vmem %s1, 28
        %v876 = vld [vmem:[%s875] sm:$0xf]
        %879 = vst [vmem:[#allocation1] ss:$2 sm:$0xff] %v873
        %s880 = scalar_lea.vmem [#allocation1], 16
        %881 = vst [vmem:[%s880] ss:$2 sm:$0xff] %v874
        %v882 = vld.sshfl [vmem:[#allocation1] sm:$0xff pattern:$0x75316420]
        %v883 = vld.sshfl [vmem:[#allocation1 + $0x8] sm:$0xff pattern:$0x75316420]
        %v884 = vld.sshfl [vmem:[#allocation1 + $0x10] sm:$0xff pattern:$0x75316420]
        %885 = vrot.lane.b32.xlu0 %v882, 112
        %v886 = vpop.permute.xlu0 %885
        %887 = vrot.lane.b32.xlu0 %v883, 112
        %v888 = vpop.permute.xlu0 %887
        %889 = vrot.lane.b32.xlu0 %v884, 112
        %v890 = vpop.permute.xlu0 %889
        %vm891 = vcmask 916480
        %v892 = vsel %vm891, %v886, %v888
        %v893 = vsel %vm891, %v888, %v890
        %v895 = vsel %vm415, %v876, 0
        %v897 = vsel %vm419, %v892, 0
        %v899 = vsel %vm419, %v893, 0
        %901 = vmatpush.msra.mxu0 0.0
        %902 = vmatpush.msra.mxu0 0.0
        %903 = vmatpush.msra.mxu0 0.0
        %904 = vmatpush.msra.mxu0 0.0
        %905 = vmatpush.msra.mxu0 0.0
        %906 = vmatpush.msra.mxu0 0.0
        %907 = vmatpush.msra.mxu0 0.0
        %908 = vmatpush.msra.mxu0 0.0
        %909 = vmatpush.msra.mxu0 0.0
        %910 = vmatpush.msra.mxu0 0.0
        %911 = vmatpush.msra.mxu0 0.0
        %912 = vmatpush.msra.mxu0 0.0
        %913 = vmatpush.msra.mxu0 0.0
        %914 = vmatpush.msra.mxu0 0.0
        %915 = vmatpush.msra.mxu0 0.0
        %916 = vmatpush.msra.mxu0 %v897
        %917 = vmatmul.f32.gmra.mxu0 %v895
        %v918 = vpop.f32.mrf.mxu0
        %v919 = vadd.f32 0.0, %v918
        %920 = vdwg.mxu0
        %921 = vmatpush.msra.mxu0 0.0
        %922 = vmatpush.msra.mxu0 0.0
        %923 = vmatpush.msra.mxu0 0.0
        %924 = vmatpush.msra.mxu0 0.0
        %925 = vmatpush.msra.mxu0 0.0
        %926 = vmatpush.msra.mxu0 0.0
        %927 = vmatpush.msra.mxu0 0.0
        %928 = vmatpush.msra.mxu0 0.0
        %929 = vmatpush.msra.mxu0 0.0
        %930 = vmatpush.msra.mxu0 0.0
        %931 = vmatpush.msra.mxu0 0.0
        %932 = vmatpush.msra.mxu0 0.0
        %933 = vmatpush.msra.mxu0 0.0
        %934 = vmatpush.msra.mxu0 0.0
        %935 = vmatpush.msra.mxu0 0.0
        %936 = vmatpush.msra.mxu0 %v899
        %937 = vmatmul.f32.gmra.mxu0 %v895
        %v938 = vpop.f32.mrf.mxu0
        %v939 = vadd.f32 0.0, %v938
        %940 = vdwg.mxu0
        %v941 = vadd.f32 %v871, %v919
        %v942 = vadd.f32 %v872, %v939
        %v943 = vld [vmem:[#allocation2 + $0x4] sm:$0xff]
        %v944 = vld [vmem:[#allocation2 + $0xc] sm:$0xf]
        %947 = vst [vmem:[#allocation1] ss:$2 sm:$0xff] %v943
        %s948 = scalar_lea.vmem [#allocation1], 16
        %949 = vst [vmem:[%s948] ss:$2 sm:$0xff] %v944
        %v950 = vld.sshfl [vmem:[#allocation1] sm:$0xff pattern:$0x75316420]
        %v951 = vld.sshfl [vmem:[#allocation1 + $0x8] sm:$0xff pattern:$0x75316420]
        %v952 = vld.sshfl [vmem:[#allocation1 + $0x10] sm:$0xff pattern:$0x75316420]
        %953 = vrot.lane.b32.xlu0 %v950, 111
        %v954 = vpop.permute.xlu0 %953
        %955 = vrot.lane.b32.xlu0 %v951, 111
        %v956 = vpop.permute.xlu0 %955
        %957 = vrot.lane.b32.xlu0 %v952, 111
        %v958 = vpop.permute.xlu0 %957
        %vm959 = vcmask 908288
        %v960 = vsel %vm959, %v954, %v956
        %v961 = vsel %vm959, %v956, %v958
        %v964 = vsel %vm368, %v960, 0.0
        %v965 = vsel %vm369, %v961, 0.0
        %s966 = scalar_lea.vmem %s1, 32
        %v967 = vld [vmem:[%s966] sm:$0xf]
        %v969 = vsel %vm415, %v967, 0
        %v972 = vsel %vm419, %v964, 0
        %v975 = vsel %vm419, %v965, 0
        %977 = vmatpush.msra.mxu0 0.0
        %978 = vmatpush.msra.mxu0 0.0
        %979 = vmatpush.msra.mxu0 0.0
        %980 = vmatpush.msra.mxu0 0.0
        %981 = vmatpush.msra.mxu0 0.0
        %982 = vmatpush.msra.mxu0 0.0
        %983 = vmatpush.msra.mxu0 0.0
        %984 = vmatpush.msra.mxu0 0.0
        %985 = vmatpush.msra.mxu0 0.0
        %986 = vmatpush.msra.mxu0 0.0
        %987 = vmatpush.msra.mxu0 0.0
        %988 = vmatpush.msra.mxu0 0.0
        %989 = vmatpush.msra.mxu0 0.0
        %990 = vmatpush.msra.mxu0 0.0
        %991 = vmatpush.msra.mxu0 0.0
        %992 = vmatpush.msra.mxu0 %v972
        %993 = vmatmul.f32.gmra.mxu0 %v969
        %v994 = vpop.f32.mrf.mxu0
        %v995 = vadd.f32 0.0, %v994
        %996 = vdwg.mxu0
        %997 = vmatpush.msra.mxu0 0.0
        %998 = vmatpush.msra.mxu0 0.0
        %999 = vmatpush.msra.mxu0 0.0
        %1000 = vmatpush.msra.mxu0 0.0
        %1001 = vmatpush.msra.mxu0 0.0
        %1002 = vmatpush.msra.mxu0 0.0
        %1003 = vmatpush.msra.mxu0 0.0
        %1004 = vmatpush.msra.mxu0 0.0
        %1005 = vmatpush.msra.mxu0 0.0
        %1006 = vmatpush.msra.mxu0 0.0
        %1007 = vmatpush.msra.mxu0 0.0
        %1008 = vmatpush.msra.mxu0 0.0
        %1009 = vmatpush.msra.mxu0 0.0
        %1010 = vmatpush.msra.mxu0 0.0
        %1011 = vmatpush.msra.mxu0 0.0
        %1012 = vmatpush.msra.mxu0 %v975
        %1013 = vmatmul.f32.gmra.mxu0 %v969
        %v1014 = vpop.f32.mrf.mxu0
        %v1015 = vadd.f32 0.0, %v1014
        %1016 = vdwg.mxu0
        %v1017 = vadd.f32 %v941, %v995
        %v1018 = vadd.f32 %v942, %v1015
        %v1021 = vrot.slane %v1018, 4
        %v1022 = vsel %vm419, %v1017, %v1021
        %1024 = vst [vmem:[%s291] sm:$0xff] %v1022
        %v1025 = vsel %vm419, %v1017, 0.0
        %v1026 = vsel %vm419, %v1018, 0.0
        %v1027 = vadd.f32 %v1025, %v1026
        %1028 = vadd.xlane.f32.xlu0 %v1027
        %v1029 = vpop.xlane.xlu0 %1028
        %vm1030 = vcmask 3072
        %1031 = vst.msk [vmem:[%s295] sm:$0xf] %vm1030, %v1029
        %v1032 = vmul.f32 %v1017, %v1017
        %v1033 = vmul.f32 %v1018, %v1018
        %v1034 = vsel %vm419, %v1032, 0.0
        %v1035 = vsel %vm419, %v1033, 0.0
        %v1036 = vadd.f32 %v1034, %v1035
        %1037 = vadd.xlane.f32.xlu0 %v1036
        %v1038 = vpop.xlane.xlu0 %1037
        %1039 = vst.msk [vmem:[%s299] sm:$0xf] %vm1030, %v1038
        %p1040 = scmp.lt.s32.totalorder %s20, 1
        %s1041 = scalar_select %p1040, %s20, 1
        %s1042 = smul.addr %s1041, 2
        %s1043 = smul.addr %s1042, 4
        %s1044 = scalar_lea.vmem %s4, %s1043
        %p1045 = scmp.lt.s32.totalorder %s20, 1
        %s1046 = scalar_select %p1045, %s20, 1
        %s1047 = smul.addr %s1046, 4
        %s1048 = scalar_lea.vmem %s5, %s1047
        %p1049 = scmp.lt.s32.totalorder %s20, 1
        %s1050 = scalar_select %p1049, %s20, 1
        %s1051 = smul.addr %s1050, 4
        %s1052 = scalar_lea.vmem %s6, %s1051
        // Predicated region
        $region45: #{preact_block_forward.4} parent=35 // pred_check
          %p1053 = pneg %p127
        $region46: #{preact_block_forward.4} parent=35 // pred_check_branch
          %1055 = sbr.rel (%p1053) target = $region48
        $region47: #{preact_block_forward.4} parent=35 // pred_region
          _
        $region48: #{preact_block_forward.4} parent=35 // pred_fallthru
          _
        // Predicated region
        $region49: #{preact_block_forward.4} parent=35 // pred_check
          %p1056 = pneg %p153
        $region50: #{preact_block_forward.4} parent=35 // pred_check_branch
          %1058 = sbr.rel (%p1056) target = $region52
        $region51: #{preact_block_forward.4} parent=35 // pred_region
          _
        $region52: #{preact_block_forward.4} parent=35 // pred_fallthru
          _
        // Predicated region
        $region53: #{preact_block_forward.4} parent=35 // pred_check
          %p1059 = pneg %p179
        $region54: #{preact_block_forward.4} parent=35 // pred_check_branch
          %1061 = sbr.rel (%p1059) target = $region56
        $region55: #{preact_block_forward.4} parent=35 // pred_region
          _
        $region56: #{preact_block_forward.4} parent=35 // pred_fallthru
          _
      $region36: #{preact_block_forward.4} parent=5 // pred_fallthru
        _
      %p1062 = scmp.le.s32.totalorder 2, %s15
      // Predicated region
      $region57: #{preact_block_forward.4} parent=5 // pred_check
        %p1063 = pneg %p1062
      $region58: #{preact_block_forward.4} parent=5 // pred_check_branch
        %1065 = sbr.rel (%p1063) target = $region60
      $region59: #{preact_block_forward.4} parent=5 // pred_region
        %s1066 = ssub.s32 %s15, 2
        // Predicated region
        $region61: #{preact_block_forward.4} parent=59 // pred_check
          %p1067 = pneg %p133
        $region62: #{preact_block_forward.4} parent=59 // pred_check_branch
          %1069 = sbr.rel (%p1067) target = $region64
        $region63: #{preact_block_forward.4} parent=59 // pred_region
          %p1070 = scmp.lt.s32.totalorder %s21, 1
          %s1071 = scalar_select %p1070, %s21, 1
          %s1072 = smul.addr %s1071, 2
          %s1073 = smul.addr %s1072, 4
          %s1074 = scalar_lea.vmem %s4, %s1073
        $region64: #{preact_block_forward.4} parent=59 // pred_fallthru
          _
        // Predicated region
        $region65: #{preact_block_forward.4} parent=59 // pred_check
          %p1075 = pneg %p159
        $region66: #{preact_block_forward.4} parent=59 // pred_check_branch
          %1077 = sbr.rel (%p1075) target = $region68
        $region67: #{preact_block_forward.4} parent=59 // pred_region
          %p1078 = scmp.lt.s32.totalorder %s21, 1
          %s1079 = scalar_select %p1078, %s21, 1
          %s1080 = smul.addr %s1079, 4
          %s1081 = scalar_lea.vmem %s5, %s1080
        $region68: #{preact_block_forward.4} parent=59 // pred_fallthru
          _
        // Predicated region
        $region69: #{preact_block_forward.4} parent=59 // pred_check
          %p1082 = pneg %p185
        $region70: #{preact_block_forward.4} parent=59 // pred_check_branch
          %1084 = sbr.rel (%p1082) target = $region72
        $region71: #{preact_block_forward.4} parent=59 // pred_region
          %p1085 = scmp.lt.s32.totalorder %s21, 1
          %s1086 = scalar_select %p1085, %s21, 1
          %s1087 = smul.addr %s1086, 4
          %s1088 = scalar_lea.vmem %s6, %s1087
        $region72: #{preact_block_forward.4} parent=59 // pred_fallthru
          _
      $region60: #{preact_block_forward.4} parent=5 // pred_fallthru
        _
    $region6: #{preact_block_forward.4} parent=1 // loop_footer
      %s19 = sadd.s32 1, %s15
    $region7: #{preact_block_forward.4} parent=1 // loop_footer_branch
      %14 = sbr.rel target = $region3
    $region8: #{preact_block_forward.4} parent=1 // loop_exit
      _
    %1089 = vsyncpa [#allocation4], 1
    %s1090 = scalar_lea.sflag [#allocation4], 1
    %1091 = vsyncpa %s1090, 1
    %1092 = vsyncpa [#allocation6], 1

</llo_original>
